<compile_context>
chip_gen: v5e
topology: v5e:2x2
jax: 0.10.0
libtpu: 0.0.40
codegen_flags: <defaults>
</compile_context>

<pallas_src>
import jax
import jax.numpy as jnp
from jax.experimental import pallas as pl
from jax.experimental.pallas import tpu as pltpu


def _make_conv_bn_act_kernel(*, kh, kw, stride, tile_rows, Wo, Cin, ac_type):
    """Fused in-kernel-im2col conv + folded-BN bias + activation epilogue."""

    def kernel(x_ref, w_ref, b_ref, o_ref, acc_ref):
        # x_ref  : (1, Hp, Wp, Cin)          bf16  full padded plane of batch n (resident)
        # w_ref  : (kh*kw, Cin, tile_cout)   bf16  BN-folded weights (resident per oc tile)
        # b_ref  : (1, tile_cout)            f32   BN-folded bias
        # o_ref  : (1, tile_rows*Wo, tile_cout)
        # acc_ref: (tile_rows*Wo, tile_cout) f32   VMEM accumulator
        t = pl.program_id(2)
        row0 = t * tile_rows * stride

        acc_ref[...] = jnp.zeros_like(acc_ref)
        for r in range(kh * kw):            # unrolled: kh*kw accumulating MXU passes
            i, j = divmod(r, kw)
            if stride == 1:
                win = x_ref[0, pl.ds(row0 + i, tile_rows), pl.ds(j, Wo), :]
            else:
                win = x_ref[0,
                            pl.ds(row0 + i, (tile_rows - 1) * stride + 1),
                            pl.ds(j, (Wo - 1) * stride + 1), :]
                win = win[::stride, ::stride, :]
            patch = win.reshape(tile_rows * Wo, Cin)   # free retiling when Wo % 8 == 0
            acc_ref[...] += jnp.dot(patch, w_ref[r],
                                    preferred_element_type=jnp.float32)

        acc = acc_ref[...] + b_ref[...]     # folded BN shift, broadcast over rows

        if ac_type == "mish":
            # mish(x) = x * tanh(softplus(x)) = x * (e^2x + 2e^x) / (e^2x + 2e^x + 2)
            # -> one exp + one approx reciprocal (both EUP).  The clamp keeps exp finite
            #    and saturates the ratio to 1.0 (mish(x) ~ x) for large x.
            xc = jnp.minimum(acc, 20.0)
            ex = jnp.exp(xc)
            num = ex * (ex + 2.0)
            y = acc * (num * pl.reciprocal(num + 2.0, approx=True))
        elif ac_type == "relu":
            y = jnp.maximum(acc, 0.0)
        elif ac_type == "leaky":
            y = jnp.where(acc >= 0.0, acc, 0.1 * acc)
        else:
            y = acc

        o_ref[0] = y.astype(o_ref.dtype)

    return kernel


def _pick_tile_rows(Ho, Wo, target_m=1024):
    """Largest divisor of Ho whose (rows*Wo) tile stays <= target_m and is 8-aligned."""
    cand = [th for th in range(1, Ho + 1)
            if Ho % th == 0 and (th == Ho or (th * Wo) % 8 == 0)]
    fit = [th for th in cand if th * Wo <= target_m]
    return max(fit) if fit else min(cand)


def _pick_tile_cout(Cout):
    if Cout <= 256 or Cout % 128 != 0:
        return Cout
    return 256 if Cout % 256 == 0 else 128


def conv_bn_activation(x, weight, bn_gamma, bn_beta, bn_mean, bn_var, *,
                       stride=1, padding=1, eps=1e-5, ac_type="mish",
                       compute_dtype=jnp.bfloat16, target_tile_m=1024):
    """Fused Conv2d(bias=False) + BatchNorm2d(eval) + activation.  NCHW in / NCHW out."""
    N, Cin, H, W = x.shape
    Cout, _, kh, kw = weight.shape
    Ho = (H + 2 * padding - kh) // stride + 1
    Wo = (W + 2 * padding - kw) // stride + 1
    Hp, Wp = H + 2 * padding, W + 2 * padding
    K = Cin * kh * kw

    # ---- Fold BN into conv weights/bias; weights laid out (kh*kw, Cin, Cout). ----
    scale = bn_gamma * jax.lax.rsqrt(bn_var + eps)                        # (Cout,)
    w_f = weight * scale[:, None, None, None]                             # (Cout,Cin,kh,kw)
    w_f = jnp.transpose(w_f, (2, 3, 1, 0)).reshape(kh * kw, Cin, Cout)
    w_f = w_f.astype(compute_dtype)
    b_f = (bn_beta - bn_mean * scale).reshape(1, Cout).astype(jnp.float32)

    # ---- NCHW -> padded NHWC in the compute dtype (single pass over the input). ----
    xp = jnp.transpose(x, (0, 2, 3, 1))
    xp = jnp.pad(xp, ((0, 0), (padding, padding), (padding, padding), (0, 0)))
    xp = xp.astype(compute_dtype)

    # ---- Tiling. ----
    tile_rows = _pick_tile_rows(Ho, Wo, target_tile_m)
    tile_cout = _pick_tile_cout(Cout)
    n_row_tiles = Ho // tile_rows
    n_oc_tiles = Cout // tile_cout
    tile_m = tile_rows * Wo

    in_bytes = jnp.dtype(compute_dtype).itemsize
    out_bytes = jnp.dtype(x.dtype).itemsize
    footprint = (2 * Hp * Wp * Cin * in_bytes                 # resident input plane (x2 buf)
                 + 2 * kh * kw * Cin * tile_cout * in_bytes   # weight tile (x2 buf)
                 + 2 * Cout * 4                               # bias
                 + 2 * tile_m * tile_cout * out_bytes         # output tile (x2 buf)
                 + tile_m * tile_cout * 4)                    # f32 accumulator scratch
    vmem_limit = int(min(64 * 2 ** 20, max(16 * 2 ** 20, 2 * footprint)))

    cost = pl.CostEstimate(
        flops=2 * N * Ho * Wo * K * Cout,
        transcendentals=N * Ho * Wo * Cout,
        bytes_accessed=(xp.size * in_bytes + w_f.size * in_bytes
                        + b_f.size * 4 + N * Ho * Wo * Cout * out_bytes),
    )

    kernel = _make_conv_bn_act_kernel(kh=kh, kw=kw, stride=stride,
                                      tile_rows=tile_rows, Wo=Wo, Cin=Cin,
                                      ac_type=ac_type)

    out = pl.pallas_call(
        kernel,
        out_shape=jax.ShapeDtypeStruct((N, Ho * Wo, Cout), x.dtype),
        grid_spec=pltpu.PrefetchScalarGridSpec(
            num_scalar_prefetch=0,
            grid=(N, n_oc_tiles, n_row_tiles),            # row tiles innermost
            in_specs=[
                pl.BlockSpec((1, Hp, Wp, Cin), lambda n, oc, t: (n, 0, 0, 0)),
                pl.BlockSpec((kh * kw, Cin, tile_cout), lambda n, oc, t: (0, 0, oc)),
                pl.BlockSpec((1, tile_cout), lambda n, oc, t: (0, oc)),
            ],
            out_specs=pl.BlockSpec((1, tile_m, tile_cout),
                                   lambda n, oc, t: (n, t, oc)),
            scratch_shapes=[pltpu.VMEM((tile_m, tile_cout), jnp.float32)],
        ),
        compiler_params=pltpu.CompilerParams(
            dimension_semantics=("parallel", "parallel", "arbitrary"),
            vmem_limit_bytes=vmem_limit,
        ),
        cost_estimate=cost,
    )(xp, w_f, b_f)

    # (N, Ho*Wo, Cout) -> NCHW.  One output-sized pass to honor the module's NCHW
    # interface; a channels-last consumer could take out.reshape(N, Ho, Wo, Cout) as-is.
    return out.reshape(N, Ho, Wo, Cout).transpose(0, 3, 1, 2)


def conv_bn_activation_ref(x, weight, gamma, beta, mean, var, *, stride=1, padding=1,
                           eps=1e-5, ac_type="mish"):
    """Pure-JAX reference matching the PyTorch module (eval-mode BN), f32 HIGHEST."""
    y = jax.lax.conv_general_dilated(
        x, weight, window_strides=(stride, stride),
        padding=((padding, padding), (padding, padding)),
        dimension_numbers=("NCHW", "OIHW", "NCHW"),
        precision=jax.lax.Precision.HIGHEST,
    )
    y = (y - mean[None, :, None, None]) * jax.lax.rsqrt(var + eps)[None, :, None, None]
    y = y * gamma[None, :, None, None] + beta[None, :, None, None]
    if ac_type == "mish":
        return y * jnp.tanh(jax.nn.softplus(y))
    if ac_type == "relu":
        return jnp.maximum(y, 0.0)
    if ac_type == "leaky":
        return jnp.where(y >= 0.0, y, 0.1 * y)
    return y


if __name__ == "__main__":
    key = jax.random.PRNGKey(0)
    k1, k2, k3, k4, k5, k6 = jax.random.split(key, 6)

    # Small shapes consistent with the module: NCHW input, 3x3 conv, stride 1, pad 1.
    N, Cin, H, W = 2, 4, 16, 16
    Cout, ksz = 8, 3

    x = jax.random.normal(k1, (N, Cin, H, W), dtype=jnp.float32)
    weight = jax.random.normal(k2, (Cout, Cin, ksz, ksz), dtype=jnp.float32)
    weight = weight * (1.0 / (Cin * ksz * ksz) ** 0.5)
    bn_gamma = jax.random.uniform(k3, (Cout,), jnp.float32, 0.5, 1.5)
    bn_beta = jax.random.normal(k4, (Cout,), jnp.float32) * 0.1
    bn_mean = jax.random.normal(k5, (Cout,), jnp.float32) * 0.1
    bn_var = jax.random.uniform(k6, (Cout,), jnp.float32, 0.5, 1.5)

    y = conv_bn_activation(x, weight, bn_gamma, bn_beta, bn_mean, bn_var,
                           stride=1, padding=1, ac_type="mish")
    jax.block_until_ready(y)

    y_ref = conv_bn_activation_ref(x, weight, bn_gamma, bn_beta, bn_mean, bn_var,
                                   stride=1, padding=1, ac_type="mish")

    assert y.shape == (N, Cout, H, W) and y.dtype == x.dtype
    max_err = float(jnp.max(jnp.abs(y - y_ref)))
    # bf16 matmul inputs (f32 accumulation) + approx reciprocal in mish => looser
    # tolerance vs. the Precision.HIGHEST f32 reference (expected, per review).
    assert jnp.allclose(y, y_ref, atol=4e-2, rtol=4e-2), max_err
    print("KERNEL_OK")
</pallas_src>

<mosaic_0001>
module attributes {stable_mosaic.version = 11 : i64} {
  func.func @kernel(%arg0: i32, %arg1: i32, %arg2: i32, %arg3: memref<1x18x18x4xbf16, #tpu.memory_space<vmem>>, %arg4: memref<9x4x8xbf16, #tpu.memory_space<vmem>>, %arg5: memref<1x8xf32, #tpu.memory_space<vmem>>, %arg6: memref<1x256x8xf32, #tpu.memory_space<vmem>>, %arg7: memref<256x8xf32, #tpu.memory_space<vmem>>) attributes {dimension_semantics = [#tpu.dimension_semantics<parallel>, #tpu.dimension_semantics<parallel>, #tpu.dimension_semantics<arbitrary>], iteration_bounds = array<i64: 2, 1, 1>, scalar_prefetch = 0 : i64, scratch_operands = 1 : i64, tpu.core_type = #tpu.core_type<tc>, window_params = [{transform_indices = @transform_0, window_bounds = array<i64: 1, 18, 18, 4>}, {transform_indices = @transform_1, window_bounds = array<i64: 9, 4, 8>}, {transform_indices = @transform_2, window_bounds = array<i64: 1, 8>}, {transform_indices = @transform_3, window_bounds = array<i64: 1, 256, 8>}]} {
    %c16_i32 = arith.constant 16 : i32
    %0 = arith.muli %arg2, %c16_i32 : i32
    %c1_i32 = arith.constant 1 : i32
    %1 = arith.muli %0, %c1_i32 : i32
    %cst = arith.constant 0.000000e+00 : f32
    %2 = vector.broadcast %cst : f32 to vector<256x8xf32>
    %c0 = arith.constant 0 : index
    %c0_0 = arith.constant 0 : index
    %3 = vector.load %arg7[%c0, %c0_0] : memref<256x8xf32, #tpu.memory_space<vmem>>, vector<256x8xf32>
    tpu.vector_store %arg7[%c0, %c0_0], %2 {strides = array<i32>} : memref<256x8xf32, #tpu.memory_space<vmem>>, vector<256x8xf32>,
    %c0_i32 = arith.constant 0 : i32
    %4 = arith.addi %1, %c0_i32 : i32
    %c0_1 = arith.constant 0 : index
    %5 = arith.index_cast %4 : i32 to index
    %c0_2 = arith.constant 0 : index
    %c0_3 = arith.constant 0 : index
    %6 = vector.load %arg3[%c0_1, %5, %c0_2, %c0_3] : memref<1x18x18x4xbf16, #tpu.memory_space<vmem>>, vector<1x16x16x4xbf16>
    %7 = vector.shape_cast %6 : vector<1x16x16x4xbf16> to vector<16x16x4xbf16>
    %8 = vector.shape_cast %7 : vector<16x16x4xbf16> to vector<256x4xbf16>
    %c0_4 = arith.constant 0 : index
    %c0_5 = arith.constant 0 : index
    %9 = vector.load %arg7[%c0_4, %c0_5] : memref<256x8xf32, #tpu.memory_space<vmem>>, vector<256x8xf32>
    %c0_6 = arith.constant 0 : index
    %c0_7 = arith.constant 0 : index
    %c0_8 = arith.constant 0 : index
    %10 = vector.load %arg4[%c0_6, %c0_7, %c0_8] : memref<9x4x8xbf16, #tpu.memory_space<vmem>>, vector<1x4x8xbf16>
    %11 = vector.shape_cast %10 : vector<1x4x8xbf16> to vector<4x8xbf16>
    %cst_9 = arith.constant dense<0.000000e+00> : vector<256x8xf32>
    %12 = tpu.matmul %8, %11, %cst_9 {dimension_numbers = #tpu.dot_dimension_numbers<[1], [0], [0], [1], [0, 0, 1, 1], [], []>} : vector<256x4xbf16>, vector<4x8xbf16>, vector<256x8xf32> -> vector<256x8xf32>
    %13 = arith.addf %9, %12 : vector<256x8xf32>
    %c0_10 = arith.constant 0 : index
    %c0_11 = arith.constant 0 : index
    %14 = vector.load %arg7[%c0_10, %c0_11] : memref<256x8xf32, #tpu.memory_space<vmem>>, vector<256x8xf32>
    tpu.vector_store %arg7[%c0_10, %c0_11], %13 {strides = array<i32>} : memref<256x8xf32, #tpu.memory_space<vmem>>, vector<256x8xf32>,
    %c0_i32_12 = arith.constant 0 : i32
    %15 = arith.addi %1, %c0_i32_12 : i32
    %c0_13 = arith.constant 0 : index
    %16 = arith.index_cast %15 : i32 to index
    %c1 = arith.constant 1 : index
    %c0_14 = arith.constant 0 : index
    %17 = vector.load %arg3[%c0_13, %16, %c1, %c0_14] : memref<1x18x18x4xbf16, #tpu.memory_space<vmem>>, vector<1x16x16x4xbf16>
    %18 = vector.shape_cast %17 : vector<1x16x16x4xbf16> to vector<16x16x4xbf16>
    %19 = vector.shape_cast %18 : vector<16x16x4xbf16> to vector<256x4xbf16>
    %c0_15 = arith.constant 0 : index
    %c0_16 = arith.constant 0 : index
    %20 = vector.load %arg7[%c0_15, %c0_16] : memref<256x8xf32, #tpu.memory_space<vmem>>, vector<256x8xf32>
    %c1_17 = arith.constant 1 : index
    %c0_18 = arith.constant 0 : index
    %c0_19 = arith.constant 0 : index
    %21 = vector.load %arg4[%c1_17, %c0_18, %c0_19] : memref<9x4x8xbf16, #tpu.memory_space<vmem>>, vector<1x4x8xbf16>
    %22 = vector.shape_cast %21 : vector<1x4x8xbf16> to vector<4x8xbf16>
    %cst_20 = arith.constant dense<0.000000e+00> : vector<256x8xf32>
    %23 = tpu.matmul %19, %22, %cst_20 {dimension_numbers = #tpu.dot_dimension_numbers<[1], [0], [0], [1], [0, 0, 1, 1], [], []>} : vector<256x4xbf16>, vector<4x8xbf16>, vector<256x8xf32> -> vector<256x8xf32>
    %24 = arith.addf %20, %23 : vector<256x8xf32>
    %c0_21 = arith.constant 0 : index
    %c0_22 = arith.constant 0 : index
    %25 = vector.load %arg7[%c0_21, %c0_22] : memref<256x8xf32, #tpu.memory_space<vmem>>, vector<256x8xf32>
    tpu.vector_store %arg7[%c0_21, %c0_22], %24 {strides = array<i32>} : memref<256x8xf32, #tpu.memory_space<vmem>>, vector<256x8xf32>,
    %c0_i32_23 = arith.constant 0 : i32
    %26 = arith.addi %1, %c0_i32_23 : i32
    %c0_24 = arith.constant 0 : index
    %27 = arith.index_cast %26 : i32 to index
    %c2 = arith.constant 2 : index
    %c0_25 = arith.constant 0 : index
    %28 = vector.load %arg3[%c0_24, %27, %c2, %c0_25] : memref<1x18x18x4xbf16, #tpu.memory_space<vmem>>, vector<1x16x16x4xbf16>
    %29 = vector.shape_cast %28 : vector<1x16x16x4xbf16> to vector<16x16x4xbf16>
    %30 = vector.shape_cast %29 : vector<16x16x4xbf16> to vector<256x4xbf16>
    %c0_26 = arith.constant 0 : index
    %c0_27 = arith.constant 0 : index
    %31 = vector.load %arg7[%c0_26, %c0_27] : memref<256x8xf32, #tpu.memory_space<vmem>>, vector<256x8xf32>
    %c2_28 = arith.constant 2 : index
    %c0_29 = arith.constant 0 : index
    %c0_30 = arith.constant 0 : index
    %32 = vector.load %arg4[%c2_28, %c0_29, %c0_30] : memref<9x4x8xbf16, #tpu.memory_space<vmem>>, vector<1x4x8xbf16>
    %33 = vector.shape_cast %32 : vector<1x4x8xbf16> to vector<4x8xbf16>
    %cst_31 = arith.constant dense<0.000000e+00> : vector<256x8xf32>
    %34 = tpu.matmul %30, %33, %cst_31 {dimension_numbers = #tpu.dot_dimension_numbers<[1], [0], [0], [1], [0, 0, 1, 1], [], []>} : vector<256x4xbf16>, vector<4x8xbf16>, vector<256x8xf32> -> vector<256x8xf32>
    %35 = arith.addf %31, %34 : vector<256x8xf32>
    %c0_32 = arith.constant 0 : index
    %c0_33 = arith.constant 0 : index
    %36 = vector.load %arg7[%c0_32, %c0_33] : memref<256x8xf32, #tpu.memory_space<vmem>>, vector<256x8xf32>
    tpu.vector_store %arg7[%c0_32, %c0_33], %35 {strides = array<i32>} : memref<256x8xf32, #tpu.memory_space<vmem>>, vector<256x8xf32>,
    %c1_i32_34 = arith.constant 1 : i32
    %37 = arith.addi %1, %c1_i32_34 : i32
    %c0_35 = arith.constant 0 : index
    %38 = arith.index_cast %37 : i32 to index
    %c0_36 = arith.constant 0 : index
    %c0_37 = arith.constant 0 : index
    %39 = vector.load %arg3[%c0_35, %38, %c0_36, %c0_37] : memref<1x18x18x4xbf16, #tpu.memory_space<vmem>>, vector<1x16x16x4xbf16>
    %40 = vector.shape_cast %39 : vector<1x16x16x4xbf16> to vector<16x16x4xbf16>
    %41 = vector.shape_cast %40 : vector<16x16x4xbf16> to vector<256x4xbf16>
    %c0_38 = arith.constant 0 : index
    %c0_39 = arith.constant 0 : index
    %42 = vector.load %arg7[%c0_38, %c0_39] : memref<256x8xf32, #tpu.memory_space<vmem>>, vector<256x8xf32>
    %c3 = arith.constant 3 : index
    %c0_40 = arith.constant 0 : index
    %c0_41 = arith.constant 0 : index
    %43 = vector.load %arg4[%c3, %c0_40, %c0_41] : memref<9x4x8xbf16, #tpu.memory_space<vmem>>, vector<1x4x8xbf16>
    %44 = vector.shape_cast %43 : vector<1x4x8xbf16> to vector<4x8xbf16>
    %cst_42 = arith.constant dense<0.000000e+00> : vector<256x8xf32>
    %45 = tpu.matmul %41, %44, %cst_42 {dimension_numbers = #tpu.dot_dimension_numbers<[1], [0], [0], [1], [0, 0, 1, 1], [], []>} : vector<256x4xbf16>, vector<4x8xbf16>, vector<256x8xf32> -> vector<256x8xf32>
    %46 = arith.addf %42, %45 : vector<256x8xf32>
    %c0_43 = arith.constant 0 : index
    %c0_44 = arith.constant 0 : index
    %47 = vector.load %arg7[%c0_43, %c0_44] : memref<256x8xf32, #tpu.memory_space<vmem>>, vector<256x8xf32>
    tpu.vector_store %arg7[%c0_43, %c0_44], %46 {strides = array<i32>} : memref<256x8xf32, #tpu.memory_space<vmem>>, vector<256x8xf32>,
    %c1_i32_45 = arith.constant 1 : i32
    %48 = arith.addi %1, %c1_i32_45 : i32
    %c0_46 = arith.constant 0 : index
    %49 = arith.index_cast %48 : i32 to index
    %c1_47 = arith.constant 1 : index
    %c0_48 = arith.constant 0 : index
    %50 = vector.load %arg3[%c0_46, %49, %c1_47, %c0_48] : memref<1x18x18x4xbf16, #tpu.memory_space<vmem>>, vector<1x16x16x4xbf16>
    %51 = vector.shape_cast %50 : vector<1x16x16x4xbf16> to vector<16x16x4xbf16>
    %52 = vector.shape_cast %51 : vector<16x16x4xbf16> to vector<256x4xbf16>
    %c0_49 = arith.constant 0 : index
    %c0_50 = arith.constant 0 : index
    %53 = vector.load %arg7[%c0_49, %c0_50] : memref<256x8xf32, #tpu.memory_space<vmem>>, vector<256x8xf32>
    %c4 = arith.constant 4 : index
    %c0_51 = arith.constant 0 : index
    %c0_52 = arith.constant 0 : index
    %54 = vector.load %arg4[%c4, %c0_51, %c0_52] : memref<9x4x8xbf16, #tpu.memory_space<vmem>>, vector<1x4x8xbf16>
    %55 = vector.shape_cast %54 : vector<1x4x8xbf16> to vector<4x8xbf16>
    %cst_53 = arith.constant dense<0.000000e+00> : vector<256x8xf32>
    %56 = tpu.matmul %52, %55, %cst_53 {dimension_numbers = #tpu.dot_dimension_numbers<[1], [0], [0], [1], [0, 0, 1, 1], [], []>} : vector<256x4xbf16>, vector<4x8xbf16>, vector<256x8xf32> -> vector<256x8xf32>
    %57 = arith.addf %53, %56 : vector<256x8xf32>
    %c0_54 = arith.constant 0 : index
    %c0_55 = arith.constant 0 : index
    %58 = vector.load %arg7[%c0_54, %c0_55] : memref<256x8xf32, #tpu.memory_space<vmem>>, vector<256x8xf32>
    tpu.vector_store %arg7[%c0_54, %c0_55], %57 {strides = array<i32>} : memref<256x8xf32, #tpu.memory_space<vmem>>, vector<256x8xf32>,
    %c1_i32_56 = arith.constant 1 : i32
    %59 = arith.addi %1, %c1_i32_56 : i32
    %c0_57 = arith.constant 0 : index
    %60 = arith.index_cast %59 : i32 to index
    %c2_58 = arith.constant 2 : index
    %c0_59 = arith.constant 0 : index
    %61 = vector.load %arg3[%c0_57, %60, %c2_58, %c0_59] : memref<1x18x18x4xbf16, #tpu.memory_space<vmem>>, vector<1x16x16x4xbf16>
    %62 = vector.shape_cast %61 : vector<1x16x16x4xbf16> to vector<16x16x4xbf16>
    %63 = vector.shape_cast %62 : vector<16x16x4xbf16> to vector<256x4xbf16>
    %c0_60 = arith.constant 0 : index
    %c0_61 = arith.constant 0 : index
    %64 = vector.load %arg7[%c0_60, %c0_61] : memref<256x8xf32, #tpu.memory_space<vmem>>, vector<256x8xf32>
    %c5 = arith.constant 5 : index
    %c0_62 = arith.constant 0 : index
    %c0_63 = arith.constant 0 : index
    %65 = vector.load %arg4[%c5, %c0_62, %c0_63] : memref<9x4x8xbf16, #tpu.memory_space<vmem>>, vector<1x4x8xbf16>
    %66 = vector.shape_cast %65 : vector<1x4x8xbf16> to vector<4x8xbf16>
    %cst_64 = arith.constant dense<0.000000e+00> : vector<256x8xf32>
    %67 = tpu.matmul %63, %66, %cst_64 {dimension_numbers = #tpu.dot_dimension_numbers<[1], [0], [0], [1], [0, 0, 1, 1], [], []>} : vector<256x4xbf16>, vector<4x8xbf16>, vector<256x8xf32> -> vector<256x8xf32>
    %68 = arith.addf %64, %67 : vector<256x8xf32>
    %c0_65 = arith.constant 0 : index
    %c0_66 = arith.constant 0 : index
    %69 = vector.load %arg7[%c0_65, %c0_66] : memref<256x8xf32, #tpu.memory_space<vmem>>, vector<256x8xf32>
    tpu.vector_store %arg7[%c0_65, %c0_66], %68 {strides = array<i32>} : memref<256x8xf32, #tpu.memory_space<vmem>>, vector<256x8xf32>,
    %c2_i32 = arith.constant 2 : i32
    %70 = arith.addi %1, %c2_i32 : i32
    %c0_67 = arith.constant 0 : index
    %71 = arith.index_cast %70 : i32 to index
    %c0_68 = arith.constant 0 : index
    %c0_69 = arith.constant 0 : index
    %72 = vector.load %arg3[%c0_67, %71, %c0_68, %c0_69] : memref<1x18x18x4xbf16, #tpu.memory_space<vmem>>, vector<1x16x16x4xbf16>
    %73 = vector.shape_cast %72 : vector<1x16x16x4xbf16> to vector<16x16x4xbf16>
    %74 = vector.shape_cast %73 : vector<16x16x4xbf16> to vector<256x4xbf16>
    %c0_70 = arith.constant 0 : index
    %c0_71 = arith.constant 0 : index
    %75 = vector.load %arg7[%c0_70, %c0_71] : memref<256x8xf32, #tpu.memory_space<vmem>>, vector<256x8xf32>
    %c6 = arith.constant 6 : index
    %c0_72 = arith.constant 0 : index
    %c0_73 = arith.constant 0 : index
    %76 = vector.load %arg4[%c6, %c0_72, %c0_73] : memref<9x4x8xbf16, #tpu.memory_space<vmem>>, vector<1x4x8xbf16>
    %77 = vector.shape_cast %76 : vector<1x4x8xbf16> to vector<4x8xbf16>
    %cst_74 = arith.constant dense<0.000000e+00> : vector<256x8xf32>
    %78 = tpu.matmul %74, %77, %cst_74 {dimension_numbers = #tpu.dot_dimension_numbers<[1], [0], [0], [1], [0, 0, 1, 1], [], []>} : vector<256x4xbf16>, vector<4x8xbf16>, vector<256x8xf32> -> vector<256x8xf32>
    %79 = arith.addf %75, %78 : vector<256x8xf32>
    %c0_75 = arith.constant 0 : index
    %c0_76 = arith.constant 0 : index
    %80 = vector.load %arg7[%c0_75, %c0_76] : memref<256x8xf32, #tpu.memory_space<vmem>>, vector<256x8xf32>
    tpu.vector_store %arg7[%c0_75, %c0_76], %79 {strides = array<i32>} : memref<256x8xf32, #tpu.memory_space<vmem>>, vector<256x8xf32>,
    %c2_i32_77 = arith.constant 2 : i32
    %81 = arith.addi %1, %c2_i32_77 : i32
    %c0_78 = arith.constant 0 : index
    %82 = arith.index_cast %81 : i32 to index
    %c1_79 = arith.constant 1 : index
    %c0_80 = arith.constant 0 : index
    %83 = vector.load %arg3[%c0_78, %82, %c1_79, %c0_80] : memref<1x18x18x4xbf16, #tpu.memory_space<vmem>>, vector<1x16x16x4xbf16>
    %84 = vector.shape_cast %83 : vector<1x16x16x4xbf16> to vector<16x16x4xbf16>
    %85 = vector.shape_cast %84 : vector<16x16x4xbf16> to vector<256x4xbf16>
    %c0_81 = arith.constant 0 : index
    %c0_82 = arith.constant 0 : index
    %86 = vector.load %arg7[%c0_81, %c0_82] : memref<256x8xf32, #tpu.memory_space<vmem>>, vector<256x8xf32>
    %c7 = arith.constant 7 : index
    %c0_83 = arith.constant 0 : index
    %c0_84 = arith.constant 0 : index
    %87 = vector.load %arg4[%c7, %c0_83, %c0_84] : memref<9x4x8xbf16, #tpu.memory_space<vmem>>, vector<1x4x8xbf16>
    %88 = vector.shape_cast %87 : vector<1x4x8xbf16> to vector<4x8xbf16>
    %cst_85 = arith.constant dense<0.000000e+00> : vector<256x8xf32>
    %89 = tpu.matmul %85, %88, %cst_85 {dimension_numbers = #tpu.dot_dimension_numbers<[1], [0], [0], [1], [0, 0, 1, 1], [], []>} : vector<256x4xbf16>, vector<4x8xbf16>, vector<256x8xf32> -> vector<256x8xf32>
    %90 = arith.addf %86, %89 : vector<256x8xf32>
    %c0_86 = arith.constant 0 : index
    %c0_87 = arith.constant 0 : index
    %91 = vector.load %arg7[%c0_86, %c0_87] : memref<256x8xf32, #tpu.memory_space<vmem>>, vector<256x8xf32>
    tpu.vector_store %arg7[%c0_86, %c0_87], %90 {strides = array<i32>} : memref<256x8xf32, #tpu.memory_space<vmem>>, vector<256x8xf32>,
    %c2_i32_88 = arith.constant 2 : i32
    %92 = arith.addi %1, %c2_i32_88 : i32
    %c0_89 = arith.constant 0 : index
    %93 = arith.index_cast %92 : i32 to index
    %c2_90 = arith.constant 2 : index
    %c0_91 = arith.constant 0 : index
    %94 = vector.load %arg3[%c0_89, %93, %c2_90, %c0_91] : memref<1x18x18x4xbf16, #tpu.memory_space<vmem>>, vector<1x16x16x4xbf16>
    %95 = vector.shape_cast %94 : vector<1x16x16x4xbf16> to vector<16x16x4xbf16>
    %96 = vector.shape_cast %95 : vector<16x16x4xbf16> to vector<256x4xbf16>
    %c0_92 = arith.constant 0 : index
    %c0_93 = arith.constant 0 : index
    %97 = vector.load %arg7[%c0_92, %c0_93] : memref<256x8xf32, #tpu.memory_space<vmem>>, vector<256x8xf32>
    %c8 = arith.constant 8 : index
    %c0_94 = arith.constant 0 : index
    %c0_95 = arith.constant 0 : index
    %98 = vector.load %arg4[%c8, %c0_94, %c0_95] : memref<9x4x8xbf16, #tpu.memory_space<vmem>>, vector<1x4x8xbf16>
    %99 = vector.shape_cast %98 : vector<1x4x8xbf16> to vector<4x8xbf16>
    %cst_96 = arith.constant dense<0.000000e+00> : vector<256x8xf32>
    %100 = tpu.matmul %96, %99, %cst_96 {dimension_numbers = #tpu.dot_dimension_numbers<[1], [0], [0], [1], [0, 0, 1, 1], [], []>} : vector<256x4xbf16>, vector<4x8xbf16>, vector<256x8xf32> -> vector<256x8xf32>
    %101 = arith.addf %97, %100 : vector<256x8xf32>
    %c0_97 = arith.constant 0 : index
    %c0_98 = arith.constant 0 : index
    %102 = vector.load %arg7[%c0_97, %c0_98] : memref<256x8xf32, #tpu.memory_space<vmem>>, vector<256x8xf32>
    tpu.vector_store %arg7[%c0_97, %c0_98], %101 {strides = array<i32>} : memref<256x8xf32, #tpu.memory_space<vmem>>, vector<256x8xf32>,
    %c0_99 = arith.constant 0 : index
    %c0_100 = arith.constant 0 : index
    %103 = vector.load %arg7[%c0_99, %c0_100] : memref<256x8xf32, #tpu.memory_space<vmem>>, vector<256x8xf32>
    %c0_101 = arith.constant 0 : index
    %c0_102 = arith.constant 0 : index
    %104 = vector.load %arg5[%c0_101, %c0_102] : memref<1x8xf32, #tpu.memory_space<vmem>>, vector<1x8xf32>
    %105 = vector.broadcast %104 : vector<1x8xf32> to vector<256x8xf32>
    %106 = arith.addf %103, %105 : vector<256x8xf32>
    %cst_103 = arith.constant 2.000000e+01 : f32
    %107 = vector.broadcast %cst_103 : f32 to vector<256x8xf32>
    %108 = arith.minimumf %106, %107 : vector<256x8xf32>
    %109 = math.exp %108 : vector<256x8xf32>
    %cst_104 = arith.constant 2.000000e+00 : f32
    %110 = vector.broadcast %cst_104 : f32 to vector<256x8xf32>
    %111 = arith.addf %109, %110 : vector<256x8xf32>
    %112 = arith.mulf %109, %111 : vector<256x8xf32>
    %cst_105 = arith.constant 2.000000e+00 : f32
    %113 = vector.broadcast %cst_105 : f32 to vector<256x8xf32>
    %114 = arith.addf %112, %113 : vector<256x8xf32>
    %115 = tpu.reciprocal %114 {approx = true} : vector<256x8xf32> -> vector<256x8xf32>
    %116 = arith.mulf %112, %115 : vector<256x8xf32>
    %117 = arith.mulf %106, %116 : vector<256x8xf32>
    %c0_106 = arith.constant 0 : index
    %c0_107 = arith.constant 0 : index
    %c0_108 = arith.constant 0 : index
    %118 = vector.load %arg6[%c0_106, %c0_107, %c0_108] : memref<1x256x8xf32, #tpu.memory_space<vmem>>, vector<1x256x8xf32>
    %119 = vector.shape_cast %118 : vector<1x256x8xf32> to vector<256x8xf32>
    %120 = vector.shape_cast %117 : vector<256x8xf32> to vector<1x256x8xf32>
    tpu.vector_store %arg6[%c0_106, %c0_107, %c0_108], %120 {strides = array<i32>} : memref<1x256x8xf32, #tpu.memory_space<vmem>>, vector<1x256x8xf32>,
    return
  }
  func.func @transform_0(%arg0: i32, %arg1: i32, %arg2: i32) -> (i32, i32, i32, i32) {
    %c0_i32 = arith.constant 0 : i32
    %c0_i32_0 = arith.constant 0 : i32
    %c0_i32_1 = arith.constant 0 : i32
    %c0_i32_2 = arith.constant 0 : i32
    return %arg0, %c0_i32, %c0_i32_0, %c0_i32_1 : i32, i32, i32, i32
  }
  func.func @transform_1(%arg0: i32, %arg1: i32, %arg2: i32) -> (i32, i32, i32) {
    %c0_i32 = arith.constant 0 : i32
    %c0_i32_0 = arith.constant 0 : i32
    %c0_i32_1 = arith.constant 0 : i32
    return %c0_i32, %c0_i32_0, %arg1 : i32, i32, i32
  }
  func.func @transform_2(%arg0: i32, %arg1: i32, %arg2: i32) -> (i32, i32) {
    %c0_i32 = arith.constant 0 : i32
    %c0_i32_0 = arith.constant 0 : i32
    return %c0_i32, %arg1 : i32, i32
  }
  func.func @transform_3(%arg0: i32, %arg1: i32, %arg2: i32) -> (i32, i32, i32) {
    %c0_i32 = arith.constant 0 : i32
    return %arg0, %arg2, %arg1 : i32, i32, i32
  }
}

</mosaic_0001>

<llo_original>
// kernel: tpu_custom_call.1
$region0: #{tpu_custom_call.1}
  #allocation0 [shape = 'u32[]', space=smem, size = 0x4, offset = 0x4, fixed_abs, tag = 'smem constant byte address 0x4 - core index']
  #allocation1 [shape = 'u32[72,128]{1,0:T(1,128)}', space=vmem, size = 0x9000, scoped, tag = 'internal scratch']
  #allocation2 [shape = 'f32[256,8]{1,0:T(8,128)}', space=vmem, size = 0x20000, scoped, tag = 'scratch operand']
  %s0 = inlined_call_operand.vmem [shape: bf16[2,18,18,4], index: 0, kind: input, shape index: {}]
  %s1 = inlined_call_operand.vmem [shape: bf16[9,4,8], index: 1, kind: input, shape index: {}]
  %s2 = inlined_call_operand.vmem [shape: f32[1,8], index: 2, kind: input, shape index: {}]
  %s3 = inlined_call_operand.vmem [shape: f32[2,256,8], index: 3, kind: output, shape index: {}]
  %s4 = sld [smem:[#allocation0]]
  $region45: #{tpu_custom_call.1} parent=0
    _
  %s6 = ssub.s32 1, %s4
  %s7 = scalar_select 0, %s6, %s4
  loop: start=0, step=1, limit=4
  $region2: #{tpu_custom_call.1} parent=0 // loop_pre_header
    _
  $region3: #{tpu_custom_call.1} parent=0 // loop_header
    %s9 = sphi 0, %s13
    %p10 = scmp.ge.s32.totalorder %s9, 4
    %s16 = sphi 0, %s35
    %s17 = sphi 0, %s31
    %s18 = sphi 0, %s27
    %s19 = sphi 0, %s16
    %s20 = sphi 0, %s17
    %s21 = sphi 0, %s18
    %s22 = sphi 0, %s19
    %s23 = sphi 0, %s20
    %s24 = sphi 0, %s21
    %s38 = sphi 0, %s40
    %s41 = sphi 0, %s38
    %s42 = sphi 0, %s41
    %s58 = sphi 0, %s42
    %s64 = sphi 0, %s66
    %s67 = sphi 0, %s64
    %s68 = sphi 0, %s67
    %s84 = sphi 0, %s68
    %s90 = sphi 0, %s92
    %s93 = sphi 0, %s90
    %s94 = sphi 0, %s93
    %s110 = sphi 0, %s94
    %s120 = sphi 0, %s122
    %s123 = sphi 0, %s120
    %s124 = sphi 0, %s123
    %s140 = sphi 0, %s124
  $region4: #{tpu_custom_call.1} parent=0 // loop_header_branch
    %12 = sbr.rel (%p10) target = $region8
  $region5: #{tpu_custom_call.1} parent=0 // loop_body
    %s14 = ssub.s32 %s9, 1
    %s15 = ssub.s32 %s9, 2
    %s25 = sadd.s32 1, %s18
    %p26 = scmp.ge.s32.totalorder %s25, 1
    %s27 = scalar_select %p26, 0, %s25
    %s28 = sadd.s32 1, %s17
    %s29 = scalar_select %p26, %s28, %s17
    %p30 = scmp.ge.s32.totalorder %s29, 1
    %s31 = scalar_select %p30, 0, %s29
    %s32 = sadd.s32 1, %s16
    %s33 = scalar_select %p30, %s32, %s16
    %p34 = scmp.ge.s32.totalorder %s33, 2
    %s35 = scalar_select %p34, 0, %s33
    %s36 = ssub.s32 %s16, %s35
    %p37 = scmp.eq.s32.totalorder %s36, 0
    %s39 = sadd.s32 %s38, 1
    %s40 = scalar_select %p37, %s38, %s39
    %p43 = pneg %p37
    %p44 = scmp.eq.s32.totalorder %s9, 1
    %p45 = por %p43, %p44
    %p46 = scmp.ne.s32.totalorder %s38, %s41
    %p47 = scmp.eq.s32.totalorder %s9, 0
    %p48 = por %p46, %p47
    %p49 = scmp.ne.s32.totalorder %s38, %s41
    %p50 = scmp.eq.s32.totalorder %s14, 1
    %p51 = por %p49, %p50
    %p52 = scmp.ne.s32.totalorder %s41, %s42
    %p53 = scmp.eq.s32.totalorder %s14, 0
    %p54 = por %p52, %p53
    %p55 = scmp.ne.s32.totalorder %s41, %s42
    %p56 = scmp.eq.s32.totalorder %s15, 1
    %p57 = por %p55, %p56
    %p59 = scmp.ne.s32.totalorder %s42, %s58
    %p60 = scmp.eq.s32.totalorder %s15, 0
    %p61 = por %p59, %p60
    %s62 = ssub.s32 %s17, %s31
    %p63 = scmp.eq.s32.totalorder %s62, 0
    %s65 = sadd.s32 %s64, 1
    %s66 = scalar_select %p63, %s64, %s65
    %p69 = pneg %p63
    %p70 = scmp.eq.s32.totalorder %s9, 1
    %p71 = por %p69, %p70
    %p72 = scmp.ne.s32.totalorder %s64, %s67
    %p73 = scmp.eq.s32.totalorder %s9, 0
    %p74 = por %p72, %p73
    %p75 = scmp.ne.s32.totalorder %s64, %s67
    %p76 = scmp.eq.s32.totalorder %s14, 1
    %p77 = por %p75, %p76
    %p78 = scmp.ne.s32.totalorder %s67, %s68
    %p79 = scmp.eq.s32.totalorder %s14, 0
    %p80 = por %p78, %p79
    %p81 = scmp.ne.s32.totalorder %s67, %s68
    %p82 = scmp.eq.s32.totalorder %s15, 1
    %p83 = por %p81, %p82
    %p85 = scmp.ne.s32.totalorder %s68, %s84
    %p86 = scmp.eq.s32.totalorder %s15, 0
    %p87 = por %p85, %p86
    %s88 = ssub.s32 %s17, %s31
    %p89 = scmp.eq.s32.totalorder %s88, 0
    %s91 = sadd.s32 %s90, 1
    %s92 = scalar_select %p89, %s90, %s91
    %p95 = pneg %p89
    %p96 = scmp.eq.s32.totalorder %s9, 1
    %p97 = por %p95, %p96
    %p98 = scmp.ne.s32.totalorder %s90, %s93
    %p99 = scmp.eq.s32.totalorder %s9, 0
    %p100 = por %p98, %p99
    %p101 = scmp.ne.s32.totalorder %s90, %s93
    %p102 = scmp.eq.s32.totalorder %s14, 1
    %p103 = por %p101, %p102
    %p104 = scmp.ne.s32.totalorder %s93, %s94
    %p105 = scmp.eq.s32.totalorder %s14, 0
    %p106 = por %p104, %p105
    %p107 = scmp.ne.s32.totalorder %s93, %s94
    %p108 = scmp.eq.s32.totalorder %s15, 1
    %p109 = por %p107, %p108
    %p111 = scmp.ne.s32.totalorder %s94, %s110
    %p112 = scmp.eq.s32.totalorder %s15, 0
    %p113 = por %p111, %p112
    %s114 = ssub.s32 %s16, %s35
    %s115 = ssub.s32 %s18, %s27
    %s116 = sor.u32 %s114, %s115
    %s117 = ssub.s32 %s17, %s31
    %s118 = sor.u32 %s116, %s117
    %p119 = scmp.eq.s32.totalorder %s118, 0
    %s121 = sadd.s32 %s120, 1
    %s122 = scalar_select %p119, %s120, %s121
    %p125 = pneg %p119
    %p126 = scmp.eq.s32.totalorder %s9, 1
    %p127 = por %p125, %p126
    %p128 = scmp.ne.s32.totalorder %s120, %s123
    %p129 = scmp.eq.s32.totalorder %s9, 0
    %p130 = por %p128, %p129
    %p131 = scmp.ne.s32.totalorder %s120, %s123
    %p132 = scmp.eq.s32.totalorder %s14, 1
    %p133 = por %p131, %p132
    %p134 = scmp.ne.s32.totalorder %s123, %s124
    %p135 = scmp.eq.s32.totalorder %s14, 0
    %p136 = por %p134, %p135
    %p137 = scmp.ne.s32.totalorder %s123, %s124
    %p138 = scmp.eq.s32.totalorder %s15, 1
    %p139 = por %p137, %p138
    %p141 = scmp.ne.s32.totalorder %s124, %s140
    %p142 = scmp.eq.s32.totalorder %s15, 0
    %p143 = por %p141, %p142
    %p144 = scmp.le.s32.totalorder 1, %s9
    %p145 = scmp.lt.s32.totalorder %s9, 3
    %p146 = pnand %p144, %p145
    %p147 = pneg %p146
    // Predicated region
    $region9: #{tpu_custom_call.1} parent=5 // pred_check
      _
    $region10: #{tpu_custom_call.1} parent=5 // pred_check_branch
      %149 = sbr.rel (%p146) target = $region12
    $region11: #{tpu_custom_call.1} parent=5 // pred_region
      %s150 = ssub.s32 %s9, 1
      // Predicated region
      $region13: #{tpu_custom_call.1} parent=11 // pred_check
        %p151 = pneg %p80
      $region14: #{tpu_custom_call.1} parent=11 // pred_check_branch
        %153 = sbr.rel (%p151) target = $region16
      $region15: #{tpu_custom_call.1} parent=11 // pred_region
        %p154 = scmp.lt.s32.totalorder %s20, 0
        %s155 = scalar_select %p154, %s20, 0
        %s156 = smul.addr %s155, 2
        %s157 = scalar_lea.vmem %s1, %s156
      $region16: #{tpu_custom_call.1} parent=11 // pred_fallthru
        _
      // Predicated region
      $region17: #{tpu_custom_call.1} parent=11 // pred_check
        %p158 = pneg %p106
      $region18: #{tpu_custom_call.1} parent=11 // pred_check_branch
        %160 = sbr.rel (%p158) target = $region20
      $region19: #{tpu_custom_call.1} parent=11 // pred_region
        %p161 = scmp.lt.s32.totalorder %s20, 0
        %s162 = scalar_select %p161, %s20, 0
        %s163 = scalar_lea.vmem %s2, %s162
      $region20: #{tpu_custom_call.1} parent=11 // pred_fallthru
        _
    $region12: #{tpu_custom_call.1} parent=5 // pred_fallthru
      _
    %p164 = scmp.lt.s32.totalorder %s9, 2
    // Predicated region
    $region21: #{tpu_custom_call.1} parent=5 // pred_check
      %p165 = pneg %p164
    $region22: #{tpu_custom_call.1} parent=5 // pred_check_branch
      %167 = sbr.rel (%p165) target = $region24
    $region23: #{tpu_custom_call.1} parent=5 // pred_region
      // Predicated region
      $region25: #{tpu_custom_call.1} parent=23 // pred_check
        %p168 = pneg %p48
      $region26: #{tpu_custom_call.1} parent=23 // pred_check_branch
        %170 = sbr.rel (%p168) target = $region28
      $region27: #{tpu_custom_call.1} parent=23 // pred_region
        %p171 = scmp.lt.s32.totalorder %s16, 1
        %s172 = scalar_select %p171, %s16, 1
        %s173 = smul.addr %s172, 54
        %s174 = smul.addr %s173, 4
        %s175 = scalar_lea.vmem %s0, %s174
      $region28: #{tpu_custom_call.1} parent=23 // pred_fallthru
        _
    $region24: #{tpu_custom_call.1} parent=5 // pred_fallthru
      _
    %p176 = scmp.le.s32.totalorder 1, %s9
    %p177 = scmp.lt.s32.totalorder %s9, 3
    %p178 = pnand %p176, %p177
    %p179 = pneg %p178
    // Predicated region
    $region29: #{tpu_custom_call.1} parent=5 // pred_check
      _
    $region30: #{tpu_custom_call.1} parent=5 // pred_check_branch
      %181 = sbr.rel (%p178) target = $region32
    $region31: #{tpu_custom_call.1} parent=5 // pred_region
      %s182 = ssub.s32 %s9, 1
      %p183 = scmp.lt.s32.totalorder %s19, 1
      %s184 = scalar_select %p183, %s19, 1
      %s185 = smul.addr %s184, 54
      %s186 = smul.addr %s185, 4
      %s187 = scalar_lea.vmem %s0, %s186
      %p188 = pneg %p54
      %p189 = pneg %p51
      %p190 = scmp.lt.s32.totalorder %s20, 0
      %s191 = scalar_select %p190, %s20, 0
      %s192 = smul.addr %s191, 2
      %s193 = scalar_lea.vmem %s1, %s192
      %p194 = pneg %p80
      %p195 = pneg %p77
      %p196 = scmp.lt.s32.totalorder %s20, 0
      %s197 = scalar_select %p196, %s20, 0
      %s198 = scalar_lea.vmem %s2, %s197
      %p199 = pneg %p106
      %p200 = pneg %p103
      %p201 = pneg %p136
      %p202 = pneg %p133
      %s203 = smul.u32 32, %s21
      %p204 = scmp.lt.s32.totalorder %s19, 1
      %s205 = scalar_select %p204, %s19, 1
      %p206 = scmp.lt.s32.totalorder %s203, 31
      %s207 = scalar_select %p206, %s203, 31
      %p208 = scmp.lt.s32.totalorder %s20, 0
      %s209 = scalar_select %p208, %s20, 0
      %s210 = sadd.s32 %s209, %s207
      %s211 = smul.addr %s205, 32
      %s212 = sadd.s32 %s210, %s211
      %s213 = smul.addr %s212, 8
      %s214 = scalar_lea.vmem %s3, %s213
      %p215 = scmp.lt.s32.totalorder %s19, 1
      %s216 = scalar_select %p215, %s19, 1
      %s217 = smul.addr %s216, 54
      %s218 = smul.addr %s217, 4
      %s219 = scalar_lea.vmem %s0, %s218
      %p220 = scmp.lt.s32.totalorder %s20, 0
      %s221 = scalar_select %p220, %s20, 0
      %s222 = smul.addr %s221, 2
      %s223 = scalar_lea.vmem %s1, %s222
      %p224 = scmp.lt.s32.totalorder %s20, 0
      %s225 = scalar_select %p224, %s20, 0
      %s226 = scalar_lea.vmem %s2, %s225
      %s227 = smul.u32 32, %s21
      %p228 = scmp.lt.s32.totalorder %s19, 1
      %s229 = scalar_select %p228, %s19, 1
      %p230 = scmp.lt.s32.totalorder %s227, 31
      %s231 = scalar_select %p230, %s227, 31
      %p232 = scmp.lt.s32.totalorder %s20, 0
      %s233 = scalar_select %p232, %s20, 0
      %s234 = sadd.s32 %s233, %s231
      %s235 = smul.addr %s229, 32
      %s236 = sadd.s32 %s234, %s235
      %s237 = smul.addr %s236, 8
      %s238 = scalar_lea.vmem %s3, %s237
      %s239 = smul.u32 32, %s21
      %s241 = smul.u32 %s21, 16
      %vm242 = vcmask 64512
      %243 = vst.msk [vmem:[#allocation2] sm:$0xff] %vm242, 0.0
      %244 = vst.msk [vmem:[#allocation2 + $0x8] sm:$0xff] %vm242, 0.0
      %245 = vst.msk [vmem:[#allocation2 + $0x10] sm:$0xff] %vm242, 0.0
      %246 = vst.msk [vmem:[#allocation2 + $0x18] sm:$0xff] %vm242, 0.0
      %247 = vst.msk [vmem:[#allocation2 + $0x20] sm:$0xff] %vm242, 0.0
      %248 = vst.msk [vmem:[#allocation2 + $0x28] sm:$0xff] %vm242, 0.0
      %249 = vst.msk [vmem:[#allocation2 + $0x30] sm:$0xff] %vm242, 0.0
      %250 = vst.msk [vmem:[#allocation2 + $0x38] sm:$0xff] %vm242, 0.0
      %251 = vst.msk [vmem:[#allocation2 + $0x40] sm:$0xff] %vm242, 0.0
      %252 = vst.msk [vmem:[#allocation2 + $0x48] sm:$0xff] %vm242, 0.0
      %253 = vst.msk [vmem:[#allocation2 + $0x50] sm:$0xff] %vm242, 0.0
      %254 = vst.msk [vmem:[#allocation2 + $0x58] sm:$0xff] %vm242, 0.0
      %255 = vst.msk [vmem:[#allocation2 + $0x60] sm:$0xff] %vm242, 0.0
      %256 = vst.msk [vmem:[#allocation2 + $0x68] sm:$0xff] %vm242, 0.0
      %257 = vst.msk [vmem:[#allocation2 + $0x70] sm:$0xff] %vm242, 0.0
      %258 = vst.msk [vmem:[#allocation2 + $0x78] sm:$0xff] %vm242, 0.0
      %259 = vst.msk [vmem:[#allocation2 + $0x80] sm:$0xff] %vm242, 0.0
      %260 = vst.msk [vmem:[#allocation2 + $0x88] sm:$0xff] %vm242, 0.0
      %261 = vst.msk [vmem:[#allocation2 + $0x90] sm:$0xff] %vm242, 0.0
      %262 = vst.msk [vmem:[#allocation2 + $0x98] sm:$0xff] %vm242, 0.0
      %263 = vst.msk [vmem:[#allocation2 + $0xa0] sm:$0xff] %vm242, 0.0
      %264 = vst.msk [vmem:[#allocation2 + $0xa8] sm:$0xff] %vm242, 0.0
      %265 = vst.msk [vmem:[#allocation2 + $0xb0] sm:$0xff] %vm242, 0.0
      %266 = vst.msk [vmem:[#allocation2 + $0xb8] sm:$0xff] %vm242, 0.0
      %267 = vst.msk [vmem:[#allocation2 + $0xc0] sm:$0xff] %vm242, 0.0
      %268 = vst.msk [vmem:[#allocation2 + $0xc8] sm:$0xff] %vm242, 0.0
      %269 = vst.msk [vmem:[#allocation2 + $0xd0] sm:$0xff] %vm242, 0.0
      %270 = vst.msk [vmem:[#allocation2 + $0xd8] sm:$0xff] %vm242, 0.0
      %271 = vst.msk [vmem:[#allocation2 + $0xe0] sm:$0xff] %vm242, 0.0
      %272 = vst.msk [vmem:[#allocation2 + $0xe8] sm:$0xff] %vm242, 0.0
      %273 = vst.msk [vmem:[#allocation2 + $0xf0] sm:$0xff] %vm242, 0.0
      %274 = vst.msk [vmem:[#allocation2 + $0xf8] sm:$0xff] %vm242, 0.0
      %s275 = smul.u32 %s241, 3
      %s276 = smul.addr %s275, 4
      %s277 = scalar_lea.vmem %s219, %s276
      %v278 = vld [vmem:[%s277] sm:$0xf]
      %v279 = vld [vmem:[%s277 + $0x4] sm:$0xf]
      %v280 = vld [vmem:[%s277 + $0xc] sm:$0xf]
      %v281 = vld [vmem:[%s277 + $0x10] sm:$0xf]
      %v282 = vld [vmem:[%s277 + $0x18] sm:$0xf]
      %v283 = vld [vmem:[%s277 + $0x1c] sm:$0xf]
      %v284 = vld [vmem:[%s277 + $0x24] sm:$0xf]
      %v285 = vld [vmem:[%s277 + $0x28] sm:$0xf]
      %v286 = vld [vmem:[%s277 + $0x30] sm:$0xf]
      %v287 = vld [vmem:[%s277 + $0x34] sm:$0xf]
      %v288 = vld [vmem:[%s277 + $0x3c] sm:$0xf]
      %v289 = vld [vmem:[%s277 + $0x40] sm:$0xf]
      %v290 = vld [vmem:[%s277 + $0x48] sm:$0xf]
      %v291 = vld [vmem:[%s277 + $0x4c] sm:$0xf]
      %v292 = vld [vmem:[%s277 + $0x54] sm:$0xf]
      %v293 = vld [vmem:[%s277 + $0x58] sm:$0xf]
      %v294 = vld [vmem:[%s277 + $0x60] sm:$0xf]
      %v295 = vld [vmem:[%s277 + $0x64] sm:$0xf]
      %v296 = vld [vmem:[%s277 + $0x6c] sm:$0xf]
      %v297 = vld [vmem:[%s277 + $0x70] sm:$0xf]
      %v298 = vld [vmem:[%s277 + $0x78] sm:$0xf]
      %v299 = vld [vmem:[%s277 + $0x7c] sm:$0xf]
      %v300 = vld [vmem:[%s277 + $0x84] sm:$0xf]
      %v301 = vld [vmem:[%s277 + $0x88] sm:$0xf]
      %v302 = vld [vmem:[%s277 + $0x90] sm:$0xf]
      %v303 = vld [vmem:[%s277 + $0x94] sm:$0xf]
      %v304 = vld [vmem:[%s277 + $0x9c] sm:$0xf]
      %v305 = vld [vmem:[%s277 + $0xa0] sm:$0xf]
      %v306 = vld [vmem:[%s277 + $0xa8] sm:$0xf]
      %v307 = vld [vmem:[%s277 + $0xac] sm:$0xf]
      %v308 = vld [vmem:[%s277 + $0xb4] sm:$0xf]
      %v309 = vld [vmem:[%s277 + $0xb8] sm:$0xf]
      %v310 = vld [vmem:[#allocation2] sm:$0xff]
      %v311 = vld [vmem:[#allocation2 + $0x8] sm:$0xff]
      %v312 = vld [vmem:[#allocation2 + $0x10] sm:$0xff]
      %v313 = vld [vmem:[#allocation2 + $0x18] sm:$0xff]
      %v314 = vld [vmem:[#allocation2 + $0x20] sm:$0xff]
      %v315 = vld [vmem:[#allocation2 + $0x28] sm:$0xff]
      %v316 = vld [vmem:[#allocation2 + $0x30] sm:$0xff]
      %v317 = vld [vmem:[#allocation2 + $0x38] sm:$0xff]
      %v318 = vld [vmem:[#allocation2 + $0x40] sm:$0xff]
      %v319 = vld [vmem:[#allocation2 + $0x48] sm:$0xff]
      %v320 = vld [vmem:[#allocation2 + $0x50] sm:$0xff]
      %v321 = vld [vmem:[#allocation2 + $0x58] sm:$0xff]
      %v322 = vld [vmem:[#allocation2 + $0x60] sm:$0xff]
      %v323 = vld [vmem:[#allocation2 + $0x68] sm:$0xff]
      %v324 = vld [vmem:[#allocation2 + $0x70] sm:$0xff]
      %v325 = vld [vmem:[#allocation2 + $0x78] sm:$0xff]
      %v326 = vld [vmem:[#allocation2 + $0x80] sm:$0xff]
      %v327 = vld [vmem:[#allocation2 + $0x88] sm:$0xff]
      %v328 = vld [vmem:[#allocation2 + $0x90] sm:$0xff]
      %v329 = vld [vmem:[#allocation2 + $0x98] sm:$0xff]
      %v330 = vld [vmem:[#allocation2 + $0xa0] sm:$0xff]
      %v331 = vld [vmem:[#allocation2 + $0xa8] sm:$0xff]
      %v332 = vld [vmem:[#allocation2 + $0xb0] sm:$0xff]
      %v333 = vld [vmem:[#allocation2 + $0xb8] sm:$0xff]
      %v334 = vld [vmem:[#allocation2 + $0xc0] sm:$0xff]
      %v335 = vld [vmem:[#allocation2 + $0xc8] sm:$0xff]
      %v336 = vld [vmem:[#allocation2 + $0xd0] sm:$0xff]
      %v337 = vld [vmem:[#allocation2 + $0xd8] sm:$0xff]
      %v338 = vld [vmem:[#allocation2 + $0xe0] sm:$0xff]
      %v339 = vld [vmem:[#allocation2 + $0xe8] sm:$0xff]
      %v340 = vld [vmem:[#allocation2 + $0xf0] sm:$0xff]
      %v341 = vld [vmem:[#allocation2 + $0xf8] sm:$0xff]
      %v342 = vld [vmem:[%s223] sm:$0x3]
      %v375 = vunpack.c.l.b16 %v278
      %v376 = vunpack.c.l.b16 %v279
      %v377 = vunpack.c.l.b16 %v280
      %v378 = vunpack.c.l.b16 %v281
      %v379 = vunpack.c.l.b16 %v282
      %v380 = vunpack.c.l.b16 %v283
      %v381 = vunpack.c.l.b16 %v284
      %v382 = vunpack.c.l.b16 %v285
      %v383 = vunpack.c.l.b16 %v286
      %v384 = vunpack.c.l.b16 %v287
      %v385 = vunpack.c.l.b16 %v288
      %v386 = vunpack.c.l.b16 %v289
      %v387 = vunpack.c.l.b16 %v290
      %v388 = vunpack.c.l.b16 %v291
      %v389 = vunpack.c.l.b16 %v292
      %v390 = vunpack.c.l.b16 %v293
      %v391 = vunpack.c.l.b16 %v294
      %v392 = vunpack.c.l.b16 %v295
      %v393 = vunpack.c.l.b16 %v296
      %v394 = vunpack.c.l.b16 %v297
      %v395 = vunpack.c.l.b16 %v298
      %v396 = vunpack.c.l.b16 %v299
      %v397 = vunpack.c.l.b16 %v300
      %v398 = vunpack.c.l.b16 %v301
      %v399 = vunpack.c.l.b16 %v302
      %v400 = vunpack.c.l.b16 %v303
      %v401 = vunpack.c.l.b16 %v304
      %v402 = vunpack.c.l.b16 %v305
      %v403 = vunpack.c.l.b16 %v306
      %v404 = vunpack.c.l.b16 %v307
      %v405 = vunpack.c.l.b16 %v308
      %v406 = vunpack.c.l.b16 %v309
      %v407 = vpack.c.b16 %v376, %v375
      %v408 = vpack.c.b16 %v378, %v377
      %v409 = vpack.c.b16 %v380, %v379
      %v410 = vpack.c.b16 %v382, %v381
      %v411 = vpack.c.b16 %v384, %v383
      %v412 = vpack.c.b16 %v386, %v385
      %v413 = vpack.c.b16 %v388, %v387
      %v414 = vpack.c.b16 %v390, %v389
      %v415 = vpack.c.b16 %v392, %v391
      %v416 = vpack.c.b16 %v394, %v393
      %v417 = vpack.c.b16 %v396, %v395
      %v418 = vpack.c.b16 %v398, %v397
      %v419 = vpack.c.b16 %v400, %v399
      %v420 = vpack.c.b16 %v402, %v401
      %v421 = vpack.c.b16 %v404, %v403
      %v422 = vpack.c.b16 %v406, %v405
      %vm423 = vcmask 31744
      %v425 = vsel %vm423, %v407, 0
      %v428 = vsel %vm423, %v408, 0
      %v431 = vsel %vm423, %v409, 0
      %v434 = vsel %vm423, %v410, 0
      %v437 = vsel %vm423, %v411, 0
      %v440 = vsel %vm423, %v412, 0
      %v443 = vsel %vm423, %v413, 0
      %v446 = vsel %vm423, %v414, 0
      %v449 = vsel %vm423, %v415, 0
      %v452 = vsel %vm423, %v416, 0
      %v455 = vsel %vm423, %v417, 0
      %v458 = vsel %vm423, %v418, 0
      %v461 = vsel %vm423, %v419, 0
      %v464 = vsel %vm423, %v420, 0
      %v467 = vsel %vm423, %v421, 0
      %v470 = vsel %vm423, %v422, 0
      %vm472 = vcmask 1041408
      %v474 = vsel %vm472, %v342, 0
      %476 = vmatpush.bf16.msra.mxu0 0
      %477 = vmatpush.bf16.msra.mxu0 0
      %478 = vmatpush.bf16.msra.mxu0 0
      %479 = vmatpush.bf16.msra.mxu0 0
      %480 = vmatpush.bf16.msra.mxu0 0
      %481 = vmatpush.bf16.msra.mxu0 0
      %482 = vmatpush.bf16.msra.mxu0 0
      %483 = vmatpush.bf16.msra.mxu0 %v474
      %484 = vmatmul.bf16.gmra.mxu0 %v425
      %v485 = vpop.f32.mrf.mxu0
      %v486 = vadd.f32 0.0, %v485
      %v487 = vpop.f32.mrf.mxu0
      %v488 = vadd.f32 0.0, %v487
      %489 = vmatmul.bf16.gmra.mxu0 %v428
      %v490 = vpop.f32.mrf.mxu0
      %v491 = vadd.f32 0.0, %v490
      %v492 = vpop.f32.mrf.mxu0
      %v493 = vadd.f32 0.0, %v492
      %494 = vmatmul.bf16.gmra.mxu0 %v431
      %v495 = vpop.f32.mrf.mxu0
      %v496 = vadd.f32 0.0, %v495
      %v497 = vpop.f32.mrf.mxu0
      %v498 = vadd.f32 0.0, %v497
      %499 = vmatmul.bf16.gmra.mxu0 %v434
      %v500 = vpop.f32.mrf.mxu0
      %v501 = vadd.f32 0.0, %v500
      %v502 = vpop.f32.mrf.mxu0
      %v503 = vadd.f32 0.0, %v502
      %504 = vmatmul.bf16.gmra.mxu0 %v437
      %v505 = vpop.f32.mrf.mxu0
      %v506 = vadd.f32 0.0, %v505
      %v507 = vpop.f32.mrf.mxu0
      %v508 = vadd.f32 0.0, %v507
      %509 = vmatmul.bf16.gmra.mxu0 %v440
      %v510 = vpop.f32.mrf.mxu0
      %v511 = vadd.f32 0.0, %v510
      %v512 = vpop.f32.mrf.mxu0
      %v513 = vadd.f32 0.0, %v512
      %514 = vmatmul.bf16.gmra.mxu0 %v443
      %v515 = vpop.f32.mrf.mxu0
      %v516 = vadd.f32 0.0, %v515
      %v517 = vpop.f32.mrf.mxu0
      %v518 = vadd.f32 0.0, %v517
      %519 = vmatmul.bf16.gmra.mxu0 %v446
      %v520 = vpop.f32.mrf.mxu0
      %v521 = vadd.f32 0.0, %v520
      %v522 = vpop.f32.mrf.mxu0
      %v523 = vadd.f32 0.0, %v522
      %524 = vmatmul.bf16.gmra.mxu0 %v449
      %v525 = vpop.f32.mrf.mxu0
      %v526 = vadd.f32 0.0, %v525
      %v527 = vpop.f32.mrf.mxu0
      %v528 = vadd.f32 0.0, %v527
      %529 = vmatmul.bf16.gmra.mxu0 %v452
      %v530 = vpop.f32.mrf.mxu0
      %v531 = vadd.f32 0.0, %v530
      %v532 = vpop.f32.mrf.mxu0
      %v533 = vadd.f32 0.0, %v532
      %534 = vmatmul.bf16.gmra.mxu0 %v455
      %v535 = vpop.f32.mrf.mxu0
      %v536 = vadd.f32 0.0, %v535
      %v537 = vpop.f32.mrf.mxu0
      %v538 = vadd.f32 0.0, %v537
      %539 = vmatmul.bf16.gmra.mxu0 %v458
      %v540 = vpop.f32.mrf.mxu0
      %v541 = vadd.f32 0.0, %v540
      %v542 = vpop.f32.mrf.mxu0
      %v543 = vadd.f32 0.0, %v542
      %544 = vmatmul.bf16.gmra.mxu0 %v461
      %v545 = vpop.f32.mrf.mxu0
      %v546 = vadd.f32 0.0, %v545
      %v547 = vpop.f32.mrf.mxu0
      %v548 = vadd.f32 0.0, %v547
      %549 = vmatmul.bf16.gmra.mxu0 %v464
      %v550 = vpop.f32.mrf.mxu0
      %v551 = vadd.f32 0.0, %v550
      %v552 = vpop.f32.mrf.mxu0
      %v553 = vadd.f32 0.0, %v552
      %554 = vmatmul.bf16.gmra.mxu0 %v467
      %v555 = vpop.f32.mrf.mxu0
      %v556 = vadd.f32 0.0, %v555
      %v557 = vpop.f32.mrf.mxu0
      %v558 = vadd.f32 0.0, %v557
      %559 = vmatmul.bf16.gmra.mxu0 %v470
      %v560 = vpop.f32.mrf.mxu0
      %v561 = vadd.f32 0.0, %v560
      %v562 = vpop.f32.mrf.mxu0
      %v563 = vadd.f32 0.0, %v562
      %564 = vdwg.mxu0
      %v565 = vadd.f32 %v310, %v486
      %v566 = vadd.f32 %v311, %v488
      %v567 = vadd.f32 %v312, %v491
      %v568 = vadd.f32 %v313, %v493
      %v569 = vadd.f32 %v314, %v496
      %v570 = vadd.f32 %v315, %v498
      %v571 = vadd.f32 %v316, %v501
      %v572 = vadd.f32 %v317, %v503
      %v573 = vadd.f32 %v318, %v506
      %v574 = vadd.f32 %v319, %v508
      %v575 = vadd.f32 %v320, %v511
      %v576 = vadd.f32 %v321, %v513
      %v577 = vadd.f32 %v322, %v516
      %v578 = vadd.f32 %v323, %v518
      %v579 = vadd.f32 %v324, %v521
      %v580 = vadd.f32 %v325, %v523
      %v581 = vadd.f32 %v326, %v526
      %v582 = vadd.f32 %v327, %v528
      %v583 = vadd.f32 %v328, %v531
      %v584 = vadd.f32 %v329, %v533
      %v585 = vadd.f32 %v330, %v536
      %v586 = vadd.f32 %v331, %v538
      %v587 = vadd.f32 %v332, %v541
      %v588 = vadd.f32 %v333, %v543
      %v589 = vadd.f32 %v334, %v546
      %v590 = vadd.f32 %v335, %v548
      %v591 = vadd.f32 %v336, %v551
      %v592 = vadd.f32 %v337, %v553
      %v593 = vadd.f32 %v338, %v556
      %v594 = vadd.f32 %v339, %v558
      %v595 = vadd.f32 %v340, %v561
      %v596 = vadd.f32 %v341, %v563
      %597 = vst.msk [vmem:[#allocation2] sm:$0xff] %vm242, %v565
      %598 = vst.msk [vmem:[#allocation2 + $0x8] sm:$0xff] %vm242, %v566
      %599 = vst.msk [vmem:[#allocation2 + $0x10] sm:$0xff] %vm242, %v567
      %600 = vst.msk [vmem:[#allocation2 + $0x18] sm:$0xff] %vm242, %v568
      %601 = vst.msk [vmem:[#allocation2 + $0x20] sm:$0xff] %vm242, %v569
      %602 = vst.msk [vmem:[#allocation2 + $0x28] sm:$0xff] %vm242, %v570
      %603 = vst.msk [vmem:[#allocation2 + $0x30] sm:$0xff] %vm242, %v571
      %604 = vst.msk [vmem:[#allocation2 + $0x38] sm:$0xff] %vm242, %v572
      %605 = vst.msk [vmem:[#allocation2 + $0x40] sm:$0xff] %vm242, %v573
      %606 = vst.msk [vmem:[#allocation2 + $0x48] sm:$0xff] %vm242, %v574
      %607 = vst.msk [vmem:[#allocation2 + $0x50] sm:$0xff] %vm242, %v575
      %608 = vst.msk [vmem:[#allocation2 + $0x58] sm:$0xff] %vm242, %v576
      %609 = vst.msk [vmem:[#allocation2 + $0x60] sm:$0xff] %vm242, %v577
      %610 = vst.msk [vmem:[#allocation2 + $0x68] sm:$0xff] %vm242, %v578
      %611 = vst.msk [vmem:[#allocation2 + $0x70] sm:$0xff] %vm242, %v579
      %612 = vst.msk [vmem:[#allocation2 + $0x78] sm:$0xff] %vm242, %v580
      %613 = vst.msk [vmem:[#allocation2 + $0x80] sm:$0xff] %vm242, %v581
      %614 = vst.msk [vmem:[#allocation2 + $0x88] sm:$0xff] %vm242, %v582
      %615 = vst.msk [vmem:[#allocation2 + $0x90] sm:$0xff] %vm242, %v583
      %616 = vst.msk [vmem:[#allocation2 + $0x98] sm:$0xff] %vm242, %v584
      %617 = vst.msk [vmem:[#allocation2 + $0xa0] sm:$0xff] %vm242, %v585
      %618 = vst.msk [vmem:[#allocation2 + $0xa8] sm:$0xff] %vm242, %v586
      %619 = vst.msk [vmem:[#allocation2 + $0xb0] sm:$0xff] %vm242, %v587
      %620 = vst.msk [vmem:[#allocation2 + $0xb8] sm:$0xff] %vm242, %v588
      %621 = vst.msk [vmem:[#allocation2 + $0xc0] sm:$0xff] %vm242, %v589
      %622 = vst.msk [vmem:[#allocation2 + $0xc8] sm:$0xff] %vm242, %v590
      %623 = vst.msk [vmem:[#allocation2 + $0xd0] sm:$0xff] %vm242, %v591
      %624 = vst.msk [vmem:[#allocation2 + $0xd8] sm:$0xff] %vm242, %v592
      %625 = vst.msk [vmem:[#allocation2 + $0xe0] sm:$0xff] %vm242, %v593
      %626 = vst.msk [vmem:[#allocation2 + $0xe8] sm:$0xff] %vm242, %v594
      %627 = vst.msk [vmem:[#allocation2 + $0xf0] sm:$0xff] %vm242, %v595
      %628 = vst.msk [vmem:[#allocation2 + $0xf8] sm:$0xff] %vm242, %v596
      %v629 = vld [vmem:[%s277] sm:$0xf]
      %v630 = vld [vmem:[%s277 + $0x4] sm:$0xf]
      %v631 = vld [vmem:[%s277 + $0x8] sm:$0x1]
      %v632 = vld [vmem:[%s277 + $0xc] sm:$0xf]
      %v633 = vld [vmem:[%s277 + $0x10] sm:$0xf]
      %v634 = vld [vmem:[%s277 + $0x14] sm:$0x1]
      %v635 = vld [vmem:[%s277 + $0x18] sm:$0xf]
      %v636 = vld [vmem:[%s277 + $0x1c] sm:$0xf]
      %v637 = vld [vmem:[%s277 + $0x20] sm:$0x1]
      %v638 = vld [vmem:[%s277 + $0x24] sm:$0xf]
      %v639 = vld [vmem:[%s277 + $0x28] sm:$0xf]
      %v640 = vld [vmem:[%s277 + $0x2c] sm:$0x1]
      %v641 = vld [vmem:[%s277 + $0x30] sm:$0xf]
      %v642 = vld [vmem:[%s277 + $0x34] sm:$0xf]
      %v643 = vld [vmem:[%s277 + $0x38] sm:$0x1]
      %v644 = vld [vmem:[%s277 + $0x3c] sm:$0xf]
      %v645 = vld [vmem:[%s277 + $0x40] sm:$0xf]
      %v646 = vld [vmem:[%s277 + $0x44] sm:$0x1]
      %v647 = vld [vmem:[%s277 + $0x48] sm:$0xf]
      %v648 = vld [vmem:[%s277 + $0x4c] sm:$0xf]
      %v649 = vld [vmem:[%s277 + $0x50] sm:$0x1]
      %v650 = vld [vmem:[%s277 + $0x54] sm:$0xf]
      %v651 = vld [vmem:[%s277 + $0x58] sm:$0xf]
      %v652 = vld [vmem:[%s277 + $0x5c] sm:$0x1]
      %v653 = vld [vmem:[%s277 + $0x60] sm:$0xf]
      %v654 = vld [vmem:[%s277 + $0x64] sm:$0xf]
      %v655 = vld [vmem:[%s277 + $0x68] sm:$0x1]
      %v656 = vld [vmem:[%s277 + $0x6c] sm:$0xf]
      %v657 = vld [vmem:[%s277 + $0x70] sm:$0xf]
      %v658 = vld [vmem:[%s277 + $0x74] sm:$0x1]
      %v659 = vld [vmem:[%s277 + $0x78] sm:$0xf]
      %v660 = vld [vmem:[%s277 + $0x7c] sm:$0xf]
      %v661 = vld [vmem:[%s277 + $0x80] sm:$0x1]
      %v662 = vld [vmem:[%s277 + $0x84] sm:$0xf]
      %v663 = vld [vmem:[%s277 + $0x88] sm:$0xf]
      %v664 = vld [vmem:[%s277 + $0x8c] sm:$0x1]
      %v665 = vld [vmem:[%s277 + $0x90] sm:$0xf]
      %v666 = vld [vmem:[%s277 + $0x94] sm:$0xf]
      %v667 = vld [vmem:[%s277 + $0x98] sm:$0x1]
      %v668 = vld [vmem:[%s277 + $0x9c] sm:$0xf]
      %v669 = vld [vmem:[%s277 + $0xa0] sm:$0xf]
      %v670 = vld [vmem:[%s277 + $0xa4] sm:$0x1]
      %v671 = vld [vmem:[%s277 + $0xa8] sm:$0xf]
      %v672 = vld [vmem:[%s277 + $0xac] sm:$0xf]
      %v673 = vld [vmem:[%s277 + $0xb0] sm:$0x1]
      %v674 = vld [vmem:[%s277 + $0xb4] sm:$0xf]
      %v675 = vld [vmem:[%s277 + $0xb8] sm:$0xf]
      %v676 = vld [vmem:[%s277 + $0xbc] sm:$0x1]
      %vm677 = vsmask.f32 3328
      %vm678 = vsmask.f32 7440
      %vm679 = vmor %vm677, %vm678
      %v681 = vshrl.u32 %v629, 16
      %v683 = vrot.slane %v681, 4
      %v684 = vshll.u32 %v629, 16
      %v686 = vrot.slane %v684, 5
      %v687 = vor.u32 %v683, %v686
      %v688 = vrot.slane %v687, 4
      %v690 = vshll.u32 %v630, 16
      %v692 = vrot.slane %v690, 5
      %v693 = vsel %vm679, %v688, %v692
      %v694 = vshrl.u32 %v630, 16
      %v696 = vrot.slane %v694, 4
      %v697 = vor.u32 %v696, %v692
      %v698 = vrot.slane %v697, 4
      %v700 = vshll.u32 %v631, 16
      %v702 = vrot.slane %v700, 5
      %v703 = vsel %vm679, %v698, %v702
      %v705 = vshrl.u32 %v632, 16
      %v707 = vrot.slane %v705, 4
      %v708 = vshll.u32 %v632, 16
      %v710 = vrot.slane %v708, 5
      %v711 = vor.u32 %v707, %v710
      %v712 = vrot.slane %v711, 4
      %v714 = vshll.u32 %v633, 16
      %v716 = vrot.slane %v714, 5
      %v717 = vsel %vm679, %v712, %v716
      %v718 = vshrl.u32 %v633, 16
      %v720 = vrot.slane %v718, 4
      %v721 = vor.u32 %v720, %v716
      %v722 = vrot.slane %v721, 4
      %v724 = vshll.u32 %v634, 16
      %v726 = vrot.slane %v724, 5
      %v727 = vsel %vm679, %v722, %v726
      %v729 = vshrl.u32 %v635, 16
      %v731 = vrot.slane %v729, 4
      %v732 = vshll.u32 %v635, 16
      %v734 = vrot.slane %v732, 5
      %v735 = vor.u32 %v731, %v734
      %v736 = vrot.slane %v735, 4
      %v738 = vshll.u32 %v636, 16
      %v740 = vrot.slane %v738, 5
      %v741 = vsel %vm679, %v736, %v740
      %v742 = vshrl.u32 %v636, 16
      %v744 = vrot.slane %v742, 4
      %v745 = vor.u32 %v744, %v740
      %v746 = vrot.slane %v745, 4
      %v748 = vshll.u32 %v637, 16
      %v750 = vrot.slane %v748, 5
      %v751 = vsel %vm679, %v746, %v750
      %v753 = vshrl.u32 %v638, 16
      %v755 = vrot.slane %v753, 4
      %v756 = vshll.u32 %v638, 16
      %v758 = vrot.slane %v756, 5
      %v759 = vor.u32 %v755, %v758
      %v760 = vrot.slane %v759, 4
      %v762 = vshll.u32 %v639, 16
      %v764 = vrot.slane %v762, 5
      %v765 = vsel %vm679, %v760, %v764
      %v766 = vshrl.u32 %v639, 16
      %v768 = vrot.slane %v766, 4
      %v769 = vor.u32 %v768, %v764
      %v770 = vrot.slane %v769, 4
      %v772 = vshll.u32 %v640, 16
      %v774 = vrot.slane %v772, 5
      %v775 = vsel %vm679, %v770, %v774
      %v777 = vshrl.u32 %v641, 16
      %v779 = vrot.slane %v777, 4
      %v780 = vshll.u32 %v641, 16
      %v782 = vrot.slane %v780, 5
      %v783 = vor.u32 %v779, %v782
      %v784 = vrot.slane %v783, 4
      %v786 = vshll.u32 %v642, 16
      %v788 = vrot.slane %v786, 5
      %v789 = vsel %vm679, %v784, %v788
      %v790 = vshrl.u32 %v642, 16
      %v792 = vrot.slane %v790, 4
      %v793 = vor.u32 %v792, %v788
      %v794 = vrot.slane %v793, 4
      %v796 = vshll.u32 %v643, 16
      %v798 = vrot.slane %v796, 5
      %v799 = vsel %vm679, %v794, %v798
      %v801 = vshrl.u32 %v644, 16
      %v803 = vrot.slane %v801, 4
      %v804 = vshll.u32 %v644, 16
      %v806 = vrot.slane %v804, 5
      %v807 = vor.u32 %v803, %v806
      %v808 = vrot.slane %v807, 4
      %v810 = vshll.u32 %v645, 16
      %v812 = vrot.slane %v810, 5
      %v813 = vsel %vm679, %v808, %v812
      %v814 = vshrl.u32 %v645, 16
      %v816 = vrot.slane %v814, 4
      %v817 = vor.u32 %v816, %v812
      %v818 = vrot.slane %v817, 4
      %v820 = vshll.u32 %v646, 16
      %v822 = vrot.slane %v820, 5
      %v823 = vsel %vm679, %v818, %v822
      %v825 = vshrl.u32 %v647, 16
      %v827 = vrot.slane %v825, 4
      %v828 = vshll.u32 %v647, 16
      %v830 = vrot.slane %v828, 5
      %v831 = vor.u32 %v827, %v830
      %v832 = vrot.slane %v831, 4
      %v834 = vshll.u32 %v648, 16
      %v836 = vrot.slane %v834, 5
      %v837 = vsel %vm679, %v832, %v836
      %v838 = vshrl.u32 %v648, 16
      %v840 = vrot.slane %v838, 4
      %v841 = vor.u32 %v840, %v836
      %v842 = vrot.slane %v841, 4
      %v844 = vshll.u32 %v649, 16
      %v846 = vrot.slane %v844, 5
      %v847 = vsel %vm679, %v842, %v846
      %v849 = vshrl.u32 %v650, 16
      %v851 = vrot.slane %v849, 4
      %v852 = vshll.u32 %v650, 16
      %v854 = vrot.slane %v852, 5
      %v855 = vor.u32 %v851, %v854
      %v856 = vrot.slane %v855, 4
      %v858 = vshll.u32 %v651, 16
      %v860 = vrot.slane %v858, 5
      %v861 = vsel %vm679, %v856, %v860
      %v862 = vshrl.u32 %v651, 16
      %v864 = vrot.slane %v862, 4
      %v865 = vor.u32 %v864, %v860
      %v866 = vrot.slane %v865, 4
      %v868 = vshll.u32 %v652, 16
      %v870 = vrot.slane %v868, 5
      %v871 = vsel %vm679, %v866, %v870
      %v873 = vshrl.u32 %v653, 16
      %v875 = vrot.slane %v873, 4
      %v876 = vshll.u32 %v653, 16
      %v878 = vrot.slane %v876, 5
      %v879 = vor.u32 %v875, %v878
      %v880 = vrot.slane %v879, 4
      %v882 = vshll.u32 %v654, 16
      %v884 = vrot.slane %v882, 5
      %v885 = vsel %vm679, %v880, %v884
      %v886 = vshrl.u32 %v654, 16
      %v888 = vrot.slane %v886, 4
      %v889 = vor.u32 %v888, %v884
      %v890 = vrot.slane %v889, 4
      %v892 = vshll.u32 %v655, 16
      %v894 = vrot.slane %v892, 5
      %v895 = vsel %vm679, %v890, %v894
      %v897 = vshrl.u32 %v656, 16
      %v899 = vrot.slane %v897, 4
      %v900 = vshll.u32 %v656, 16
      %v902 = vrot.slane %v900, 5
      %v903 = vor.u32 %v899, %v902
      %v904 = vrot.slane %v903, 4
      %v906 = vshll.u32 %v657, 16
      %v908 = vrot.slane %v906, 5
      %v909 = vsel %vm679, %v904, %v908
      %v910 = vshrl.u32 %v657, 16
      %v912 = vrot.slane %v910, 4
      %v913 = vor.u32 %v912, %v908
      %v914 = vrot.slane %v913, 4
      %v916 = vshll.u32 %v658, 16
      %v918 = vrot.slane %v916, 5
      %v919 = vsel %vm679, %v914, %v918
      %v921 = vshrl.u32 %v659, 16
      %v923 = vrot.slane %v921, 4
      %v924 = vshll.u32 %v659, 16
      %v926 = vrot.slane %v924, 5
      %v927 = vor.u32 %v923, %v926
      %v928 = vrot.slane %v927, 4
      %v930 = vshll.u32 %v660, 16
      %v932 = vrot.slane %v930, 5
      %v933 = vsel %vm679, %v928, %v932
      %v934 = vshrl.u32 %v660, 16
      %v936 = vrot.slane %v934, 4
      %v937 = vor.u32 %v936, %v932
      %v938 = vrot.slane %v937, 4
      %v940 = vshll.u32 %v661, 16
      %v942 = vrot.slane %v940, 5
      %v943 = vsel %vm679, %v938, %v942
      %v945 = vshrl.u32 %v662, 16
      %v947 = vrot.slane %v945, 4
      %v948 = vshll.u32 %v662, 16
      %v950 = vrot.slane %v948, 5
      %v951 = vor.u32 %v947, %v950
      %v952 = vrot.slane %v951, 4
      %v954 = vshll.u32 %v663, 16
      %v956 = vrot.slane %v954, 5
      %v957 = vsel %vm679, %v952, %v956
      %v958 = vshrl.u32 %v663, 16
      %v960 = vrot.slane %v958, 4
      %v961 = vor.u32 %v960, %v956
      %v962 = vrot.slane %v961, 4
      %v964 = vshll.u32 %v664, 16
      %v966 = vrot.slane %v964, 5
      %v967 = vsel %vm679, %v962, %v966
      %v969 = vshrl.u32 %v665, 16
      %v971 = vrot.slane %v969, 4
      %v972 = vshll.u32 %v665, 16
      %v974 = vrot.slane %v972, 5
      %v975 = vor.u32 %v971, %v974
      %v976 = vrot.slane %v975, 4
      %v978 = vshll.u32 %v666, 16
      %v980 = vrot.slane %v978, 5
      %v981 = vsel %vm679, %v976, %v980
      %v982 = vshrl.u32 %v666, 16
      %v984 = vrot.slane %v982, 4
      %v985 = vor.u32 %v984, %v980
      %v986 = vrot.slane %v985, 4
      %v988 = vshll.u32 %v667, 16
      %v990 = vrot.slane %v988, 5
      %v991 = vsel %vm679, %v986, %v990
      %v993 = vshrl.u32 %v668, 16
      %v995 = vrot.slane %v993, 4
      %v996 = vshll.u32 %v668, 16
      %v998 = vrot.slane %v996, 5
      %v999 = vor.u32 %v995, %v998
      %v1000 = vrot.slane %v999, 4
      %v1002 = vshll.u32 %v669, 16
      %v1004 = vrot.slane %v1002, 5
      %v1005 = vsel %vm679, %v1000, %v1004
      %v1006 = vshrl.u32 %v669, 16
      %v1008 = vrot.slane %v1006, 4
      %v1009 = vor.u32 %v1008, %v1004
      %v1010 = vrot.slane %v1009, 4
      %v1012 = vshll.u32 %v670, 16
      %v1014 = vrot.slane %v1012, 5
      %v1015 = vsel %vm679, %v1010, %v1014
      %v1017 = vshrl.u32 %v671, 16
      %v1019 = vrot.slane %v1017, 4
      %v1020 = vshll.u32 %v671, 16
      %v1022 = vrot.slane %v1020, 5
      %v1023 = vor.u32 %v1019, %v1022
      %v1024 = vrot.slane %v1023, 4
      %v1026 = vshll.u32 %v672, 16
      %v1028 = vrot.slane %v1026, 5
      %v1029 = vsel %vm679, %v1024, %v1028
      %v1030 = vshrl.u32 %v672, 16
      %v1032 = vrot.slane %v1030, 4
      %v1033 = vor.u32 %v1032, %v1028
      %v1034 = vrot.slane %v1033, 4
      %v1036 = vshll.u32 %v673, 16
      %v1038 = vrot.slane %v1036, 5
      %v1039 = vsel %vm679, %v1034, %v1038
      %v1041 = vshrl.u32 %v674, 16
      %v1043 = vrot.slane %v1041, 4
      %v1044 = vshll.u32 %v674, 16
      %v1046 = vrot.slane %v1044, 5
      %v1047 = vor.u32 %v1043, %v1046
      %v1048 = vrot.slane %v1047, 4
      %v1050 = vshll.u32 %v675, 16
      %v1052 = vrot.slane %v1050, 5
      %v1053 = vsel %vm679, %v1048, %v1052
      %v1054 = vshrl.u32 %v675, 16
      %v1056 = vrot.slane %v1054, 4
      %v1057 = vor.u32 %v1056, %v1052
      %v1058 = vrot.slane %v1057, 4
      %v1060 = vshll.u32 %v676, 16
      %v1062 = vrot.slane %v1060, 5
      %v1063 = vsel %vm679, %v1058, %v1062
      %v1064 = vld [vmem:[#allocation2] sm:$0xff]
      %v1065 = vld [vmem:[#allocation2 + $0x8] sm:$0xff]
      %v1066 = vld [vmem:[#allocation2 + $0x10] sm:$0xff]
      %v1067 = vld [vmem:[#allocation2 + $0x18] sm:$0xff]
      %v1068 = vld [vmem:[#allocation2 + $0x20] sm:$0xff]
      %v1069 = vld [vmem:[#allocation2 + $0x28] sm:$0xff]
      %v1070 = vld [vmem:[#allocation2 + $0x30] sm:$0xff]
      %v1071 = vld [vmem:[#allocation2 + $0x38] sm:$0xff]
      %v1072 = vld [vmem:[#allocation2 + $0x40] sm:$0xff]
      %v1073 = vld [vmem:[#allocation2 + $0x48] sm:$0xff]
      %v1074 = vld [vmem:[#allocation2 + $0x50] sm:$0xff]
      %v1075 = vld [vmem:[#allocation2 + $0x58] sm:$0xff]
      %v1076 = vld [vmem:[#allocation2 + $0x60] sm:$0xff]
      %v1077 = vld [vmem:[#allocation2 + $0x68] sm:$0xff]
      %v1078 = vld [vmem:[#allocation2 + $0x70] sm:$0xff]
      %v1079 = vld [vmem:[#allocation2 + $0x78] sm:$0xff]
      %v1080 = vld [vmem:[#allocation2 + $0x80] sm:$0xff]
      %v1081 = vld [vmem:[#allocation2 + $0x88] sm:$0xff]
      %v1082 = vld [vmem:[#allocation2 + $0x90] sm:$0xff]
      %v1083 = vld [vmem:[#allocation2 + $0x98] sm:$0xff]
      %v1084 = vld [vmem:[#allocation2 + $0xa0] sm:$0xff]
      %v1085 = vld [vmem:[#allocation2 + $0xa8] sm:$0xff]
      %v1086 = vld [vmem:[#allocation2 + $0xb0] sm:$0xff]
      %v1087 = vld [vmem:[#allocation2 + $0xb8] sm:$0xff]
      %v1088 = vld [vmem:[#allocation2 + $0xc0] sm:$0xff]
      %v1089 = vld [vmem:[#allocation2 + $0xc8] sm:$0xff]
      %v1090 = vld [vmem:[#allocation2 + $0xd0] sm:$0xff]
      %v1091 = vld [vmem:[#allocation2 + $0xd8] sm:$0xff]
      %v1092 = vld [vmem:[#allocation2 + $0xe0] sm:$0xff]
      %v1093 = vld [vmem:[#allocation2 + $0xe8] sm:$0xff]
      %v1094 = vld [vmem:[#allocation2 + $0xf0] sm:$0xff]
      %v1095 = vld [vmem:[#allocation2 + $0xf8] sm:$0xff]
      %s1096 = scalar_lea.vmem %s223, 2
      %v1097 = vld [vmem:[%s1096] sm:$0x3]
      %v1098 = vunpack.c.l.b16 %v693
      %v1099 = vunpack.c.l.b16 %v703
      %v1100 = vunpack.c.l.b16 %v717
      %v1101 = vunpack.c.l.b16 %v727
      %v1102 = vunpack.c.l.b16 %v741
      %v1103 = vunpack.c.l.b16 %v751
      %v1104 = vunpack.c.l.b16 %v765
      %v1105 = vunpack.c.l.b16 %v775
      %v1106 = vunpack.c.l.b16 %v789
      %v1107 = vunpack.c.l.b16 %v799
      %v1108 = vunpack.c.l.b16 %v813
      %v1109 = vunpack.c.l.b16 %v823
      %v1110 = vunpack.c.l.b16 %v837
      %v1111 = vunpack.c.l.b16 %v847
      %v1112 = vunpack.c.l.b16 %v861
      %v1113 = vunpack.c.l.b16 %v871
      %v1114 = vunpack.c.l.b16 %v885
      %v1115 = vunpack.c.l.b16 %v895
      %v1116 = vunpack.c.l.b16 %v909
      %v1117 = vunpack.c.l.b16 %v919
      %v1118 = vunpack.c.l.b16 %v933
      %v1119 = vunpack.c.l.b16 %v943
      %v1120 = vunpack.c.l.b16 %v957
      %v1121 = vunpack.c.l.b16 %v967
      %v1122 = vunpack.c.l.b16 %v981
      %v1123 = vunpack.c.l.b16 %v991
      %v1124 = vunpack.c.l.b16 %v1005
      %v1125 = vunpack.c.l.b16 %v1015
      %v1126 = vunpack.c.l.b16 %v1029
      %v1127 = vunpack.c.l.b16 %v1039
      %v1128 = vunpack.c.l.b16 %v1053
      %v1129 = vunpack.c.l.b16 %v1063
      %v1130 = vpack.c.b16 %v1099, %v1098
      %v1131 = vpack.c.b16 %v1101, %v1100
      %v1132 = vpack.c.b16 %v1103, %v1102
      %v1133 = vpack.c.b16 %v1105, %v1104
      %v1134 = vpack.c.b16 %v1107, %v1106
      %v1135 = vpack.c.b16 %v1109, %v1108
      %v1136 = vpack.c.b16 %v1111, %v1110
      %v1137 = vpack.c.b16 %v1113, %v1112
      %v1138 = vpack.c.b16 %v1115, %v1114
      %v1139 = vpack.c.b16 %v1117, %v1116
      %v1140 = vpack.c.b16 %v1119, %v1118
      %v1141 = vpack.c.b16 %v1121, %v1120
      %v1142 = vpack.c.b16 %v1123, %v1122
      %v1143 = vpack.c.b16 %v1125, %v1124
      %v1144 = vpack.c.b16 %v1127, %v1126
      %v1145 = vpack.c.b16 %v1129, %v1128
      %v1147 = vsel %vm423, %v1130, 0
      %v1150 = vsel %vm423, %v1131, 0
      %v1153 = vsel %vm423, %v1132, 0
      %v1156 = vsel %vm423, %v1133, 0
      %v1159 = vsel %vm423, %v1134, 0
      %v1162 = vsel %vm423, %v1135, 0
      %v1165 = vsel %vm423, %v1136, 0
      %v1168 = vsel %vm423, %v1137, 0
      %v1171 = vsel %vm423, %v1138, 0
      %v1174 = vsel %vm423, %v1139, 0
      %v1177 = vsel %vm423, %v1140, 0
      %v1180 = vsel %vm423, %v1141, 0
      %v1183 = vsel %vm423, %v1142, 0
      %v1186 = vsel %vm423, %v1143, 0
      %v1189 = vsel %vm423, %v1144, 0
      %v1192 = vsel %vm423, %v1145, 0
      %v1195 = vsel %vm472, %v1097, 0
      %1197 = vmatpush.bf16.msra.mxu0 0
      %1198 = vmatpush.bf16.msra.mxu0 0
      %1199 = vmatpush.bf16.msra.mxu0 0
      %1200 = vmatpush.bf16.msra.mxu0 0
      %1201 = vmatpush.bf16.msra.mxu0 0
      %1202 = vmatpush.bf16.msra.mxu0 0
      %1203 = vmatpush.bf16.msra.mxu0 0
      %1204 = vmatpush.bf16.msra.mxu0 %v1195
      %1205 = vmatmul.bf16.gmra.mxu0 %v1147
      %v1206 = vpop.f32.mrf.mxu0
      %v1207 = vadd.f32 0.0, %v1206
      %v1208 = vpop.f32.mrf.mxu0
      %v1209 = vadd.f32 0.0, %v1208
      %1210 = vmatmul.bf16.gmra.mxu0 %v1150
      %v1211 = vpop.f32.mrf.mxu0
      %v1212 = vadd.f32 0.0, %v1211
      %v1213 = vpop.f32.mrf.mxu0
      %v1214 = vadd.f32 0.0, %v1213
      %1215 = vmatmul.bf16.gmra.mxu0 %v1153
      %v1216 = vpop.f32.mrf.mxu0
      %v1217 = vadd.f32 0.0, %v1216
      %v1218 = vpop.f32.mrf.mxu0
      %v1219 = vadd.f32 0.0, %v1218
      %1220 = vmatmul.bf16.gmra.mxu0 %v1156
      %v1221 = vpop.f32.mrf.mxu0
      %v1222 = vadd.f32 0.0, %v1221
      %v1223 = vpop.f32.mrf.mxu0
      %v1224 = vadd.f32 0.0, %v1223
      %1225 = vmatmul.bf16.gmra.mxu0 %v1159
      %v1226 = vpop.f32.mrf.mxu0
      %v1227 = vadd.f32 0.0, %v1226
      %v1228 = vpop.f32.mrf.mxu0
      %v1229 = vadd.f32 0.0, %v1228
      %1230 = vmatmul.bf16.gmra.mxu0 %v1162
      %v1231 = vpop.f32.mrf.mxu0
      %v1232 = vadd.f32 0.0, %v1231
      %v1233 = vpop.f32.mrf.mxu0
      %v1234 = vadd.f32 0.0, %v1233
      %1235 = vmatmul.bf16.gmra.mxu0 %v1165
      %v1236 = vpop.f32.mrf.mxu0
      %v1237 = vadd.f32 0.0, %v1236
      %v1238 = vpop.f32.mrf.mxu0
      %v1239 = vadd.f32 0.0, %v1238
      %1240 = vmatmul.bf16.gmra.mxu0 %v1168
      %v1241 = vpop.f32.mrf.mxu0
      %v1242 = vadd.f32 0.0, %v1241
      %v1243 = vpop.f32.mrf.mxu0
      %v1244 = vadd.f32 0.0, %v1243
      %1245 = vmatmul.bf16.gmra.mxu0 %v1171
      %v1246 = vpop.f32.mrf.mxu0
      %v1247 = vadd.f32 0.0, %v1246
      %v1248 = vpop.f32.mrf.mxu0
      %v1249 = vadd.f32 0.0, %v1248
      %1250 = vmatmul.bf16.gmra.mxu0 %v1174
      %v1251 = vpop.f32.mrf.mxu0
      %v1252 = vadd.f32 0.0, %v1251
      %v1253 = vpop.f32.mrf.mxu0
      %v1254 = vadd.f32 0.0, %v1253
      %1255 = vmatmul.bf16.gmra.mxu0 %v1177
      %v1256 = vpop.f32.mrf.mxu0
      %v1257 = vadd.f32 0.0, %v1256
      %v1258 = vpop.f32.mrf.mxu0
      %v1259 = vadd.f32 0.0, %v1258
      %1260 = vmatmul.bf16.gmra.mxu0 %v1180
      %v1261 = vpop.f32.mrf.mxu0
      %v1262 = vadd.f32 0.0, %v1261
      %v1263 = vpop.f32.mrf.mxu0
      %v1264 = vadd.f32 0.0, %v1263
      %1265 = vmatmul.bf16.gmra.mxu0 %v1183
      %v1266 = vpop.f32.mrf.mxu0
      %v1267 = vadd.f32 0.0, %v1266
      %v1268 = vpop.f32.mrf.mxu0
      %v1269 = vadd.f32 0.0, %v1268
      %1270 = vmatmul.bf16.gmra.mxu0 %v1186
      %v1271 = vpop.f32.mrf.mxu0
      %v1272 = vadd.f32 0.0, %v1271
      %v1273 = vpop.f32.mrf.mxu0
      %v1274 = vadd.f32 0.0, %v1273
      %1275 = vmatmul.bf16.gmra.mxu0 %v1189
      %v1276 = vpop.f32.mrf.mxu0
      %v1277 = vadd.f32 0.0, %v1276
      %v1278 = vpop.f32.mrf.mxu0
      %v1279 = vadd.f32 0.0, %v1278
      %1280 = vmatmul.bf16.gmra.mxu0 %v1192
      %v1281 = vpop.f32.mrf.mxu0
      %v1282 = vadd.f32 0.0, %v1281
      %v1283 = vpop.f32.mrf.mxu0
      %v1284 = vadd.f32 0.0, %v1283
      %1285 = vdwg.mxu0
      %v1286 = vadd.f32 %v1064, %v1207
      %v1287 = vadd.f32 %v1065, %v1209
      %v1288 = vadd.f32 %v1066, %v1212
      %v1289 = vadd.f32 %v1067, %v1214
      %v1290 = vadd.f32 %v1068, %v1217
      %v1291 = vadd.f32 %v1069, %v1219
      %v1292 = vadd.f32 %v1070, %v1222
      %v1293 = vadd.f32 %v1071, %v1224
      %v1294 = vadd.f32 %v1072, %v1227
      %v1295 = vadd.f32 %v1073, %v1229
      %v1296 = vadd.f32 %v1074, %v1232
      %v1297 = vadd.f32 %v1075, %v1234
      %v1298 = vadd.f32 %v1076, %v1237
      %v1299 = vadd.f32 %v1077, %v1239
      %v1300 = vadd.f32 %v1078, %v1242
      %v1301 = vadd.f32 %v1079, %v1244
      %v1302 = vadd.f32 %v1080, %v1247
      %v1303 = vadd.f32 %v1081, %v1249
      %v1304 = vadd.f32 %v1082, %v1252
      %v1305 = vadd.f32 %v1083, %v1254
      %v1306 = vadd.f32 %v1084, %v1257
      %v1307 = vadd.f32 %v1085, %v1259
      %v1308 = vadd.f32 %v1086, %v1262
      %v1309 = vadd.f32 %v1087, %v1264
      %v1310 = vadd.f32 %v1088, %v1267
      %v1311 = vadd.f32 %v1089, %v1269
      %v1312 = vadd.f32 %v1090, %v1272
      %v1313 = vadd.f32 %v1091, %v1274
      %v1314 = vadd.f32 %v1092, %v1277
      %v1315 = vadd.f32 %v1093, %v1279
      %v1316 = vadd.f32 %v1094, %v1282
      %v1317 = vadd.f32 %v1095, %v1284
      %1318 = vst.msk [vmem:[#allocation2] sm:$0xff] %vm242, %v1286
      %1319 = vst.msk [vmem:[#allocation2 + $0x8] sm:$0xff] %vm242, %v1287
      %1320 = vst.msk [vmem:[#allocation2 + $0x10] sm:$0xff] %vm242, %v1288
      %1321 = vst.msk [vmem:[#allocation2 + $0x18] sm:$0xff] %vm242, %v1289
      %1322 = vst.msk [vmem:[#allocation2 + $0x20] sm:$0xff] %vm242, %v1290
      %1323 = vst.msk [vmem:[#allocation2 + $0x28] sm:$0xff] %vm242, %v1291
      %1324 = vst.msk [vmem:[#allocation2 + $0x30] sm:$0xff] %vm242, %v1292
      %1325 = vst.msk [vmem:[#allocation2 + $0x38] sm:$0xff] %vm242, %v1293
      %1326 = vst.msk [vmem:[#allocation2 + $0x40] sm:$0xff] %vm242, %v1294
      %1327 = vst.msk [vmem:[#allocation2 + $0x48] sm:$0xff] %vm242, %v1295
      %1328 = vst.msk [vmem:[#allocation2 + $0x50] sm:$0xff] %vm242, %v1296
      %1329 = vst.msk [vmem:[#allocation2 + $0x58] sm:$0xff] %vm242, %v1297
      %1330 = vst.msk [vmem:[#allocation2 + $0x60] sm:$0xff] %vm242, %v1298
      %1331 = vst.msk [vmem:[#allocation2 + $0x68] sm:$0xff] %vm242, %v1299
      %1332 = vst.msk [vmem:[#allocation2 + $0x70] sm:$0xff] %vm242, %v1300
      %1333 = vst.msk [vmem:[#allocation2 + $0x78] sm:$0xff] %vm242, %v1301
      %1334 = vst.msk [vmem:[#allocation2 + $0x80] sm:$0xff] %vm242, %v1302
      %1335 = vst.msk [vmem:[#allocation2 + $0x88] sm:$0xff] %vm242, %v1303
      %1336 = vst.msk [vmem:[#allocation2 + $0x90] sm:$0xff] %vm242, %v1304
      %1337 = vst.msk [vmem:[#allocation2 + $0x98] sm:$0xff] %vm242, %v1305
      %1338 = vst.msk [vmem:[#allocation2 + $0xa0] sm:$0xff] %vm242, %v1306
      %1339 = vst.msk [vmem:[#allocation2 + $0xa8] sm:$0xff] %vm242, %v1307
      %1340 = vst.msk [vmem:[#allocation2 + $0xb0] sm:$0xff] %vm242, %v1308
      %1341 = vst.msk [vmem:[#allocation2 + $0xb8] sm:$0xff] %vm242, %v1309
      %1342 = vst.msk [vmem:[#allocation2 + $0xc0] sm:$0xff] %vm242, %v1310
      %1343 = vst.msk [vmem:[#allocation2 + $0xc8] sm:$0xff] %vm242, %v1311
      %1344 = vst.msk [vmem:[#allocation2 + $0xd0] sm:$0xff] %vm242, %v1312
      %1345 = vst.msk [vmem:[#allocation2 + $0xd8] sm:$0xff] %vm242, %v1313
      %1346 = vst.msk [vmem:[#allocation2 + $0xe0] sm:$0xff] %vm242, %v1314
      %1347 = vst.msk [vmem:[#allocation2 + $0xe8] sm:$0xff] %vm242, %v1315
      %1348 = vst.msk [vmem:[#allocation2 + $0xf0] sm:$0xff] %vm242, %v1316
      %1349 = vst.msk [vmem:[#allocation2 + $0xf8] sm:$0xff] %vm242, %v1317
      %v1350 = vld [vmem:[%s277] sm:$0xe]
      %v1351 = vld [vmem:[%s277 + $0x4] sm:$0xf]
      %v1352 = vld [vmem:[%s277 + $0x8] sm:$0x1]
      %v1353 = vld [vmem:[%s277 + $0xc] sm:$0xe]
      %v1354 = vld [vmem:[%s277 + $0x10] sm:$0xf]
      %v1355 = vld [vmem:[%s277 + $0x14] sm:$0x1]
      %v1356 = vld [vmem:[%s277 + $0x18] sm:$0xe]
      %v1357 = vld [vmem:[%s277 + $0x1c] sm:$0xf]
      %v1358 = vld [vmem:[%s277 + $0x20] sm:$0x1]
      %v1359 = vld [vmem:[%s277 + $0x24] sm:$0xe]
      %v1360 = vld [vmem:[%s277 + $0x28] sm:$0xf]
      %v1361 = vld [vmem:[%s277 + $0x2c] sm:$0x1]
      %v1362 = vld [vmem:[%s277 + $0x30] sm:$0xe]
      %v1363 = vld [vmem:[%s277 + $0x34] sm:$0xf]
      %v1364 = vld [vmem:[%s277 + $0x38] sm:$0x1]
      %v1365 = vld [vmem:[%s277 + $0x3c] sm:$0xe]
      %v1366 = vld [vmem:[%s277 + $0x40] sm:$0xf]
      %v1367 = vld [vmem:[%s277 + $0x44] sm:$0x1]
      %v1368 = vld [vmem:[%s277 + $0x48] sm:$0xe]
      %v1369 = vld [vmem:[%s277 + $0x4c] sm:$0xf]
      %v1370 = vld [vmem:[%s277 + $0x50] sm:$0x1]
      %v1371 = vld [vmem:[%s277 + $0x54] sm:$0xe]
      %v1372 = vld [vmem:[%s277 + $0x58] sm:$0xf]
      %v1373 = vld [vmem:[%s277 + $0x5c] sm:$0x1]
      %v1374 = vld [vmem:[%s277 + $0x60] sm:$0xe]
      %v1375 = vld [vmem:[%s277 + $0x64] sm:$0xf]
      %v1376 = vld [vmem:[%s277 + $0x68] sm:$0x1]
      %v1377 = vld [vmem:[%s277 + $0x6c] sm:$0xe]
      %v1378 = vld [vmem:[%s277 + $0x70] sm:$0xf]
      %v1379 = vld [vmem:[%s277 + $0x74] sm:$0x1]
      %v1380 = vld [vmem:[%s277 + $0x78] sm:$0xe]
      %v1381 = vld [vmem:[%s277 + $0x7c] sm:$0xf]
      %v1382 = vld [vmem:[%s277 + $0x80] sm:$0x1]
      %v1383 = vld [vmem:[%s277 + $0x84] sm:$0xe]
      %v1384 = vld [vmem:[%s277 + $0x88] sm:$0xf]
      %v1385 = vld [vmem:[%s277 + $0x8c] sm:$0x1]
      %v1386 = vld [vmem:[%s277 + $0x90] sm:$0xe]
      %v1387 = vld [vmem:[%s277 + $0x94] sm:$0xf]
      %v1388 = vld [vmem:[%s277 + $0x98] sm:$0x1]
      %v1389 = vld [vmem:[%s277 + $0x9c] sm:$0xe]
      %v1390 = vld [vmem:[%s277 + $0xa0] sm:$0xf]
      %v1391 = vld [vmem:[%s277 + $0xa4] sm:$0x1]
      %v1392 = vld [vmem:[%s277 + $0xa8] sm:$0xe]
      %v1393 = vld [vmem:[%s277 + $0xac] sm:$0xf]
      %v1394 = vld [vmem:[%s277 + $0xb0] sm:$0x1]
      %v1395 = vld [vmem:[%s277 + $0xb4] sm:$0xe]
      %v1396 = vld [vmem:[%s277 + $0xb8] sm:$0xf]
      %v1397 = vld [vmem:[%s277 + $0xbc] sm:$0x1]
      %vm1446 = vcmask 1042432
      %vm1447 = vcmask 1046532
      %vm1448 = vmor %vm1446, %vm1447
      %v1449 = vrot.slane %v1350, 5
      %v1450 = vrot.slane %v1449, 4
      %v1451 = vrot.slane %v1351, 5
      %v1452 = vsel %vm1448, %v1450, %v1451
      %v1453 = vrot.slane %v1451, 4
      %v1454 = vrot.slane %v1352, 5
      %v1455 = vsel %vm1448, %v1453, %v1454
      %v1456 = vrot.slane %v1353, 5
      %v1457 = vrot.slane %v1456, 4
      %v1458 = vrot.slane %v1354, 5
      %v1459 = vsel %vm1448, %v1457, %v1458
      %v1460 = vrot.slane %v1458, 4
      %v1461 = vrot.slane %v1355, 5
      %v1462 = vsel %vm1448, %v1460, %v1461
      %v1463 = vrot.slane %v1356, 5
      %v1464 = vrot.slane %v1463, 4
      %v1465 = vrot.slane %v1357, 5
      %v1466 = vsel %vm1448, %v1464, %v1465
      %v1467 = vrot.slane %v1465, 4
      %v1468 = vrot.slane %v1358, 5
      %v1469 = vsel %vm1448, %v1467, %v1468
      %v1470 = vrot.slane %v1359, 5
      %v1471 = vrot.slane %v1470, 4
      %v1472 = vrot.slane %v1360, 5
      %v1473 = vsel %vm1448, %v1471, %v1472
      %v1474 = vrot.slane %v1472, 4
      %v1475 = vrot.slane %v1361, 5
      %v1476 = vsel %vm1448, %v1474, %v1475
      %v1477 = vrot.slane %v1362, 5
      %v1478 = vrot.slane %v1477, 4
      %v1479 = vrot.slane %v1363, 5
      %v1480 = vsel %vm1448, %v1478, %v1479
      %v1481 = vrot.slane %v1479, 4
      %v1482 = vrot.slane %v1364, 5
      %v1483 = vsel %vm1448, %v1481, %v1482
      %v1484 = vrot.slane %v1365, 5
      %v1485 = vrot.slane %v1484, 4
      %v1486 = vrot.slane %v1366, 5
      %v1487 = vsel %vm1448, %v1485, %v1486
      %v1488 = vrot.slane %v1486, 4
      %v1489 = vrot.slane %v1367, 5
      %v1490 = vsel %vm1448, %v1488, %v1489
      %v1491 = vrot.slane %v1368, 5
      %v1492 = vrot.slane %v1491, 4
      %v1493 = vrot.slane %v1369, 5
      %v1494 = vsel %vm1448, %v1492, %v1493
      %v1495 = vrot.slane %v1493, 4
      %v1496 = vrot.slane %v1370, 5
      %v1497 = vsel %vm1448, %v1495, %v1496
      %v1498 = vrot.slane %v1371, 5
      %v1499 = vrot.slane %v1498, 4
      %v1500 = vrot.slane %v1372, 5
      %v1501 = vsel %vm1448, %v1499, %v1500
      %v1502 = vrot.slane %v1500, 4
      %v1503 = vrot.slane %v1373, 5
      %v1504 = vsel %vm1448, %v1502, %v1503
      %v1505 = vrot.slane %v1374, 5
      %v1506 = vrot.slane %v1505, 4
      %v1507 = vrot.slane %v1375, 5
      %v1508 = vsel %vm1448, %v1506, %v1507
      %v1509 = vrot.slane %v1507, 4
      %v1510 = vrot.slane %v1376, 5
      %v1511 = vsel %vm1448, %v1509, %v1510
      %v1512 = vrot.slane %v1377, 5
      %v1513 = vrot.slane %v1512, 4
      %v1514 = vrot.slane %v1378, 5
      %v1515 = vsel %vm1448, %v1513, %v1514
      %v1516 = vrot.slane %v1514, 4
      %v1517 = vrot.slane %v1379, 5
      %v1518 = vsel %vm1448, %v1516, %v1517
      %v1519 = vrot.slane %v1380, 5
      %v1520 = vrot.slane %v1519, 4
      %v1521 = vrot.slane %v1381, 5
      %v1522 = vsel %vm1448, %v1520, %v1521
      %v1523 = vrot.slane %v1521, 4
      %v1524 = vrot.slane %v1382, 5
      %v1525 = vsel %vm1448, %v1523, %v1524
      %v1526 = vrot.slane %v1383, 5
      %v1527 = vrot.slane %v1526, 4
      %v1528 = vrot.slane %v1384, 5
      %v1529 = vsel %vm1448, %v1527, %v1528
      %v1530 = vrot.slane %v1528, 4
      %v1531 = vrot.slane %v1385, 5
      %v1532 = vsel %vm1448, %v1530, %v1531
      %v1533 = vrot.slane %v1386, 5
      %v1534 = vrot.slane %v1533, 4
      %v1535 = vrot.slane %v1387, 5
      %v1536 = vsel %vm1448, %v1534, %v1535
      %v1537 = vrot.slane %v1535, 4
      %v1538 = vrot.slane %v1388, 5
      %v1539 = vsel %vm1448, %v1537, %v1538
      %v1540 = vrot.slane %v1389, 5
      %v1541 = vrot.slane %v1540, 4
      %v1542 = vrot.slane %v1390, 5
      %v1543 = vsel %vm1448, %v1541, %v1542
      %v1544 = vrot.slane %v1542, 4
      %v1545 = vrot.slane %v1391, 5
      %v1546 = vsel %vm1448, %v1544, %v1545
      %v1547 = vrot.slane %v1392, 5
      %v1548 = vrot.slane %v1547, 4
      %v1549 = vrot.slane %v1393, 5
      %v1550 = vsel %vm1448, %v1548, %v1549
      %v1551 = vrot.slane %v1549, 4
      %v1552 = vrot.slane %v1394, 5
      %v1553 = vsel %vm1448, %v1551, %v1552
      %v1554 = vrot.slane %v1395, 5
      %v1555 = vrot.slane %v1554, 4
      %v1556 = vrot.slane %v1396, 5
      %v1557 = vsel %vm1448, %v1555, %v1556
      %v1558 = vrot.slane %v1556, 4
      %v1559 = vrot.slane %v1397, 5
      %v1560 = vsel %vm1448, %v1558, %v1559
      %v1561 = vld [vmem:[#allocation2] sm:$0xff]
      %v1562 = vld [vmem:[#allocation2 + $0x8] sm:$0xff]
      %v1563 = vld [vmem:[#allocation2 + $0x10] sm:$0xff]
      %v1564 = vld [vmem:[#allocation2 + $0x18] sm:$0xff]
      %v1565 = vld [vmem:[#allocation2 + $0x20] sm:$0xff]
      %v1566 = vld [vmem:[#allocation2 + $0x28] sm:$0xff]
      %v1567 = vld [vmem:[#allocation2 + $0x30] sm:$0xff]
      %v1568 = vld [vmem:[#allocation2 + $0x38] sm:$0xff]
      %v1569 = vld [vmem:[#allocation2 + $0x40] sm:$0xff]
      %v1570 = vld [vmem:[#allocation2 + $0x48] sm:$0xff]
      %v1571 = vld [vmem:[#allocation2 + $0x50] sm:$0xff]
      %v1572 = vld [vmem:[#allocation2 + $0x58] sm:$0xff]
      %v1573 = vld [vmem:[#allocation2 + $0x60] sm:$0xff]
      %v1574 = vld [vmem:[#allocation2 + $0x68] sm:$0xff]
      %v1575 = vld [vmem:[#allocation2 + $0x70] sm:$0xff]
      %v1576 = vld [vmem:[#allocation2 + $0x78] sm:$0xff]
      %v1577 = vld [vmem:[#allocation2 + $0x80] sm:$0xff]
      %v1578 = vld [vmem:[#allocation2 + $0x88] sm:$0xff]
      %v1579 = vld [vmem:[#allocation2 + $0x90] sm:$0xff]
      %v1580 = vld [vmem:[#allocation2 + $0x98] sm:$0xff]
      %v1581 = vld [vmem:[#allocation2 + $0xa0] sm:$0xff]
      %v1582 = vld [vmem:[#allocation2 + $0xa8] sm:$0xff]
      %v1583 = vld [vmem:[#allocation2 + $0xb0] sm:$0xff]
      %v1584 = vld [vmem:[#allocation2 + $0xb8] sm:$0xff]
      %v1585 = vld [vmem:[#allocation2 + $0xc0] sm:$0xff]
      %v1586 = vld [vmem:[#allocation2 + $0xc8] sm:$0xff]
      %v1587 = vld [vmem:[#allocation2 + $0xd0] sm:$0xff]
      %v1588 = vld [vmem:[#allocation2 + $0xd8] sm:$0xff]
      %v1589 = vld [vmem:[#allocation2 + $0xe0] sm:$0xff]
      %v1590 = vld [vmem:[#allocation2 + $0xe8] sm:$0xff]
      %v1591 = vld [vmem:[#allocation2 + $0xf0] sm:$0xff]
      %v1592 = vld [vmem:[#allocation2 + $0xf8] sm:$0xff]
      %s1593 = scalar_lea.vmem %s223, 4
      %v1594 = vld [vmem:[%s1593] sm:$0x3]
      %v1595 = vunpack.c.l.b16 %v1452
      %v1596 = vunpack.c.l.b16 %v1455
      %v1597 = vunpack.c.l.b16 %v1459
      %v1598 = vunpack.c.l.b16 %v1462
      %v1599 = vunpack.c.l.b16 %v1466
      %v1600 = vunpack.c.l.b16 %v1469
      %v1601 = vunpack.c.l.b16 %v1473
      %v1602 = vunpack.c.l.b16 %v1476
      %v1603 = vunpack.c.l.b16 %v1480
      %v1604 = vunpack.c.l.b16 %v1483
      %v1605 = vunpack.c.l.b16 %v1487
      %v1606 = vunpack.c.l.b16 %v1490
      %v1607 = vunpack.c.l.b16 %v1494
      %v1608 = vunpack.c.l.b16 %v1497
      %v1609 = vunpack.c.l.b16 %v1501
      %v1610 = vunpack.c.l.b16 %v1504
      %v1611 = vunpack.c.l.b16 %v1508
      %v1612 = vunpack.c.l.b16 %v1511
      %v1613 = vunpack.c.l.b16 %v1515
      %v1614 = vunpack.c.l.b16 %v1518
      %v1615 = vunpack.c.l.b16 %v1522
      %v1616 = vunpack.c.l.b16 %v1525
      %v1617 = vunpack.c.l.b16 %v1529
      %v1618 = vunpack.c.l.b16 %v1532
      %v1619 = vunpack.c.l.b16 %v1536
      %v1620 = vunpack.c.l.b16 %v1539
      %v1621 = vunpack.c.l.b16 %v1543
      %v1622 = vunpack.c.l.b16 %v1546
      %v1623 = vunpack.c.l.b16 %v1550
      %v1624 = vunpack.c.l.b16 %v1553
      %v1625 = vunpack.c.l.b16 %v1557
      %v1626 = vunpack.c.l.b16 %v1560
      %v1627 = vpack.c.b16 %v1596, %v1595
      %v1628 = vpack.c.b16 %v1598, %v1597
      %v1629 = vpack.c.b16 %v1600, %v1599
      %v1630 = vpack.c.b16 %v1602, %v1601
      %v1631 = vpack.c.b16 %v1604, %v1603
      %v1632 = vpack.c.b16 %v1606, %v1605
      %v1633 = vpack.c.b16 %v1608, %v1607
      %v1634 = vpack.c.b16 %v1610, %v1609
      %v1635 = vpack.c.b16 %v1612, %v1611
      %v1636 = vpack.c.b16 %v1614, %v1613
      %v1637 = vpack.c.b16 %v1616, %v1615
      %v1638 = vpack.c.b16 %v1618, %v1617
      %v1639 = vpack.c.b16 %v1620, %v1619
      %v1640 = vpack.c.b16 %v1622, %v1621
      %v1641 = vpack.c.b16 %v1624, %v1623
      %v1642 = vpack.c.b16 %v1626, %v1625
      %v1644 = vsel %vm423, %v1627, 0
      %v1647 = vsel %vm423, %v1628, 0
      %v1650 = vsel %vm423, %v1629, 0
      %v1653 = vsel %vm423, %v1630, 0
      %v1656 = vsel %vm423, %v1631, 0
      %v1659 = vsel %vm423, %v1632, 0
      %v1662 = vsel %vm423, %v1633, 0
      %v1665 = vsel %vm423, %v1634, 0
      %v1668 = vsel %vm423, %v1635, 0
      %v1671 = vsel %vm423, %v1636, 0
      %v1674 = vsel %vm423, %v1637, 0
      %v1677 = vsel %vm423, %v1638, 0
      %v1680 = vsel %vm423, %v1639, 0
      %v1683 = vsel %vm423, %v1640, 0
      %v1686 = vsel %vm423, %v1641, 0
      %v1689 = vsel %vm423, %v1642, 0
      %v1692 = vsel %vm472, %v1594, 0
      %1694 = vmatpush.bf16.msra.mxu0 0
      %1695 = vmatpush.bf16.msra.mxu0 0
      %1696 = vmatpush.bf16.msra.mxu0 0
      %1697 = vmatpush.bf16.msra.mxu0 0
      %1698 = vmatpush.bf16.msra.mxu0 0
      %1699 = vmatpush.bf16.msra.mxu0 0
      %1700 = vmatpush.bf16.msra.mxu0 0
      %1701 = vmatpush.bf16.msra.mxu0 %v1692
      %1702 = vmatmul.bf16.gmra.mxu0 %v1644
      %v1703 = vpop.f32.mrf.mxu0
      %v1704 = vadd.f32 0.0, %v1703
      %v1705 = vpop.f32.mrf.mxu0
      %v1706 = vadd.f32 0.0, %v1705
      %1707 = vmatmul.bf16.gmra.mxu0 %v1647
      %v1708 = vpop.f32.mrf.mxu0
      %v1709 = vadd.f32 0.0, %v1708
      %v1710 = vpop.f32.mrf.mxu0
      %v1711 = vadd.f32 0.0, %v1710
      %1712 = vmatmul.bf16.gmra.mxu0 %v1650
      %v1713 = vpop.f32.mrf.mxu0
      %v1714 = vadd.f32 0.0, %v1713
      %v1715 = vpop.f32.mrf.mxu0
      %v1716 = vadd.f32 0.0, %v1715
      %1717 = vmatmul.bf16.gmra.mxu0 %v1653
      %v1718 = vpop.f32.mrf.mxu0
      %v1719 = vadd.f32 0.0, %v1718
      %v1720 = vpop.f32.mrf.mxu0
      %v1721 = vadd.f32 0.0, %v1720
      %1722 = vmatmul.bf16.gmra.mxu0 %v1656
      %v1723 = vpop.f32.mrf.mxu0
      %v1724 = vadd.f32 0.0, %v1723
      %v1725 = vpop.f32.mrf.mxu0
      %v1726 = vadd.f32 0.0, %v1725
      %1727 = vmatmul.bf16.gmra.mxu0 %v1659
      %v1728 = vpop.f32.mrf.mxu0
      %v1729 = vadd.f32 0.0, %v1728
      %v1730 = vpop.f32.mrf.mxu0
      %v1731 = vadd.f32 0.0, %v1730
      %1732 = vmatmul.bf16.gmra.mxu0 %v1662
      %v1733 = vpop.f32.mrf.mxu0
      %v1734 = vadd.f32 0.0, %v1733
      %v1735 = vpop.f32.mrf.mxu0
      %v1736 = vadd.f32 0.0, %v1735
      %1737 = vmatmul.bf16.gmra.mxu0 %v1665
      %v1738 = vpop.f32.mrf.mxu0
      %v1739 = vadd.f32 0.0, %v1738
      %v1740 = vpop.f32.mrf.mxu0
      %v1741 = vadd.f32 0.0, %v1740
      %1742 = vmatmul.bf16.gmra.mxu0 %v1668
      %v1743 = vpop.f32.mrf.mxu0
      %v1744 = vadd.f32 0.0, %v1743
      %v1745 = vpop.f32.mrf.mxu0
      %v1746 = vadd.f32 0.0, %v1745
      %1747 = vmatmul.bf16.gmra.mxu0 %v1671
      %v1748 = vpop.f32.mrf.mxu0
      %v1749 = vadd.f32 0.0, %v1748
      %v1750 = vpop.f32.mrf.mxu0
      %v1751 = vadd.f32 0.0, %v1750
      %1752 = vmatmul.bf16.gmra.mxu0 %v1674
      %v1753 = vpop.f32.mrf.mxu0
      %v1754 = vadd.f32 0.0, %v1753
      %v1755 = vpop.f32.mrf.mxu0
      %v1756 = vadd.f32 0.0, %v1755
      %1757 = vmatmul.bf16.gmra.mxu0 %v1677
      %v1758 = vpop.f32.mrf.mxu0
      %v1759 = vadd.f32 0.0, %v1758
      %v1760 = vpop.f32.mrf.mxu0
      %v1761 = vadd.f32 0.0, %v1760
      %1762 = vmatmul.bf16.gmra.mxu0 %v1680
      %v1763 = vpop.f32.mrf.mxu0
      %v1764 = vadd.f32 0.0, %v1763
      %v1765 = vpop.f32.mrf.mxu0
      %v1766 = vadd.f32 0.0, %v1765
      %1767 = vmatmul.bf16.gmra.mxu0 %v1683
      %v1768 = vpop.f32.mrf.mxu0
      %v1769 = vadd.f32 0.0, %v1768
      %v1770 = vpop.f32.mrf.mxu0
      %v1771 = vadd.f32 0.0, %v1770
      %1772 = vmatmul.bf16.gmra.mxu0 %v1686
      %v1773 = vpop.f32.mrf.mxu0
      %v1774 = vadd.f32 0.0, %v1773
      %v1775 = vpop.f32.mrf.mxu0
      %v1776 = vadd.f32 0.0, %v1775
      %1777 = vmatmul.bf16.gmra.mxu0 %v1689
      %v1778 = vpop.f32.mrf.mxu0
      %v1779 = vadd.f32 0.0, %v1778
      %v1780 = vpop.f32.mrf.mxu0
      %v1781 = vadd.f32 0.0, %v1780
      %1782 = vdwg.mxu0
      %v1783 = vadd.f32 %v1561, %v1704
      %v1784 = vadd.f32 %v1562, %v1706
      %v1785 = vadd.f32 %v1563, %v1709
      %v1786 = vadd.f32 %v1564, %v1711
      %v1787 = vadd.f32 %v1565, %v1714
      %v1788 = vadd.f32 %v1566, %v1716
      %v1789 = vadd.f32 %v1567, %v1719
      %v1790 = vadd.f32 %v1568, %v1721
      %v1791 = vadd.f32 %v1569, %v1724
      %v1792 = vadd.f32 %v1570, %v1726
      %v1793 = vadd.f32 %v1571, %v1729
      %v1794 = vadd.f32 %v1572, %v1731
      %v1795 = vadd.f32 %v1573, %v1734
      %v1796 = vadd.f32 %v1574, %v1736
      %v1797 = vadd.f32 %v1575, %v1739
      %v1798 = vadd.f32 %v1576, %v1741
      %v1799 = vadd.f32 %v1577, %v1744
      %v1800 = vadd.f32 %v1578, %v1746
      %v1801 = vadd.f32 %v1579, %v1749
      %v1802 = vadd.f32 %v1580, %v1751
      %v1803 = vadd.f32 %v1581, %v1754
      %v1804 = vadd.f32 %v1582, %v1756
      %v1805 = vadd.f32 %v1583, %v1759
      %v1806 = vadd.f32 %v1584, %v1761
      %v1807 = vadd.f32 %v1585, %v1764
      %v1808 = vadd.f32 %v1586, %v1766
      %v1809 = vadd.f32 %v1587, %v1769
      %v1810 = vadd.f32 %v1588, %v1771
      %v1811 = vadd.f32 %v1589, %v1774
      %v1812 = vadd.f32 %v1590, %v1776
      %v1813 = vadd.f32 %v1591, %v1779
      %v1814 = vadd.f32 %v1592, %v1781
      %1815 = vst.msk [vmem:[#allocation2] sm:$0xff] %vm242, %v1783
      %1816 = vst.msk [vmem:[#allocation2 + $0x8] sm:$0xff] %vm242, %v1784
      %1817 = vst.msk [vmem:[#allocation2 + $0x10] sm:$0xff] %vm242, %v1785
      %1818 = vst.msk [vmem:[#allocation2 + $0x18] sm:$0xff] %vm242, %v1786
      %1819 = vst.msk [vmem:[#allocation2 + $0x20] sm:$0xff] %vm242, %v1787
      %1820 = vst.msk [vmem:[#allocation2 + $0x28] sm:$0xff] %vm242, %v1788
      %1821 = vst.msk [vmem:[#allocation2 + $0x30] sm:$0xff] %vm242, %v1789
      %1822 = vst.msk [vmem:[#allocation2 + $0x38] sm:$0xff] %vm242, %v1790
      %1823 = vst.msk [vmem:[#allocation2 + $0x40] sm:$0xff] %vm242, %v1791
      %1824 = vst.msk [vmem:[#allocation2 + $0x48] sm:$0xff] %vm242, %v1792
      %1825 = vst.msk [vmem:[#allocation2 + $0x50] sm:$0xff] %vm242, %v1793
      %1826 = vst.msk [vmem:[#allocation2 + $0x58] sm:$0xff] %vm242, %v1794
      %1827 = vst.msk [vmem:[#allocation2 + $0x60] sm:$0xff] %vm242, %v1795
      %1828 = vst.msk [vmem:[#allocation2 + $0x68] sm:$0xff] %vm242, %v1796
      %1829 = vst.msk [vmem:[#allocation2 + $0x70] sm:$0xff] %vm242, %v1797
      %1830 = vst.msk [vmem:[#allocation2 + $0x78] sm:$0xff] %vm242, %v1798
      %1831 = vst.msk [vmem:[#allocation2 + $0x80] sm:$0xff] %vm242, %v1799
      %1832 = vst.msk [vmem:[#allocation2 + $0x88] sm:$0xff] %vm242, %v1800
      %1833 = vst.msk [vmem:[#allocation2 + $0x90] sm:$0xff] %vm242, %v1801
      %1834 = vst.msk [vmem:[#allocation2 + $0x98] sm:$0xff] %vm242, %v1802
      %1835 = vst.msk [vmem:[#allocation2 + $0xa0] sm:$0xff] %vm242, %v1803
      %1836 = vst.msk [vmem:[#allocation2 + $0xa8] sm:$0xff] %vm242, %v1804
      %1837 = vst.msk [vmem:[#allocation2 + $0xb0] sm:$0xff] %vm242, %v1805
      %1838 = vst.msk [vmem:[#allocation2 + $0xb8] sm:$0xff] %vm242, %v1806
      %1839 = vst.msk [vmem:[#allocation2 + $0xc0] sm:$0xff] %vm242, %v1807
      %1840 = vst.msk [vmem:[#allocation2 + $0xc8] sm:$0xff] %vm242, %v1808
      %1841 = vst.msk [vmem:[#allocation2 + $0xd0] sm:$0xff] %vm242, %v1809
      %1842 = vst.msk [vmem:[#allocation2 + $0xd8] sm:$0xff] %vm242, %v1810
      %1843 = vst.msk [vmem:[#allocation2 + $0xe0] sm:$0xff] %vm242, %v1811
      %1844 = vst.msk [vmem:[#allocation2 + $0xe8] sm:$0xff] %vm242, %v1812
      %1845 = vst.msk [vmem:[#allocation2 + $0xf0] sm:$0xff] %vm242, %v1813
      %1846 = vst.msk [vmem:[#allocation2 + $0xf8] sm:$0xff] %vm242, %v1814
      %s1847 = sadd.s32 %s241, 1
      %s1848 = smul.u32 %s1847, 3
      %s1849 = smul.addr %s1848, 4
      %s1850 = scalar_lea.vmem %s219, %s1849
      %v1851 = vld [vmem:[%s1850] sm:$0xf]
      %v1852 = vld [vmem:[%s1850 + $0x4] sm:$0xf]
      %v1853 = vld [vmem:[%s1850 + $0xc] sm:$0xf]
      %v1854 = vld [vmem:[%s1850 + $0x10] sm:$0xf]
      %v1855 = vld [vmem:[%s1850 + $0x18] sm:$0xf]
      %v1856 = vld [vmem:[%s1850 + $0x1c] sm:$0xf]
      %v1857 = vld [vmem:[%s1850 + $0x24] sm:$0xf]
      %v1858 = vld [vmem:[%s1850 + $0x28] sm:$0xf]
      %v1859 = vld [vmem:[%s1850 + $0x30] sm:$0xf]
      %v1860 = vld [vmem:[%s1850 + $0x34] sm:$0xf]
      %v1861 = vld [vmem:[%s1850 + $0x3c] sm:$0xf]
      %v1862 = vld [vmem:[%s1850 + $0x40] sm:$0xf]
      %v1863 = vld [vmem:[%s1850 + $0x48] sm:$0xf]
      %v1864 = vld [vmem:[%s1850 + $0x4c] sm:$0xf]
      %v1865 = vld [vmem:[%s1850 + $0x54] sm:$0xf]
      %v1866 = vld [vmem:[%s1850 + $0x58] sm:$0xf]
      %v1867 = vld [vmem:[%s1850 + $0x60] sm:$0xf]
      %v1868 = vld [vmem:[%s1850 + $0x64] sm:$0xf]
      %v1869 = vld [vmem:[%s1850 + $0x6c] sm:$0xf]
      %v1870 = vld [vmem:[%s1850 + $0x70] sm:$0xf]
      %v1871 = vld [vmem:[%s1850 + $0x78] sm:$0xf]
      %v1872 = vld [vmem:[%s1850 + $0x7c] sm:$0xf]
      %v1873 = vld [vmem:[%s1850 + $0x84] sm:$0xf]
      %v1874 = vld [vmem:[%s1850 + $0x88] sm:$0xf]
      %v1875 = vld [vmem:[%s1850 + $0x90] sm:$0xf]
      %v1876 = vld [vmem:[%s1850 + $0x94] sm:$0xf]
      %v1877 = vld [vmem:[%s1850 + $0x9c] sm:$0xf]
      %v1878 = vld [vmem:[%s1850 + $0xa0] sm:$0xf]
      %v1879 = vld [vmem:[%s1850 + $0xa8] sm:$0xf]
      %v1880 = vld [vmem:[%s1850 + $0xac] sm:$0xf]
      %v1881 = vld [vmem:[%s1850 + $0xb4] sm:$0xf]
      %v1882 = vld [vmem:[%s1850 + $0xb8] sm:$0xf]
      %v1883 = vld [vmem:[#allocation2] sm:$0xff]
      %v1884 = vld [vmem:[#allocation2 + $0x8] sm:$0xff]
      %v1885 = vld [vmem:[#allocation2 + $0x10] sm:$0xff]
      %v1886 = vld [vmem:[#allocation2 + $0x18] sm:$0xff]
      %v1887 = vld [vmem:[#allocation2 + $0x20] sm:$0xff]
      %v1888 = vld [vmem:[#allocation2 + $0x28] sm:$0xff]
      %v1889 = vld [vmem:[#allocation2 + $0x30] sm:$0xff]
      %v1890 = vld [vmem:[#allocation2 + $0x38] sm:$0xff]
      %v1891 = vld [vmem:[#allocation2 + $0x40] sm:$0xff]
      %v1892 = vld [vmem:[#allocation2 + $0x48] sm:$0xff]
      %v1893 = vld [vmem:[#allocation2 + $0x50] sm:$0xff]
      %v1894 = vld [vmem:[#allocation2 + $0x58] sm:$0xff]
      %v1895 = vld [vmem:[#allocation2 + $0x60] sm:$0xff]
      %v1896 = vld [vmem:[#allocation2 + $0x68] sm:$0xff]
      %v1897 = vld [vmem:[#allocation2 + $0x70] sm:$0xff]
      %v1898 = vld [vmem:[#allocation2 + $0x78] sm:$0xff]
      %v1899 = vld [vmem:[#allocation2 + $0x80] sm:$0xff]
      %v1900 = vld [vmem:[#allocation2 + $0x88] sm:$0xff]
      %v1901 = vld [vmem:[#allocation2 + $0x90] sm:$0xff]
      %v1902 = vld [vmem:[#allocation2 + $0x98] sm:$0xff]
      %v1903 = vld [vmem:[#allocation2 + $0xa0] sm:$0xff]
      %v1904 = vld [vmem:[#allocation2 + $0xa8] sm:$0xff]
      %v1905 = vld [vmem:[#allocation2 + $0xb0] sm:$0xff]
      %v1906 = vld [vmem:[#allocation2 + $0xb8] sm:$0xff]
      %v1907 = vld [vmem:[#allocation2 + $0xc0] sm:$0xff]
      %v1908 = vld [vmem:[#allocation2 + $0xc8] sm:$0xff]
      %v1909 = vld [vmem:[#allocation2 + $0xd0] sm:$0xff]
      %v1910 = vld [vmem:[#allocation2 + $0xd8] sm:$0xff]
      %v1911 = vld [vmem:[#allocation2 + $0xe0] sm:$0xff]
      %v1912 = vld [vmem:[#allocation2 + $0xe8] sm:$0xff]
      %v1913 = vld [vmem:[#allocation2 + $0xf0] sm:$0xff]
      %v1914 = vld [vmem:[#allocation2 + $0xf8] sm:$0xff]
      %s1915 = scalar_lea.vmem %s223, 6
      %v1916 = vld [vmem:[%s1915] sm:$0x3]
      %v1949 = vunpack.c.l.b16 %v1851
      %v1950 = vunpack.c.l.b16 %v1852
      %v1951 = vunpack.c.l.b16 %v1853
      %v1952 = vunpack.c.l.b16 %v1854
      %v1953 = vunpack.c.l.b16 %v1855
      %v1954 = vunpack.c.l.b16 %v1856
      %v1955 = vunpack.c.l.b16 %v1857
      %v1956 = vunpack.c.l.b16 %v1858
      %v1957 = vunpack.c.l.b16 %v1859
      %v1958 = vunpack.c.l.b16 %v1860
      %v1959 = vunpack.c.l.b16 %v1861
      %v1960 = vunpack.c.l.b16 %v1862
      %v1961 = vunpack.c.l.b16 %v1863
      %v1962 = vunpack.c.l.b16 %v1864
      %v1963 = vunpack.c.l.b16 %v1865
      %v1964 = vunpack.c.l.b16 %v1866
      %v1965 = vunpack.c.l.b16 %v1867
      %v1966 = vunpack.c.l.b16 %v1868
      %v1967 = vunpack.c.l.b16 %v1869
      %v1968 = vunpack.c.l.b16 %v1870
      %v1969 = vunpack.c.l.b16 %v1871
      %v1970 = vunpack.c.l.b16 %v1872
      %v1971 = vunpack.c.l.b16 %v1873
      %v1972 = vunpack.c.l.b16 %v1874
      %v1973 = vunpack.c.l.b16 %v1875
      %v1974 = vunpack.c.l.b16 %v1876
      %v1975 = vunpack.c.l.b16 %v1877
      %v1976 = vunpack.c.l.b16 %v1878
      %v1977 = vunpack.c.l.b16 %v1879
      %v1978 = vunpack.c.l.b16 %v1880
      %v1979 = vunpack.c.l.b16 %v1881
      %v1980 = vunpack.c.l.b16 %v1882
      %v1981 = vpack.c.b16 %v1950, %v1949
      %v1982 = vpack.c.b16 %v1952, %v1951
      %v1983 = vpack.c.b16 %v1954, %v1953
      %v1984 = vpack.c.b16 %v1956, %v1955
      %v1985 = vpack.c.b16 %v1958, %v1957
      %v1986 = vpack.c.b16 %v1960, %v1959
      %v1987 = vpack.c.b16 %v1962, %v1961
      %v1988 = vpack.c.b16 %v1964, %v1963
      %v1989 = vpack.c.b16 %v1966, %v1965
      %v1990 = vpack.c.b16 %v1968, %v1967
      %v1991 = vpack.c.b16 %v1970, %v1969
      %v1992 = vpack.c.b16 %v1972, %v1971
      %v1993 = vpack.c.b16 %v1974, %v1973
      %v1994 = vpack.c.b16 %v1976, %v1975
      %v1995 = vpack.c.b16 %v1978, %v1977
      %v1996 = vpack.c.b16 %v1980, %v1979
      %v1998 = vsel %vm423, %v1981, 0
      %v2001 = vsel %vm423, %v1982, 0
      %v2004 = vsel %vm423, %v1983, 0
      %v2007 = vsel %vm423, %v1984, 0
      %v2010 = vsel %vm423, %v1985, 0
      %v2013 = vsel %vm423, %v1986, 0
      %v2016 = vsel %vm423, %v1987, 0
      %v2019 = vsel %vm423, %v1988, 0
      %v2022 = vsel %vm423, %v1989, 0
      %v2025 = vsel %vm423, %v1990, 0
      %v2028 = vsel %vm423, %v1991, 0
      %v2031 = vsel %vm423, %v1992, 0
      %v2034 = vsel %vm423, %v1993, 0
      %v2037 = vsel %vm423, %v1994, 0
      %v2040 = vsel %vm423, %v1995, 0
      %v2043 = vsel %vm423, %v1996, 0
      %v2046 = vsel %vm472, %v1916, 0
      %2048 = vmatpush.bf16.msra.mxu0 0
      %2049 = vmatpush.bf16.msra.mxu0 0
      %2050 = vmatpush.bf16.msra.mxu0 0
      %2051 = vmatpush.bf16.msra.mxu0 0
      %2052 = vmatpush.bf16.msra.mxu0 0
      %2053 = vmatpush.bf16.msra.mxu0 0
      %2054 = vmatpush.bf16.msra.mxu0 0
      %2055 = vmatpush.bf16.msra.mxu0 %v2046
      %2056 = vmatmul.bf16.gmra.mxu0 %v1998
      %v2057 = vpop.f32.mrf.mxu0
      %v2058 = vadd.f32 0.0, %v2057
      %v2059 = vpop.f32.mrf.mxu0
      %v2060 = vadd.f32 0.0, %v2059
      %2061 = vmatmul.bf16.gmra.mxu0 %v2001
      %v2062 = vpop.f32.mrf.mxu0
      %v2063 = vadd.f32 0.0, %v2062
      %v2064 = vpop.f32.mrf.mxu0
      %v2065 = vadd.f32 0.0, %v2064
      %2066 = vmatmul.bf16.gmra.mxu0 %v2004
      %v2067 = vpop.f32.mrf.mxu0
      %v2068 = vadd.f32 0.0, %v2067
      %v2069 = vpop.f32.mrf.mxu0
      %v2070 = vadd.f32 0.0, %v2069
      %2071 = vmatmul.bf16.gmra.mxu0 %v2007
      %v2072 = vpop.f32.mrf.mxu0
      %v2073 = vadd.f32 0.0, %v2072
      %v2074 = vpop.f32.mrf.mxu0
      %v2075 = vadd.f32 0.0, %v2074
      %2076 = vmatmul.bf16.gmra.mxu0 %v2010
      %v2077 = vpop.f32.mrf.mxu0
      %v2078 = vadd.f32 0.0, %v2077
      %v2079 = vpop.f32.mrf.mxu0
      %v2080 = vadd.f32 0.0, %v2079
      %2081 = vmatmul.bf16.gmra.mxu0 %v2013
      %v2082 = vpop.f32.mrf.mxu0
      %v2083 = vadd.f32 0.0, %v2082
      %v2084 = vpop.f32.mrf.mxu0
      %v2085 = vadd.f32 0.0, %v2084
      %2086 = vmatmul.bf16.gmra.mxu0 %v2016
      %v2087 = vpop.f32.mrf.mxu0
      %v2088 = vadd.f32 0.0, %v2087
      %v2089 = vpop.f32.mrf.mxu0
      %v2090 = vadd.f32 0.0, %v2089
      %2091 = vmatmul.bf16.gmra.mxu0 %v2019
      %v2092 = vpop.f32.mrf.mxu0
      %v2093 = vadd.f32 0.0, %v2092
      %v2094 = vpop.f32.mrf.mxu0
      %v2095 = vadd.f32 0.0, %v2094
      %2096 = vmatmul.bf16.gmra.mxu0 %v2022
      %v2097 = vpop.f32.mrf.mxu0
      %v2098 = vadd.f32 0.0, %v2097
      %v2099 = vpop.f32.mrf.mxu0
      %v2100 = vadd.f32 0.0, %v2099
      %2101 = vmatmul.bf16.gmra.mxu0 %v2025
      %v2102 = vpop.f32.mrf.mxu0
      %v2103 = vadd.f32 0.0, %v2102
      %v2104 = vpop.f32.mrf.mxu0
      %v2105 = vadd.f32 0.0, %v2104
      %2106 = vmatmul.bf16.gmra.mxu0 %v2028
      %v2107 = vpop.f32.mrf.mxu0
      %v2108 = vadd.f32 0.0, %v2107
      %v2109 = vpop.f32.mrf.mxu0
      %v2110 = vadd.f32 0.0, %v2109
      %2111 = vmatmul.bf16.gmra.mxu0 %v2031
      %v2112 = vpop.f32.mrf.mxu0
      %v2113 = vadd.f32 0.0, %v2112
      %v2114 = vpop.f32.mrf.mxu0
      %v2115 = vadd.f32 0.0, %v2114
      %2116 = vmatmul.bf16.gmra.mxu0 %v2034
      %v2117 = vpop.f32.mrf.mxu0
      %v2118 = vadd.f32 0.0, %v2117
      %v2119 = vpop.f32.mrf.mxu0
      %v2120 = vadd.f32 0.0, %v2119
      %2121 = vmatmul.bf16.gmra.mxu0 %v2037
      %v2122 = vpop.f32.mrf.mxu0
      %v2123 = vadd.f32 0.0, %v2122
      %v2124 = vpop.f32.mrf.mxu0
      %v2125 = vadd.f32 0.0, %v2124
      %2126 = vmatmul.bf16.gmra.mxu0 %v2040
      %v2127 = vpop.f32.mrf.mxu0
      %v2128 = vadd.f32 0.0, %v2127
      %v2129 = vpop.f32.mrf.mxu0
      %v2130 = vadd.f32 0.0, %v2129
      %2131 = vmatmul.bf16.gmra.mxu0 %v2043
      %v2132 = vpop.f32.mrf.mxu0
      %v2133 = vadd.f32 0.0, %v2132
      %v2134 = vpop.f32.mrf.mxu0
      %v2135 = vadd.f32 0.0, %v2134
      %2136 = vdwg.mxu0
      %v2137 = vadd.f32 %v1883, %v2058
      %v2138 = vadd.f32 %v1884, %v2060
      %v2139 = vadd.f32 %v1885, %v2063
      %v2140 = vadd.f32 %v1886, %v2065
      %v2141 = vadd.f32 %v1887, %v2068
      %v2142 = vadd.f32 %v1888, %v2070
      %v2143 = vadd.f32 %v1889, %v2073
      %v2144 = vadd.f32 %v1890, %v2075
      %v2145 = vadd.f32 %v1891, %v2078
      %v2146 = vadd.f32 %v1892, %v2080
      %v2147 = vadd.f32 %v1893, %v2083
      %v2148 = vadd.f32 %v1894, %v2085
      %v2149 = vadd.f32 %v1895, %v2088
      %v2150 = vadd.f32 %v1896, %v2090
      %v2151 = vadd.f32 %v1897, %v2093
      %v2152 = vadd.f32 %v1898, %v2095
      %v2153 = vadd.f32 %v1899, %v2098
      %v2154 = vadd.f32 %v1900, %v2100
      %v2155 = vadd.f32 %v1901, %v2103
      %v2156 = vadd.f32 %v1902, %v2105
      %v2157 = vadd.f32 %v1903, %v2108
      %v2158 = vadd.f32 %v1904, %v2110
      %v2159 = vadd.f32 %v1905, %v2113
      %v2160 = vadd.f32 %v1906, %v2115
      %v2161 = vadd.f32 %v1907, %v2118
      %v2162 = vadd.f32 %v1908, %v2120
      %v2163 = vadd.f32 %v1909, %v2123
      %v2164 = vadd.f32 %v1910, %v2125
      %v2165 = vadd.f32 %v1911, %v2128
      %v2166 = vadd.f32 %v1912, %v2130
      %v2167 = vadd.f32 %v1913, %v2133
      %v2168 = vadd.f32 %v1914, %v2135
      %2169 = vst.msk [vmem:[#allocation2] sm:$0xff] %vm242, %v2137
      %2170 = vst.msk [vmem:[#allocation2 + $0x8] sm:$0xff] %vm242, %v2138
      %2171 = vst.msk [vmem:[#allocation2 + $0x10] sm:$0xff] %vm242, %v2139
      %2172 = vst.msk [vmem:[#allocation2 + $0x18] sm:$0xff] %vm242, %v2140
      %2173 = vst.msk [vmem:[#allocation2 + $0x20] sm:$0xff] %vm242, %v2141
      %2174 = vst.msk [vmem:[#allocation2 + $0x28] sm:$0xff] %vm242, %v2142
      %2175 = vst.msk [vmem:[#allocation2 + $0x30] sm:$0xff] %vm242, %v2143
      %2176 = vst.msk [vmem:[#allocation2 + $0x38] sm:$0xff] %vm242, %v2144
      %2177 = vst.msk [vmem:[#allocation2 + $0x40] sm:$0xff] %vm242, %v2145
      %2178 = vst.msk [vmem:[#allocation2 + $0x48] sm:$0xff] %vm242, %v2146
      %2179 = vst.msk [vmem:[#allocation2 + $0x50] sm:$0xff] %vm242, %v2147
      %2180 = vst.msk [vmem:[#allocation2 + $0x58] sm:$0xff] %vm242, %v2148
      %2181 = vst.msk [vmem:[#allocation2 + $0x60] sm:$0xff] %vm242, %v2149
      %2182 = vst.msk [vmem:[#allocation2 + $0x68] sm:$0xff] %vm242, %v2150
      %2183 = vst.msk [vmem:[#allocation2 + $0x70] sm:$0xff] %vm242, %v2151
      %2184 = vst.msk [vmem:[#allocation2 + $0x78] sm:$0xff] %vm242, %v2152
      %2185 = vst.msk [vmem:[#allocation2 + $0x80] sm:$0xff] %vm242, %v2153
      %2186 = vst.msk [vmem:[#allocation2 + $0x88] sm:$0xff] %vm242, %v2154
      %2187 = vst.msk [vmem:[#allocation2 + $0x90] sm:$0xff] %vm242, %v2155
      %2188 = vst.msk [vmem:[#allocation2 + $0x98] sm:$0xff] %vm242, %v2156
      %2189 = vst.msk [vmem:[#allocation2 + $0xa0] sm:$0xff] %vm242, %v2157
      %2190 = vst.msk [vmem:[#allocation2 + $0xa8] sm:$0xff] %vm242, %v2158
      %2191 = vst.msk [vmem:[#allocation2 + $0xb0] sm:$0xff] %vm242, %v2159
      %2192 = vst.msk [vmem:[#allocation2 + $0xb8] sm:$0xff] %vm242, %v2160
      %2193 = vst.msk [vmem:[#allocation2 + $0xc0] sm:$0xff] %vm242, %v2161
      %2194 = vst.msk [vmem:[#allocation2 + $0xc8] sm:$0xff] %vm242, %v2162
      %2195 = vst.msk [vmem:[#allocation2 + $0xd0] sm:$0xff] %vm242, %v2163
      %2196 = vst.msk [vmem:[#allocation2 + $0xd8] sm:$0xff] %vm242, %v2164
      %2197 = vst.msk [vmem:[#allocation2 + $0xe0] sm:$0xff] %vm242, %v2165
      %2198 = vst.msk [vmem:[#allocation2 + $0xe8] sm:$0xff] %vm242, %v2166
      %2199 = vst.msk [vmem:[#allocation2 + $0xf0] sm:$0xff] %vm242, %v2167
      %2200 = vst.msk [vmem:[#allocation2 + $0xf8] sm:$0xff] %vm242, %v2168
      %v2201 = vld [vmem:[%s1850] sm:$0xf]
      %v2202 = vld [vmem:[%s1850 + $0x4] sm:$0xf]
      %v2203 = vld [vmem:[%s1850 + $0x8] sm:$0x1]
      %v2204 = vld [vmem:[%s1850 + $0xc] sm:$0xf]
      %v2205 = vld [vmem:[%s1850 + $0x10] sm:$0xf]
      %v2206 = vld [vmem:[%s1850 + $0x14] sm:$0x1]
      %v2207 = vld [vmem:[%s1850 + $0x18] sm:$0xf]
      %v2208 = vld [vmem:[%s1850 + $0x1c] sm:$0xf]
      %v2209 = vld [vmem:[%s1850 + $0x20] sm:$0x1]
      %v2210 = vld [vmem:[%s1850 + $0x24] sm:$0xf]
      %v2211 = vld [vmem:[%s1850 + $0x28] sm:$0xf]
      %v2212 = vld [vmem:[%s1850 + $0x2c] sm:$0x1]
      %v2213 = vld [vmem:[%s1850 + $0x30] sm:$0xf]
      %v2214 = vld [vmem:[%s1850 + $0x34] sm:$0xf]
      %v2215 = vld [vmem:[%s1850 + $0x38] sm:$0x1]
      %v2216 = vld [vmem:[%s1850 + $0x3c] sm:$0xf]
      %v2217 = vld [vmem:[%s1850 + $0x40] sm:$0xf]
      %v2218 = vld [vmem:[%s1850 + $0x44] sm:$0x1]
      %v2219 = vld [vmem:[%s1850 + $0x48] sm:$0xf]
      %v2220 = vld [vmem:[%s1850 + $0x4c] sm:$0xf]
      %v2221 = vld [vmem:[%s1850 + $0x50] sm:$0x1]
      %v2222 = vld [vmem:[%s1850 + $0x54] sm:$0xf]
      %v2223 = vld [vmem:[%s1850 + $0x58] sm:$0xf]
      %v2224 = vld [vmem:[%s1850 + $0x5c] sm:$0x1]
      %v2225 = vld [vmem:[%s1850 + $0x60] sm:$0xf]
      %v2226 = vld [vmem:[%s1850 + $0x64] sm:$0xf]
      %v2227 = vld [vmem:[%s1850 + $0x68] sm:$0x1]
      %v2228 = vld [vmem:[%s1850 + $0x6c] sm:$0xf]
      %v2229 = vld [vmem:[%s1850 + $0x70] sm:$0xf]
      %v2230 = vld [vmem:[%s1850 + $0x74] sm:$0x1]
      %v2231 = vld [vmem:[%s1850 + $0x78] sm:$0xf]
      %v2232 = vld [vmem:[%s1850 + $0x7c] sm:$0xf]
      %v2233 = vld [vmem:[%s1850 + $0x80] sm:$0x1]
      %v2234 = vld [vmem:[%s1850 + $0x84] sm:$0xf]
      %v2235 = vld [vmem:[%s1850 + $0x88] sm:$0xf]
      %v2236 = vld [vmem:[%s1850 + $0x8c] sm:$0x1]
      %v2237 = vld [vmem:[%s1850 + $0x90] sm:$0xf]
      %v2238 = vld [vmem:[%s1850 + $0x94] sm:$0xf]
      %v2239 = vld [vmem:[%s1850 + $0x98] sm:$0x1]
      %v2240 = vld [vmem:[%s1850 + $0x9c] sm:$0xf]
      %v2241 = vld [vmem:[%s1850 + $0xa0] sm:$0xf]
      %v2242 = vld [vmem:[%s1850 + $0xa4] sm:$0x1]
      %v2243 = vld [vmem:[%s1850 + $0xa8] sm:$0xf]
      %v2244 = vld [vmem:[%s1850 + $0xac] sm:$0xf]
      %v2245 = vld [vmem:[%s1850 + $0xb0] sm:$0x1]
      %v2246 = vld [vmem:[%s1850 + $0xb4] sm:$0xf]
      %v2247 = vld [vmem:[%s1850 + $0xb8] sm:$0xf]
      %v2248 = vld [vmem:[%s1850 + $0xbc] sm:$0x1]
      %v2250 = vshrl.u32 %v2201, 16
      %v2252 = vrot.slane %v2250, 4
      %v2253 = vshll.u32 %v2201, 16
      %v2255 = vrot.slane %v2253, 5
      %v2256 = vor.u32 %v2252, %v2255
      %v2257 = vrot.slane %v2256, 4
      %v2259 = vshll.u32 %v2202, 16
      %v2261 = vrot.slane %v2259, 5
      %v2262 = vsel %vm679, %v2257, %v2261
      %v2263 = vshrl.u32 %v2202, 16
      %v2265 = vrot.slane %v2263, 4
      %v2266 = vor.u32 %v2265, %v2261
      %v2267 = vrot.slane %v2266, 4
      %v2269 = vshll.u32 %v2203, 16
      %v2271 = vrot.slane %v2269, 5
      %v2272 = vsel %vm679, %v2267, %v2271
      %v2274 = vshrl.u32 %v2204, 16
      %v2276 = vrot.slane %v2274, 4
      %v2277 = vshll.u32 %v2204, 16
      %v2279 = vrot.slane %v2277, 5
      %v2280 = vor.u32 %v2276, %v2279
      %v2281 = vrot.slane %v2280, 4
      %v2283 = vshll.u32 %v2205, 16
      %v2285 = vrot.slane %v2283, 5
      %v2286 = vsel %vm679, %v2281, %v2285
      %v2287 = vshrl.u32 %v2205, 16
      %v2289 = vrot.slane %v2287, 4
      %v2290 = vor.u32 %v2289, %v2285
      %v2291 = vrot.slane %v2290, 4
      %v2293 = vshll.u32 %v2206, 16
      %v2295 = vrot.slane %v2293, 5
      %v2296 = vsel %vm679, %v2291, %v2295
      %v2298 = vshrl.u32 %v2207, 16
      %v2300 = vrot.slane %v2298, 4
      %v2301 = vshll.u32 %v2207, 16
      %v2303 = vrot.slane %v2301, 5
      %v2304 = vor.u32 %v2300, %v2303
      %v2305 = vrot.slane %v2304, 4
      %v2307 = vshll.u32 %v2208, 16
      %v2309 = vrot.slane %v2307, 5
      %v2310 = vsel %vm679, %v2305, %v2309
      %v2311 = vshrl.u32 %v2208, 16
      %v2313 = vrot.slane %v2311, 4
      %v2314 = vor.u32 %v2313, %v2309
      %v2315 = vrot.slane %v2314, 4
      %v2317 = vshll.u32 %v2209, 16
      %v2319 = vrot.slane %v2317, 5
      %v2320 = vsel %vm679, %v2315, %v2319
      %v2322 = vshrl.u32 %v2210, 16
      %v2324 = vrot.slane %v2322, 4
      %v2325 = vshll.u32 %v2210, 16
      %v2327 = vrot.slane %v2325, 5
      %v2328 = vor.u32 %v2324, %v2327
      %v2329 = vrot.slane %v2328, 4
      %v2331 = vshll.u32 %v2211, 16
      %v2333 = vrot.slane %v2331, 5
      %v2334 = vsel %vm679, %v2329, %v2333
      %v2335 = vshrl.u32 %v2211, 16
      %v2337 = vrot.slane %v2335, 4
      %v2338 = vor.u32 %v2337, %v2333
      %v2339 = vrot.slane %v2338, 4
      %v2341 = vshll.u32 %v2212, 16
      %v2343 = vrot.slane %v2341, 5
      %v2344 = vsel %vm679, %v2339, %v2343
      %v2346 = vshrl.u32 %v2213, 16
      %v2348 = vrot.slane %v2346, 4
      %v2349 = vshll.u32 %v2213, 16
      %v2351 = vrot.slane %v2349, 5
      %v2352 = vor.u32 %v2348, %v2351
      %v2353 = vrot.slane %v2352, 4
      %v2355 = vshll.u32 %v2214, 16
      %v2357 = vrot.slane %v2355, 5
      %v2358 = vsel %vm679, %v2353, %v2357
      %v2359 = vshrl.u32 %v2214, 16
      %v2361 = vrot.slane %v2359, 4
      %v2362 = vor.u32 %v2361, %v2357
      %v2363 = vrot.slane %v2362, 4
      %v2365 = vshll.u32 %v2215, 16
      %v2367 = vrot.slane %v2365, 5
      %v2368 = vsel %vm679, %v2363, %v2367
      %v2370 = vshrl.u32 %v2216, 16
      %v2372 = vrot.slane %v2370, 4
      %v2373 = vshll.u32 %v2216, 16
      %v2375 = vrot.slane %v2373, 5
      %v2376 = vor.u32 %v2372, %v2375
      %v2377 = vrot.slane %v2376, 4
      %v2379 = vshll.u32 %v2217, 16
      %v2381 = vrot.slane %v2379, 5
      %v2382 = vsel %vm679, %v2377, %v2381
      %v2383 = vshrl.u32 %v2217, 16
      %v2385 = vrot.slane %v2383, 4
      %v2386 = vor.u32 %v2385, %v2381
      %v2387 = vrot.slane %v2386, 4
      %v2389 = vshll.u32 %v2218, 16
      %v2391 = vrot.slane %v2389, 5
      %v2392 = vsel %vm679, %v2387, %v2391
      %v2394 = vshrl.u32 %v2219, 16
      %v2396 = vrot.slane %v2394, 4
      %v2397 = vshll.u32 %v2219, 16
      %v2399 = vrot.slane %v2397, 5
      %v2400 = vor.u32 %v2396, %v2399
      %v2401 = vrot.slane %v2400, 4
      %v2403 = vshll.u32 %v2220, 16
      %v2405 = vrot.slane %v2403, 5
      %v2406 = vsel %vm679, %v2401, %v2405
      %v2407 = vshrl.u32 %v2220, 16
      %v2409 = vrot.slane %v2407, 4
      %v2410 = vor.u32 %v2409, %v2405
      %v2411 = vrot.slane %v2410, 4
      %v2413 = vshll.u32 %v2221, 16
      %v2415 = vrot.slane %v2413, 5
      %v2416 = vsel %vm679, %v2411, %v2415
      %v2418 = vshrl.u32 %v2222, 16
      %v2420 = vrot.slane %v2418, 4
      %v2421 = vshll.u32 %v2222, 16
      %v2423 = vrot.slane %v2421, 5
      %v2424 = vor.u32 %v2420, %v2423
      %v2425 = vrot.slane %v2424, 4
      %v2427 = vshll.u32 %v2223, 16
      %v2429 = vrot.slane %v2427, 5
      %v2430 = vsel %vm679, %v2425, %v2429
      %v2431 = vshrl.u32 %v2223, 16
      %v2433 = vrot.slane %v2431, 4
      %v2434 = vor.u32 %v2433, %v2429
      %v2435 = vrot.slane %v2434, 4
      %v2437 = vshll.u32 %v2224, 16
      %v2439 = vrot.slane %v2437, 5
      %v2440 = vsel %vm679, %v2435, %v2439
      %v2442 = vshrl.u32 %v2225, 16
      %v2444 = vrot.slane %v2442, 4
      %v2445 = vshll.u32 %v2225, 16
      %v2447 = vrot.slane %v2445, 5
      %v2448 = vor.u32 %v2444, %v2447
      %v2449 = vrot.slane %v2448, 4
      %v2451 = vshll.u32 %v2226, 16
      %v2453 = vrot.slane %v2451, 5
      %v2454 = vsel %vm679, %v2449, %v2453
      %v2455 = vshrl.u32 %v2226, 16
      %v2457 = vrot.slane %v2455, 4
      %v2458 = vor.u32 %v2457, %v2453
      %v2459 = vrot.slane %v2458, 4
      %v2461 = vshll.u32 %v2227, 16
      %v2463 = vrot.slane %v2461, 5
      %v2464 = vsel %vm679, %v2459, %v2463
      %v2466 = vshrl.u32 %v2228, 16
      %v2468 = vrot.slane %v2466, 4
      %v2469 = vshll.u32 %v2228, 16
      %v2471 = vrot.slane %v2469, 5
      %v2472 = vor.u32 %v2468, %v2471
      %v2473 = vrot.slane %v2472, 4
      %v2475 = vshll.u32 %v2229, 16
      %v2477 = vrot.slane %v2475, 5
      %v2478 = vsel %vm679, %v2473, %v2477
      %v2479 = vshrl.u32 %v2229, 16
      %v2481 = vrot.slane %v2479, 4
      %v2482 = vor.u32 %v2481, %v2477
      %v2483 = vrot.slane %v2482, 4
      %v2485 = vshll.u32 %v2230, 16
      %v2487 = vrot.slane %v2485, 5
      %v2488 = vsel %vm679, %v2483, %v2487
      %v2490 = vshrl.u32 %v2231, 16
      %v2492 = vrot.slane %v2490, 4
      %v2493 = vshll.u32 %v2231, 16
      %v2495 = vrot.slane %v2493, 5
      %v2496 = vor.u32 %v2492, %v2495
      %v2497 = vrot.slane %v2496, 4
      %v2499 = vshll.u32 %v2232, 16
      %v2501 = vrot.slane %v2499, 5
      %v2502 = vsel %vm679, %v2497, %v2501
      %v2503 = vshrl.u32 %v2232, 16
      %v2505 = vrot.slane %v2503, 4
      %v2506 = vor.u32 %v2505, %v2501
      %v2507 = vrot.slane %v2506, 4
      %v2509 = vshll.u32 %v2233, 16
      %v2511 = vrot.slane %v2509, 5
      %v2512 = vsel %vm679, %v2507, %v2511
      %v2514 = vshrl.u32 %v2234, 16
      %v2516 = vrot.slane %v2514, 4
      %v2517 = vshll.u32 %v2234, 16
      %v2519 = vrot.slane %v2517, 5
      %v2520 = vor.u32 %v2516, %v2519
      %v2521 = vrot.slane %v2520, 4
      %v2523 = vshll.u32 %v2235, 16
      %v2525 = vrot.slane %v2523, 5
      %v2526 = vsel %vm679, %v2521, %v2525
      %v2527 = vshrl.u32 %v2235, 16
      %v2529 = vrot.slane %v2527, 4
      %v2530 = vor.u32 %v2529, %v2525
      %v2531 = vrot.slane %v2530, 4
      %v2533 = vshll.u32 %v2236, 16
      %v2535 = vrot.slane %v2533, 5
      %v2536 = vsel %vm679, %v2531, %v2535
      %v2538 = vshrl.u32 %v2237, 16
      %v2540 = vrot.slane %v2538, 4
      %v2541 = vshll.u32 %v2237, 16
      %v2543 = vrot.slane %v2541, 5
      %v2544 = vor.u32 %v2540, %v2543
      %v2545 = vrot.slane %v2544, 4
      %v2547 = vshll.u32 %v2238, 16
      %v2549 = vrot.slane %v2547, 5
      %v2550 = vsel %vm679, %v2545, %v2549
      %v2551 = vshrl.u32 %v2238, 16
      %v2553 = vrot.slane %v2551, 4
      %v2554 = vor.u32 %v2553, %v2549
      %v2555 = vrot.slane %v2554, 4
      %v2557 = vshll.u32 %v2239, 16
      %v2559 = vrot.slane %v2557, 5
      %v2560 = vsel %vm679, %v2555, %v2559
      %v2562 = vshrl.u32 %v2240, 16
      %v2564 = vrot.slane %v2562, 4
      %v2565 = vshll.u32 %v2240, 16
      %v2567 = vrot.slane %v2565, 5
      %v2568 = vor.u32 %v2564, %v2567
      %v2569 = vrot.slane %v2568, 4
      %v2571 = vshll.u32 %v2241, 16
      %v2573 = vrot.slane %v2571, 5
      %v2574 = vsel %vm679, %v2569, %v2573
      %v2575 = vshrl.u32 %v2241, 16
      %v2577 = vrot.slane %v2575, 4
      %v2578 = vor.u32 %v2577, %v2573
      %v2579 = vrot.slane %v2578, 4
      %v2581 = vshll.u32 %v2242, 16
      %v2583 = vrot.slane %v2581, 5
      %v2584 = vsel %vm679, %v2579, %v2583
      %v2586 = vshrl.u32 %v2243, 16
      %v2588 = vrot.slane %v2586, 4
      %v2589 = vshll.u32 %v2243, 16
      %v2591 = vrot.slane %v2589, 5
      %v2592 = vor.u32 %v2588, %v2591
      %v2593 = vrot.slane %v2592, 4
      %v2595 = vshll.u32 %v2244, 16
      %v2597 = vrot.slane %v2595, 5
      %v2598 = vsel %vm679, %v2593, %v2597
      %v2599 = vshrl.u32 %v2244, 16
      %v2601 = vrot.slane %v2599, 4
      %v2602 = vor.u32 %v2601, %v2597
      %v2603 = vrot.slane %v2602, 4
      %v2605 = vshll.u32 %v2245, 16
      %v2607 = vrot.slane %v2605, 5
      %v2608 = vsel %vm679, %v2603, %v2607
      %v2610 = vshrl.u32 %v2246, 16
      %v2612 = vrot.slane %v2610, 4
      %v2613 = vshll.u32 %v2246, 16
      %v2615 = vrot.slane %v2613, 5
      %v2616 = vor.u32 %v2612, %v2615
      %v2617 = vrot.slane %v2616, 4
      %v2619 = vshll.u32 %v2247, 16
      %v2621 = vrot.slane %v2619, 5
      %v2622 = vsel %vm679, %v2617, %v2621
      %v2623 = vshrl.u32 %v2247, 16
      %v2625 = vrot.slane %v2623, 4
      %v2626 = vor.u32 %v2625, %v2621
      %v2627 = vrot.slane %v2626, 4
      %v2629 = vshll.u32 %v2248, 16
      %v2631 = vrot.slane %v2629, 5
      %v2632 = vsel %vm679, %v2627, %v2631
      %v2633 = vld [vmem:[#allocation2] sm:$0xff]
      %v2634 = vld [vmem:[#allocation2 + $0x8] sm:$0xff]
      %v2635 = vld [vmem:[#allocation2 + $0x10] sm:$0xff]
      %v2636 = vld [vmem:[#allocation2 + $0x18] sm:$0xff]
      %v2637 = vld [vmem:[#allocation2 + $0x20] sm:$0xff]
      %v2638 = vld [vmem:[#allocation2 + $0x28] sm:$0xff]
      %v2639 = vld [vmem:[#allocation2 + $0x30] sm:$0xff]
      %v2640 = vld [vmem:[#allocation2 + $0x38] sm:$0xff]
      %v2641 = vld [vmem:[#allocation2 + $0x40] sm:$0xff]
      %v2642 = vld [vmem:[#allocation2 + $0x48] sm:$0xff]
      %v2643 = vld [vmem:[#allocation2 + $0x50] sm:$0xff]
      %v2644 = vld [vmem:[#allocation2 + $0x58] sm:$0xff]
      %v2645 = vld [vmem:[#allocation2 + $0x60] sm:$0xff]
      %v2646 = vld [vmem:[#allocation2 + $0x68] sm:$0xff]
      %v2647 = vld [vmem:[#allocation2 + $0x70] sm:$0xff]
      %v2648 = vld [vmem:[#allocation2 + $0x78] sm:$0xff]
      %v2649 = vld [vmem:[#allocation2 + $0x80] sm:$0xff]
      %v2650 = vld [vmem:[#allocation2 + $0x88] sm:$0xff]
      %v2651 = vld [vmem:[#allocation2 + $0x90] sm:$0xff]
      %v2652 = vld [vmem:[#allocation2 + $0x98] sm:$0xff]
      %v2653 = vld [vmem:[#allocation2 + $0xa0] sm:$0xff]
      %v2654 = vld [vmem:[#allocation2 + $0xa8] sm:$0xff]
      %v2655 = vld [vmem:[#allocation2 + $0xb0] sm:$0xff]
      %v2656 = vld [vmem:[#allocation2 + $0xb8] sm:$0xff]
      %v2657 = vld [vmem:[#allocation2 + $0xc0] sm:$0xff]
      %v2658 = vld [vmem:[#allocation2 + $0xc8] sm:$0xff]
      %v2659 = vld [vmem:[#allocation2 + $0xd0] sm:$0xff]
      %v2660 = vld [vmem:[#allocation2 + $0xd8] sm:$0xff]
      %v2661 = vld [vmem:[#allocation2 + $0xe0] sm:$0xff]
      %v2662 = vld [vmem:[#allocation2 + $0xe8] sm:$0xff]
      %v2663 = vld [vmem:[#allocation2 + $0xf0] sm:$0xff]
      %v2664 = vld [vmem:[#allocation2 + $0xf8] sm:$0xff]
      %s2665 = scalar_lea.vmem %s223, 8
      %v2666 = vld [vmem:[%s2665] sm:$0x3]
      %v2667 = vunpack.c.l.b16 %v2262
      %v2668 = vunpack.c.l.b16 %v2272
      %v2669 = vunpack.c.l.b16 %v2286
      %v2670 = vunpack.c.l.b16 %v2296
      %v2671 = vunpack.c.l.b16 %v2310
      %v2672 = vunpack.c.l.b16 %v2320
      %v2673 = vunpack.c.l.b16 %v2334
      %v2674 = vunpack.c.l.b16 %v2344
      %v2675 = vunpack.c.l.b16 %v2358
      %v2676 = vunpack.c.l.b16 %v2368
      %v2677 = vunpack.c.l.b16 %v2382
      %v2678 = vunpack.c.l.b16 %v2392
      %v2679 = vunpack.c.l.b16 %v2406
      %v2680 = vunpack.c.l.b16 %v2416
      %v2681 = vunpack.c.l.b16 %v2430
      %v2682 = vunpack.c.l.b16 %v2440
      %v2683 = vunpack.c.l.b16 %v2454
      %v2684 = vunpack.c.l.b16 %v2464
      %v2685 = vunpack.c.l.b16 %v2478
      %v2686 = vunpack.c.l.b16 %v2488
      %v2687 = vunpack.c.l.b16 %v2502
      %v2688 = vunpack.c.l.b16 %v2512
      %v2689 = vunpack.c.l.b16 %v2526
      %v2690 = vunpack.c.l.b16 %v2536
      %v2691 = vunpack.c.l.b16 %v2550
      %v2692 = vunpack.c.l.b16 %v2560
      %v2693 = vunpack.c.l.b16 %v2574
      %v2694 = vunpack.c.l.b16 %v2584
      %v2695 = vunpack.c.l.b16 %v2598
      %v2696 = vunpack.c.l.b16 %v2608
      %v2697 = vunpack.c.l.b16 %v2622
      %v2698 = vunpack.c.l.b16 %v2632
      %v2699 = vpack.c.b16 %v2668, %v2667
      %v2700 = vpack.c.b16 %v2670, %v2669
      %v2701 = vpack.c.b16 %v2672, %v2671
      %v2702 = vpack.c.b16 %v2674, %v2673
      %v2703 = vpack.c.b16 %v2676, %v2675
      %v2704 = vpack.c.b16 %v2678, %v2677
      %v2705 = vpack.c.b16 %v2680, %v2679
      %v2706 = vpack.c.b16 %v2682, %v2681
      %v2707 = vpack.c.b16 %v2684, %v2683
      %v2708 = vpack.c.b16 %v2686, %v2685
      %v2709 = vpack.c.b16 %v2688, %v2687
      %v2710 = vpack.c.b16 %v2690, %v2689
      %v2711 = vpack.c.b16 %v2692, %v2691
      %v2712 = vpack.c.b16 %v2694, %v2693
      %v2713 = vpack.c.b16 %v2696, %v2695
      %v2714 = vpack.c.b16 %v2698, %v2697
      %v2716 = vsel %vm423, %v2699, 0
      %v2719 = vsel %vm423, %v2700, 0
      %v2722 = vsel %vm423, %v2701, 0
      %v2725 = vsel %vm423, %v2702, 0
      %v2728 = vsel %vm423, %v2703, 0
      %v2731 = vsel %vm423, %v2704, 0
      %v2734 = vsel %vm423, %v2705, 0
      %v2737 = vsel %vm423, %v2706, 0
      %v2740 = vsel %vm423, %v2707, 0
      %v2743 = vsel %vm423, %v2708, 0
      %v2746 = vsel %vm423, %v2709, 0
      %v2749 = vsel %vm423, %v2710, 0
      %v2752 = vsel %vm423, %v2711, 0
      %v2755 = vsel %vm423, %v2712, 0
      %v2758 = vsel %vm423, %v2713, 0
      %v2761 = vsel %vm423, %v2714, 0
      %v2764 = vsel %vm472, %v2666, 0
      %2766 = vmatpush.bf16.msra.mxu0 0
      %2767 = vmatpush.bf16.msra.mxu0 0
      %2768 = vmatpush.bf16.msra.mxu0 0
      %2769 = vmatpush.bf16.msra.mxu0 0
      %2770 = vmatpush.bf16.msra.mxu0 0
      %2771 = vmatpush.bf16.msra.mxu0 0
      %2772 = vmatpush.bf16.msra.mxu0 0
      %2773 = vmatpush.bf16.msra.mxu0 %v2764
      %2774 = vmatmul.bf16.gmra.mxu0 %v2716
      %v2775 = vpop.f32.mrf.mxu0
      %v2776 = vadd.f32 0.0, %v2775
      %v2777 = vpop.f32.mrf.mxu0
      %v2778 = vadd.f32 0.0, %v2777
      %2779 = vmatmul.bf16.gmra.mxu0 %v2719
      %v2780 = vpop.f32.mrf.mxu0
      %v2781 = vadd.f32 0.0, %v2780
      %v2782 = vpop.f32.mrf.mxu0
      %v2783 = vadd.f32 0.0, %v2782
      %2784 = vmatmul.bf16.gmra.mxu0 %v2722
      %v2785 = vpop.f32.mrf.mxu0
      %v2786 = vadd.f32 0.0, %v2785
      %v2787 = vpop.f32.mrf.mxu0
      %v2788 = vadd.f32 0.0, %v2787
      %2789 = vmatmul.bf16.gmra.mxu0 %v2725
      %v2790 = vpop.f32.mrf.mxu0
      %v2791 = vadd.f32 0.0, %v2790
      %v2792 = vpop.f32.mrf.mxu0
      %v2793 = vadd.f32 0.0, %v2792
      %2794 = vmatmul.bf16.gmra.mxu0 %v2728
      %v2795 = vpop.f32.mrf.mxu0
      %v2796 = vadd.f32 0.0, %v2795
      %v2797 = vpop.f32.mrf.mxu0
      %v2798 = vadd.f32 0.0, %v2797
      %2799 = vmatmul.bf16.gmra.mxu0 %v2731
      %v2800 = vpop.f32.mrf.mxu0
      %v2801 = vadd.f32 0.0, %v2800
      %v2802 = vpop.f32.mrf.mxu0
      %v2803 = vadd.f32 0.0, %v2802
      %2804 = vmatmul.bf16.gmra.mxu0 %v2734
      %v2805 = vpop.f32.mrf.mxu0
      %v2806 = vadd.f32 0.0, %v2805
      %v2807 = vpop.f32.mrf.mxu0
      %v2808 = vadd.f32 0.0, %v2807
      %2809 = vmatmul.bf16.gmra.mxu0 %v2737
      %v2810 = vpop.f32.mrf.mxu0
      %v2811 = vadd.f32 0.0, %v2810
      %v2812 = vpop.f32.mrf.mxu0
      %v2813 = vadd.f32 0.0, %v2812
      %2814 = vmatmul.bf16.gmra.mxu0 %v2740
      %v2815 = vpop.f32.mrf.mxu0
      %v2816 = vadd.f32 0.0, %v2815
      %v2817 = vpop.f32.mrf.mxu0
      %v2818 = vadd.f32 0.0, %v2817
      %2819 = vmatmul.bf16.gmra.mxu0 %v2743
      %v2820 = vpop.f32.mrf.mxu0
      %v2821 = vadd.f32 0.0, %v2820
      %v2822 = vpop.f32.mrf.mxu0
      %v2823 = vadd.f32 0.0, %v2822
      %2824 = vmatmul.bf16.gmra.mxu0 %v2746
      %v2825 = vpop.f32.mrf.mxu0
      %v2826 = vadd.f32 0.0, %v2825
      %v2827 = vpop.f32.mrf.mxu0
      %v2828 = vadd.f32 0.0, %v2827
      %2829 = vmatmul.bf16.gmra.mxu0 %v2749
      %v2830 = vpop.f32.mrf.mxu0
      %v2831 = vadd.f32 0.0, %v2830
      %v2832 = vpop.f32.mrf.mxu0
      %v2833 = vadd.f32 0.0, %v2832
      %2834 = vmatmul.bf16.gmra.mxu0 %v2752
      %v2835 = vpop.f32.mrf.mxu0
      %v2836 = vadd.f32 0.0, %v2835
      %v2837 = vpop.f32.mrf.mxu0
      %v2838 = vadd.f32 0.0, %v2837
      %2839 = vmatmul.bf16.gmra.mxu0 %v2755
      %v2840 = vpop.f32.mrf.mxu0
      %v2841 = vadd.f32 0.0, %v2840
      %v2842 = vpop.f32.mrf.mxu0
      %v2843 = vadd.f32 0.0, %v2842
      %2844 = vmatmul.bf16.gmra.mxu0 %v2758
      %v2845 = vpop.f32.mrf.mxu0
      %v2846 = vadd.f32 0.0, %v2845
      %v2847 = vpop.f32.mrf.mxu0
      %v2848 = vadd.f32 0.0, %v2847
      %2849 = vmatmul.bf16.gmra.mxu0 %v2761
      %v2850 = vpop.f32.mrf.mxu0
      %v2851 = vadd.f32 0.0, %v2850
      %v2852 = vpop.f32.mrf.mxu0
      %v2853 = vadd.f32 0.0, %v2852
      %2854 = vdwg.mxu0
      %v2855 = vadd.f32 %v2633, %v2776
      %v2856 = vadd.f32 %v2634, %v2778
      %v2857 = vadd.f32 %v2635, %v2781
      %v2858 = vadd.f32 %v2636, %v2783
      %v2859 = vadd.f32 %v2637, %v2786
      %v2860 = vadd.f32 %v2638, %v2788
      %v2861 = vadd.f32 %v2639, %v2791
      %v2862 = vadd.f32 %v2640, %v2793
      %v2863 = vadd.f32 %v2641, %v2796
      %v2864 = vadd.f32 %v2642, %v2798
      %v2865 = vadd.f32 %v2643, %v2801
      %v2866 = vadd.f32 %v2644, %v2803
      %v2867 = vadd.f32 %v2645, %v2806
      %v2868 = vadd.f32 %v2646, %v2808
      %v2869 = vadd.f32 %v2647, %v2811
      %v2870 = vadd.f32 %v2648, %v2813
      %v2871 = vadd.f32 %v2649, %v2816
      %v2872 = vadd.f32 %v2650, %v2818
      %v2873 = vadd.f32 %v2651, %v2821
      %v2874 = vadd.f32 %v2652, %v2823
      %v2875 = vadd.f32 %v2653, %v2826
      %v2876 = vadd.f32 %v2654, %v2828
      %v2877 = vadd.f32 %v2655, %v2831
      %v2878 = vadd.f32 %v2656, %v2833
      %v2879 = vadd.f32 %v2657, %v2836
      %v2880 = vadd.f32 %v2658, %v2838
      %v2881 = vadd.f32 %v2659, %v2841
      %v2882 = vadd.f32 %v2660, %v2843
      %v2883 = vadd.f32 %v2661, %v2846
      %v2884 = vadd.f32 %v2662, %v2848
      %v2885 = vadd.f32 %v2663, %v2851
      %v2886 = vadd.f32 %v2664, %v2853
      %2887 = vst.msk [vmem:[#allocation2] sm:$0xff] %vm242, %v2855
      %2888 = vst.msk [vmem:[#allocation2 + $0x8] sm:$0xff] %vm242, %v2856
      %2889 = vst.msk [vmem:[#allocation2 + $0x10] sm:$0xff] %vm242, %v2857
      %2890 = vst.msk [vmem:[#allocation2 + $0x18] sm:$0xff] %vm242, %v2858
      %2891 = vst.msk [vmem:[#allocation2 + $0x20] sm:$0xff] %vm242, %v2859
      %2892 = vst.msk [vmem:[#allocation2 + $0x28] sm:$0xff] %vm242, %v2860
      %2893 = vst.msk [vmem:[#allocation2 + $0x30] sm:$0xff] %vm242, %v2861
      %2894 = vst.msk [vmem:[#allocation2 + $0x38] sm:$0xff] %vm242, %v2862
      %2895 = vst.msk [vmem:[#allocation2 + $0x40] sm:$0xff] %vm242, %v2863
      %2896 = vst.msk [vmem:[#allocation2 + $0x48] sm:$0xff] %vm242, %v2864
      %2897 = vst.msk [vmem:[#allocation2 + $0x50] sm:$0xff] %vm242, %v2865
      %2898 = vst.msk [vmem:[#allocation2 + $0x58] sm:$0xff] %vm242, %v2866
      %2899 = vst.msk [vmem:[#allocation2 + $0x60] sm:$0xff] %vm242, %v2867
      %2900 = vst.msk [vmem:[#allocation2 + $0x68] sm:$0xff] %vm242, %v2868
      %2901 = vst.msk [vmem:[#allocation2 + $0x70] sm:$0xff] %vm242, %v2869
      %2902 = vst.msk [vmem:[#allocation2 + $0x78] sm:$0xff] %vm242, %v2870
      %2903 = vst.msk [vmem:[#allocation2 + $0x80] sm:$0xff] %vm242, %v2871
      %2904 = vst.msk [vmem:[#allocation2 + $0x88] sm:$0xff] %vm242, %v2872
      %2905 = vst.msk [vmem:[#allocation2 + $0x90] sm:$0xff] %vm242, %v2873
      %2906 = vst.msk [vmem:[#allocation2 + $0x98] sm:$0xff] %vm242, %v2874
      %2907 = vst.msk [vmem:[#allocation2 + $0xa0] sm:$0xff] %vm242, %v2875
      %2908 = vst.msk [vmem:[#allocation2 + $0xa8] sm:$0xff] %vm242, %v2876
      %2909 = vst.msk [vmem:[#allocation2 + $0xb0] sm:$0xff] %vm242, %v2877
      %2910 = vst.msk [vmem:[#allocation2 + $0xb8] sm:$0xff] %vm242, %v2878
      %2911 = vst.msk [vmem:[#allocation2 + $0xc0] sm:$0xff] %vm242, %v2879
      %2912 = vst.msk [vmem:[#allocation2 + $0xc8] sm:$0xff] %vm242, %v2880
      %2913 = vst.msk [vmem:[#allocation2 + $0xd0] sm:$0xff] %vm242, %v2881
      %2914 = vst.msk [vmem:[#allocation2 + $0xd8] sm:$0xff] %vm242, %v2882
      %2915 = vst.msk [vmem:[#allocation2 + $0xe0] sm:$0xff] %vm242, %v2883
      %2916 = vst.msk [vmem:[#allocation2 + $0xe8] sm:$0xff] %vm242, %v2884
      %2917 = vst.msk [vmem:[#allocation2 + $0xf0] sm:$0xff] %vm242, %v2885
      %2918 = vst.msk [vmem:[#allocation2 + $0xf8] sm:$0xff] %vm242, %v2886
      %v2919 = vld [vmem:[%s1850] sm:$0xe]
      %v2920 = vld [vmem:[%s1850 + $0x4] sm:$0xf]
      %v2921 = vld [vmem:[%s1850 + $0x8] sm:$0x1]
      %v2922 = vld [vmem:[%s1850 + $0xc] sm:$0xe]
      %v2923 = vld [vmem:[%s1850 + $0x10] sm:$0xf]
      %v2924 = vld [vmem:[%s1850 + $0x14] sm:$0x1]
      %v2925 = vld [vmem:[%s1850 + $0x18] sm:$0xe]
      %v2926 = vld [vmem:[%s1850 + $0x1c] sm:$0xf]
      %v2927 = vld [vmem:[%s1850 + $0x20] sm:$0x1]
      %v2928 = vld [vmem:[%s1850 + $0x24] sm:$0xe]
      %v2929 = vld [vmem:[%s1850 + $0x28] sm:$0xf]
      %v2930 = vld [vmem:[%s1850 + $0x2c] sm:$0x1]
      %v2931 = vld [vmem:[%s1850 + $0x30] sm:$0xe]
      %v2932 = vld [vmem:[%s1850 + $0x34] sm:$0xf]
      %v2933 = vld [vmem:[%s1850 + $0x38] sm:$0x1]
      %v2934 = vld [vmem:[%s1850 + $0x3c] sm:$0xe]
      %v2935 = vld [vmem:[%s1850 + $0x40] sm:$0xf]
      %v2936 = vld [vmem:[%s1850 + $0x44] sm:$0x1]
      %v2937 = vld [vmem:[%s1850 + $0x48] sm:$0xe]
      %v2938 = vld [vmem:[%s1850 + $0x4c] sm:$0xf]
      %v2939 = vld [vmem:[%s1850 + $0x50] sm:$0x1]
      %v2940 = vld [vmem:[%s1850 + $0x54] sm:$0xe]
      %v2941 = vld [vmem:[%s1850 + $0x58] sm:$0xf]
      %v2942 = vld [vmem:[%s1850 + $0x5c] sm:$0x1]
      %v2943 = vld [vmem:[%s1850 + $0x60] sm:$0xe]
      %v2944 = vld [vmem:[%s1850 + $0x64] sm:$0xf]
      %v2945 = vld [vmem:[%s1850 + $0x68] sm:$0x1]
      %v2946 = vld [vmem:[%s1850 + $0x6c] sm:$0xe]
      %v2947 = vld [vmem:[%s1850 + $0x70] sm:$0xf]
      %v2948 = vld [vmem:[%s1850 + $0x74] sm:$0x1]
      %v2949 = vld [vmem:[%s1850 + $0x78] sm:$0xe]
      %v2950 = vld [vmem:[%s1850 + $0x7c] sm:$0xf]
      %v2951 = vld [vmem:[%s1850 + $0x80] sm:$0x1]
      %v2952 = vld [vmem:[%s1850 + $0x84] sm:$0xe]
      %v2953 = vld [vmem:[%s1850 + $0x88] sm:$0xf]
      %v2954 = vld [vmem:[%s1850 + $0x8c] sm:$0x1]
      %v2955 = vld [vmem:[%s1850 + $0x90] sm:$0xe]
      %v2956 = vld [vmem:[%s1850 + $0x94] sm:$0xf]
      %v2957 = vld [vmem:[%s1850 + $0x98] sm:$0x1]
      %v2958 = vld [vmem:[%s1850 + $0x9c] sm:$0xe]
      %v2959 = vld [vmem:[%s1850 + $0xa0] sm:$0xf]
      %v2960 = vld [vmem:[%s1850 + $0xa4] sm:$0x1]
      %v2961 = vld [vmem:[%s1850 + $0xa8] sm:$0xe]
      %v2962 = vld [vmem:[%s1850 + $0xac] sm:$0xf]
      %v2963 = vld [vmem:[%s1850 + $0xb0] sm:$0x1]
      %v2964 = vld [vmem:[%s1850 + $0xb4] sm:$0xe]
      %v2965 = vld [vmem:[%s1850 + $0xb8] sm:$0xf]
      %v2966 = vld [vmem:[%s1850 + $0xbc] sm:$0x1]
      %v3015 = vrot.slane %v2919, 5
      %v3016 = vrot.slane %v3015, 4
      %v3017 = vrot.slane %v2920, 5
      %v3018 = vsel %vm1448, %v3016, %v3017
      %v3019 = vrot.slane %v3017, 4
      %v3020 = vrot.slane %v2921, 5
      %v3021 = vsel %vm1448, %v3019, %v3020
      %v3022 = vrot.slane %v2922, 5
      %v3023 = vrot.slane %v3022, 4
      %v3024 = vrot.slane %v2923, 5
      %v3025 = vsel %vm1448, %v3023, %v3024
      %v3026 = vrot.slane %v3024, 4
      %v3027 = vrot.slane %v2924, 5
      %v3028 = vsel %vm1448, %v3026, %v3027
      %v3029 = vrot.slane %v2925, 5
      %v3030 = vrot.slane %v3029, 4
      %v3031 = vrot.slane %v2926, 5
      %v3032 = vsel %vm1448, %v3030, %v3031
      %v3033 = vrot.slane %v3031, 4
      %v3034 = vrot.slane %v2927, 5
      %v3035 = vsel %vm1448, %v3033, %v3034
      %v3036 = vrot.slane %v2928, 5
      %v3037 = vrot.slane %v3036, 4
      %v3038 = vrot.slane %v2929, 5
      %v3039 = vsel %vm1448, %v3037, %v3038
      %v3040 = vrot.slane %v3038, 4
      %v3041 = vrot.slane %v2930, 5
      %v3042 = vsel %vm1448, %v3040, %v3041
      %v3043 = vrot.slane %v2931, 5
      %v3044 = vrot.slane %v3043, 4
      %v3045 = vrot.slane %v2932, 5
      %v3046 = vsel %vm1448, %v3044, %v3045
      %v3047 = vrot.slane %v3045, 4
      %v3048 = vrot.slane %v2933, 5
      %v3049 = vsel %vm1448, %v3047, %v3048
      %v3050 = vrot.slane %v2934, 5
      %v3051 = vrot.slane %v3050, 4
      %v3052 = vrot.slane %v2935, 5
      %v3053 = vsel %vm1448, %v3051, %v3052
      %v3054 = vrot.slane %v3052, 4
      %v3055 = vrot.slane %v2936, 5
      %v3056 = vsel %vm1448, %v3054, %v3055
      %v3057 = vrot.slane %v2937, 5
      %v3058 = vrot.slane %v3057, 4
      %v3059 = vrot.slane %v2938, 5
      %v3060 = vsel %vm1448, %v3058, %v3059
      %v3061 = vrot.slane %v3059, 4
      %v3062 = vrot.slane %v2939, 5
      %v3063 = vsel %vm1448, %v3061, %v3062
      %v3064 = vrot.slane %v2940, 5
      %v3065 = vrot.slane %v3064, 4
      %v3066 = vrot.slane %v2941, 5
      %v3067 = vsel %vm1448, %v3065, %v3066
      %v3068 = vrot.slane %v3066, 4
      %v3069 = vrot.slane %v2942, 5
      %v3070 = vsel %vm1448, %v3068, %v3069
      %v3071 = vrot.slane %v2943, 5
      %v3072 = vrot.slane %v3071, 4
      %v3073 = vrot.slane %v2944, 5
      %v3074 = vsel %vm1448, %v3072, %v3073
      %v3075 = vrot.slane %v3073, 4
      %v3076 = vrot.slane %v2945, 5
      %v3077 = vsel %vm1448, %v3075, %v3076
      %v3078 = vrot.slane %v2946, 5
      %v3079 = vrot.slane %v3078, 4
      %v3080 = vrot.slane %v2947, 5
      %v3081 = vsel %vm1448, %v3079, %v3080
      %v3082 = vrot.slane %v3080, 4
      %v3083 = vrot.slane %v2948, 5
      %v3084 = vsel %vm1448, %v3082, %v3083
      %v3085 = vrot.slane %v2949, 5
      %v3086 = vrot.slane %v3085, 4
      %v3087 = vrot.slane %v2950, 5
      %v3088 = vsel %vm1448, %v3086, %v3087
      %v3089 = vrot.slane %v3087, 4
      %v3090 = vrot.slane %v2951, 5
      %v3091 = vsel %vm1448, %v3089, %v3090
      %v3092 = vrot.slane %v2952, 5
      %v3093 = vrot.slane %v3092, 4
      %v3094 = vrot.slane %v2953, 5
      %v3095 = vsel %vm1448, %v3093, %v3094
      %v3096 = vrot.slane %v3094, 4
      %v3097 = vrot.slane %v2954, 5
      %v3098 = vsel %vm1448, %v3096, %v3097
      %v3099 = vrot.slane %v2955, 5
      %v3100 = vrot.slane %v3099, 4
      %v3101 = vrot.slane %v2956, 5
      %v3102 = vsel %vm1448, %v3100, %v3101
      %v3103 = vrot.slane %v3101, 4
      %v3104 = vrot.slane %v2957, 5
      %v3105 = vsel %vm1448, %v3103, %v3104
      %v3106 = vrot.slane %v2958, 5
      %v3107 = vrot.slane %v3106, 4
      %v3108 = vrot.slane %v2959, 5
      %v3109 = vsel %vm1448, %v3107, %v3108
      %v3110 = vrot.slane %v3108, 4
      %v3111 = vrot.slane %v2960, 5
      %v3112 = vsel %vm1448, %v3110, %v3111
      %v3113 = vrot.slane %v2961, 5
      %v3114 = vrot.slane %v3113, 4
      %v3115 = vrot.slane %v2962, 5
      %v3116 = vsel %vm1448, %v3114, %v3115
      %v3117 = vrot.slane %v3115, 4
      %v3118 = vrot.slane %v2963, 5
      %v3119 = vsel %vm1448, %v3117, %v3118
      %v3120 = vrot.slane %v2964, 5
      %v3121 = vrot.slane %v3120, 4
      %v3122 = vrot.slane %v2965, 5
      %v3123 = vsel %vm1448, %v3121, %v3122
      %v3124 = vrot.slane %v3122, 4
      %v3125 = vrot.slane %v2966, 5
      %v3126 = vsel %vm1448, %v3124, %v3125
      %v3127 = vld [vmem:[#allocation2] sm:$0xff]
      %v3128 = vld [vmem:[#allocation2 + $0x8] sm:$0xff]
      %v3129 = vld [vmem:[#allocation2 + $0x10] sm:$0xff]
      %v3130 = vld [vmem:[#allocation2 + $0x18] sm:$0xff]
      %v3131 = vld [vmem:[#allocation2 + $0x20] sm:$0xff]
      %v3132 = vld [vmem:[#allocation2 + $0x28] sm:$0xff]
      %v3133 = vld [vmem:[#allocation2 + $0x30] sm:$0xff]
      %v3134 = vld [vmem:[#allocation2 + $0x38] sm:$0xff]
      %v3135 = vld [vmem:[#allocation2 + $0x40] sm:$0xff]
      %v3136 = vld [vmem:[#allocation2 + $0x48] sm:$0xff]
      %v3137 = vld [vmem:[#allocation2 + $0x50] sm:$0xff]
      %v3138 = vld [vmem:[#allocation2 + $0x58] sm:$0xff]
      %v3139 = vld [vmem:[#allocation2 + $0x60] sm:$0xff]
      %v3140 = vld [vmem:[#allocation2 + $0x68] sm:$0xff]
      %v3141 = vld [vmem:[#allocation2 + $0x70] sm:$0xff]
      %v3142 = vld [vmem:[#allocation2 + $0x78] sm:$0xff]
      %v3143 = vld [vmem:[#allocation2 + $0x80] sm:$0xff]
      %v3144 = vld [vmem:[#allocation2 + $0x88] sm:$0xff]
      %v3145 = vld [vmem:[#allocation2 + $0x90] sm:$0xff]
      %v3146 = vld [vmem:[#allocation2 + $0x98] sm:$0xff]
      %v3147 = vld [vmem:[#allocation2 + $0xa0] sm:$0xff]
      %v3148 = vld [vmem:[#allocation2 + $0xa8] sm:$0xff]
      %v3149 = vld [vmem:[#allocation2 + $0xb0] sm:$0xff]
      %v3150 = vld [vmem:[#allocation2 + $0xb8] sm:$0xff]
      %v3151 = vld [vmem:[#allocation2 + $0xc0] sm:$0xff]
      %v3152 = vld [vmem:[#allocation2 + $0xc8] sm:$0xff]
      %v3153 = vld [vmem:[#allocation2 + $0xd0] sm:$0xff]
      %v3154 = vld [vmem:[#allocation2 + $0xd8] sm:$0xff]
      %v3155 = vld [vmem:[#allocation2 + $0xe0] sm:$0xff]
      %v3156 = vld [vmem:[#allocation2 + $0xe8] sm:$0xff]
      %v3157 = vld [vmem:[#allocation2 + $0xf0] sm:$0xff]
      %v3158 = vld [vmem:[#allocation2 + $0xf8] sm:$0xff]
      %s3159 = scalar_lea.vmem %s223, 10
      %v3160 = vld [vmem:[%s3159] sm:$0x3]
      %v3161 = vunpack.c.l.b16 %v3018
      %v3162 = vunpack.c.l.b16 %v3021
      %v3163 = vunpack.c.l.b16 %v3025
      %v3164 = vunpack.c.l.b16 %v3028
      %v3165 = vunpack.c.l.b16 %v3032
      %v3166 = vunpack.c.l.b16 %v3035
      %v3167 = vunpack.c.l.b16 %v3039
      %v3168 = vunpack.c.l.b16 %v3042
      %v3169 = vunpack.c.l.b16 %v3046
      %v3170 = vunpack.c.l.b16 %v3049
      %v3171 = vunpack.c.l.b16 %v3053
      %v3172 = vunpack.c.l.b16 %v3056
      %v3173 = vunpack.c.l.b16 %v3060
      %v3174 = vunpack.c.l.b16 %v3063
      %v3175 = vunpack.c.l.b16 %v3067
      %v3176 = vunpack.c.l.b16 %v3070
      %v3177 = vunpack.c.l.b16 %v3074
      %v3178 = vunpack.c.l.b16 %v3077
      %v3179 = vunpack.c.l.b16 %v3081
      %v3180 = vunpack.c.l.b16 %v3084
      %v3181 = vunpack.c.l.b16 %v3088
      %v3182 = vunpack.c.l.b16 %v3091
      %v3183 = vunpack.c.l.b16 %v3095
      %v3184 = vunpack.c.l.b16 %v3098
      %v3185 = vunpack.c.l.b16 %v3102
      %v3186 = vunpack.c.l.b16 %v3105
      %v3187 = vunpack.c.l.b16 %v3109
      %v3188 = vunpack.c.l.b16 %v3112
      %v3189 = vunpack.c.l.b16 %v3116
      %v3190 = vunpack.c.l.b16 %v3119
      %v3191 = vunpack.c.l.b16 %v3123
      %v3192 = vunpack.c.l.b16 %v3126
      %v3193 = vpack.c.b16 %v3162, %v3161
      %v3194 = vpack.c.b16 %v3164, %v3163
      %v3195 = vpack.c.b16 %v3166, %v3165
      %v3196 = vpack.c.b16 %v3168, %v3167
      %v3197 = vpack.c.b16 %v3170, %v3169
      %v3198 = vpack.c.b16 %v3172, %v3171
      %v3199 = vpack.c.b16 %v3174, %v3173
      %v3200 = vpack.c.b16 %v3176, %v3175
      %v3201 = vpack.c.b16 %v3178, %v3177
      %v3202 = vpack.c.b16 %v3180, %v3179
      %v3203 = vpack.c.b16 %v3182, %v3181
      %v3204 = vpack.c.b16 %v3184, %v3183
      %v3205 = vpack.c.b16 %v3186, %v3185
      %v3206 = vpack.c.b16 %v3188, %v3187
      %v3207 = vpack.c.b16 %v3190, %v3189
      %v3208 = vpack.c.b16 %v3192, %v3191
      %v3210 = vsel %vm423, %v3193, 0
      %v3213 = vsel %vm423, %v3194, 0
      %v3216 = vsel %vm423, %v3195, 0
      %v3219 = vsel %vm423, %v3196, 0
      %v3222 = vsel %vm423, %v3197, 0
      %v3225 = vsel %vm423, %v3198, 0
      %v3228 = vsel %vm423, %v3199, 0
      %v3231 = vsel %vm423, %v3200, 0
      %v3234 = vsel %vm423, %v3201, 0
      %v3237 = vsel %vm423, %v3202, 0
      %v3240 = vsel %vm423, %v3203, 0
      %v3243 = vsel %vm423, %v3204, 0
      %v3246 = vsel %vm423, %v3205, 0
      %v3249 = vsel %vm423, %v3206, 0
      %v3252 = vsel %vm423, %v3207, 0
      %v3255 = vsel %vm423, %v3208, 0
      %v3258 = vsel %vm472, %v3160, 0
      %3260 = vmatpush.bf16.msra.mxu0 0
      %3261 = vmatpush.bf16.msra.mxu0 0
      %3262 = vmatpush.bf16.msra.mxu0 0
      %3263 = vmatpush.bf16.msra.mxu0 0
      %3264 = vmatpush.bf16.msra.mxu0 0
      %3265 = vmatpush.bf16.msra.mxu0 0
      %3266 = vmatpush.bf16.msra.mxu0 0
      %3267 = vmatpush.bf16.msra.mxu0 %v3258
      %3268 = vmatmul.bf16.gmra.mxu0 %v3210
      %v3269 = vpop.f32.mrf.mxu0
      %v3270 = vadd.f32 0.0, %v3269
      %v3271 = vpop.f32.mrf.mxu0
      %v3272 = vadd.f32 0.0, %v3271
      %3273 = vmatmul.bf16.gmra.mxu0 %v3213
      %v3274 = vpop.f32.mrf.mxu0
      %v3275 = vadd.f32 0.0, %v3274
      %v3276 = vpop.f32.mrf.mxu0
      %v3277 = vadd.f32 0.0, %v3276
      %3278 = vmatmul.bf16.gmra.mxu0 %v3216
      %v3279 = vpop.f32.mrf.mxu0
      %v3280 = vadd.f32 0.0, %v3279
      %v3281 = vpop.f32.mrf.mxu0
      %v3282 = vadd.f32 0.0, %v3281
      %3283 = vmatmul.bf16.gmra.mxu0 %v3219
      %v3284 = vpop.f32.mrf.mxu0
      %v3285 = vadd.f32 0.0, %v3284
      %v3286 = vpop.f32.mrf.mxu0
      %v3287 = vadd.f32 0.0, %v3286
      %3288 = vmatmul.bf16.gmra.mxu0 %v3222
      %v3289 = vpop.f32.mrf.mxu0
      %v3290 = vadd.f32 0.0, %v3289
      %v3291 = vpop.f32.mrf.mxu0
      %v3292 = vadd.f32 0.0, %v3291
      %3293 = vmatmul.bf16.gmra.mxu0 %v3225
      %v3294 = vpop.f32.mrf.mxu0
      %v3295 = vadd.f32 0.0, %v3294
      %v3296 = vpop.f32.mrf.mxu0
      %v3297 = vadd.f32 0.0, %v3296
      %3298 = vmatmul.bf16.gmra.mxu0 %v3228
      %v3299 = vpop.f32.mrf.mxu0
      %v3300 = vadd.f32 0.0, %v3299
      %v3301 = vpop.f32.mrf.mxu0
      %v3302 = vadd.f32 0.0, %v3301
      %3303 = vmatmul.bf16.gmra.mxu0 %v3231
      %v3304 = vpop.f32.mrf.mxu0
      %v3305 = vadd.f32 0.0, %v3304
      %v3306 = vpop.f32.mrf.mxu0
      %v3307 = vadd.f32 0.0, %v3306
      %3308 = vmatmul.bf16.gmra.mxu0 %v3234
      %v3309 = vpop.f32.mrf.mxu0
      %v3310 = vadd.f32 0.0, %v3309
      %v3311 = vpop.f32.mrf.mxu0
      %v3312 = vadd.f32 0.0, %v3311
      %3313 = vmatmul.bf16.gmra.mxu0 %v3237
      %v3314 = vpop.f32.mrf.mxu0
      %v3315 = vadd.f32 0.0, %v3314
      %v3316 = vpop.f32.mrf.mxu0
      %v3317 = vadd.f32 0.0, %v3316
      %3318 = vmatmul.bf16.gmra.mxu0 %v3240
      %v3319 = vpop.f32.mrf.mxu0
      %v3320 = vadd.f32 0.0, %v3319
      %v3321 = vpop.f32.mrf.mxu0
      %v3322 = vadd.f32 0.0, %v3321
      %3323 = vmatmul.bf16.gmra.mxu0 %v3243
      %v3324 = vpop.f32.mrf.mxu0
      %v3325 = vadd.f32 0.0, %v3324
      %v3326 = vpop.f32.mrf.mxu0
      %v3327 = vadd.f32 0.0, %v3326
      %3328 = vmatmul.bf16.gmra.mxu0 %v3246
      %v3329 = vpop.f32.mrf.mxu0
      %v3330 = vadd.f32 0.0, %v3329
      %v3331 = vpop.f32.mrf.mxu0
      %v3332 = vadd.f32 0.0, %v3331
      %3333 = vmatmul.bf16.gmra.mxu0 %v3249
      %v3334 = vpop.f32.mrf.mxu0
      %v3335 = vadd.f32 0.0, %v3334
      %v3336 = vpop.f32.mrf.mxu0
      %v3337 = vadd.f32 0.0, %v3336
      %3338 = vmatmul.bf16.gmra.mxu0 %v3252
      %v3339 = vpop.f32.mrf.mxu0
      %v3340 = vadd.f32 0.0, %v3339
      %v3341 = vpop.f32.mrf.mxu0
      %v3342 = vadd.f32 0.0, %v3341
      %3343 = vmatmul.bf16.gmra.mxu0 %v3255
      %v3344 = vpop.f32.mrf.mxu0
      %v3345 = vadd.f32 0.0, %v3344
      %v3346 = vpop.f32.mrf.mxu0
      %v3347 = vadd.f32 0.0, %v3346
      %3348 = vdwg.mxu0
      %v3349 = vadd.f32 %v3127, %v3270
      %v3350 = vadd.f32 %v3128, %v3272
      %v3351 = vadd.f32 %v3129, %v3275
      %v3352 = vadd.f32 %v3130, %v3277
      %v3353 = vadd.f32 %v3131, %v3280
      %v3354 = vadd.f32 %v3132, %v3282
      %v3355 = vadd.f32 %v3133, %v3285
      %v3356 = vadd.f32 %v3134, %v3287
      %v3357 = vadd.f32 %v3135, %v3290
      %v3358 = vadd.f32 %v3136, %v3292
      %v3359 = vadd.f32 %v3137, %v3295
      %v3360 = vadd.f32 %v3138, %v3297
      %v3361 = vadd.f32 %v3139, %v3300
      %v3362 = vadd.f32 %v3140, %v3302
      %v3363 = vadd.f32 %v3141, %v3305
      %v3364 = vadd.f32 %v3142, %v3307
      %v3365 = vadd.f32 %v3143, %v3310
      %v3366 = vadd.f32 %v3144, %v3312
      %v3367 = vadd.f32 %v3145, %v3315
      %v3368 = vadd.f32 %v3146, %v3317
      %v3369 = vadd.f32 %v3147, %v3320
      %v3370 = vadd.f32 %v3148, %v3322
      %v3371 = vadd.f32 %v3149, %v3325
      %v3372 = vadd.f32 %v3150, %v3327
      %v3373 = vadd.f32 %v3151, %v3330
      %v3374 = vadd.f32 %v3152, %v3332
      %v3375 = vadd.f32 %v3153, %v3335
      %v3376 = vadd.f32 %v3154, %v3337
      %v3377 = vadd.f32 %v3155, %v3340
      %v3378 = vadd.f32 %v3156, %v3342
      %v3379 = vadd.f32 %v3157, %v3345
      %v3380 = vadd.f32 %v3158, %v3347
      %3381 = vst.msk [vmem:[#allocation2] sm:$0xff] %vm242, %v3349
      %3382 = vst.msk [vmem:[#allocation2 + $0x8] sm:$0xff] %vm242, %v3350
      %3383 = vst.msk [vmem:[#allocation2 + $0x10] sm:$0xff] %vm242, %v3351
      %3384 = vst.msk [vmem:[#allocation2 + $0x18] sm:$0xff] %vm242, %v3352
      %3385 = vst.msk [vmem:[#allocation2 + $0x20] sm:$0xff] %vm242, %v3353
      %3386 = vst.msk [vmem:[#allocation2 + $0x28] sm:$0xff] %vm242, %v3354
      %3387 = vst.msk [vmem:[#allocation2 + $0x30] sm:$0xff] %vm242, %v3355
      %3388 = vst.msk [vmem:[#allocation2 + $0x38] sm:$0xff] %vm242, %v3356
      %3389 = vst.msk [vmem:[#allocation2 + $0x40] sm:$0xff] %vm242, %v3357
      %3390 = vst.msk [vmem:[#allocation2 + $0x48] sm:$0xff] %vm242, %v3358
      %3391 = vst.msk [vmem:[#allocation2 + $0x50] sm:$0xff] %vm242, %v3359
      %3392 = vst.msk [vmem:[#allocation2 + $0x58] sm:$0xff] %vm242, %v3360
      %3393 = vst.msk [vmem:[#allocation2 + $0x60] sm:$0xff] %vm242, %v3361
      %3394 = vst.msk [vmem:[#allocation2 + $0x68] sm:$0xff] %vm242, %v3362
      %3395 = vst.msk [vmem:[#allocation2 + $0x70] sm:$0xff] %vm242, %v3363
      %3396 = vst.msk [vmem:[#allocation2 + $0x78] sm:$0xff] %vm242, %v3364
      %3397 = vst.msk [vmem:[#allocation2 + $0x80] sm:$0xff] %vm242, %v3365
      %3398 = vst.msk [vmem:[#allocation2 + $0x88] sm:$0xff] %vm242, %v3366
      %3399 = vst.msk [vmem:[#allocation2 + $0x90] sm:$0xff] %vm242, %v3367
      %3400 = vst.msk [vmem:[#allocation2 + $0x98] sm:$0xff] %vm242, %v3368
      %3401 = vst.msk [vmem:[#allocation2 + $0xa0] sm:$0xff] %vm242, %v3369
      %3402 = vst.msk [vmem:[#allocation2 + $0xa8] sm:$0xff] %vm242, %v3370
      %3403 = vst.msk [vmem:[#allocation2 + $0xb0] sm:$0xff] %vm242, %v3371
      %3404 = vst.msk [vmem:[#allocation2 + $0xb8] sm:$0xff] %vm242, %v3372
      %3405 = vst.msk [vmem:[#allocation2 + $0xc0] sm:$0xff] %vm242, %v3373
      %3406 = vst.msk [vmem:[#allocation2 + $0xc8] sm:$0xff] %vm242, %v3374
      %3407 = vst.msk [vmem:[#allocation2 + $0xd0] sm:$0xff] %vm242, %v3375
      %3408 = vst.msk [vmem:[#allocation2 + $0xd8] sm:$0xff] %vm242, %v3376
      %3409 = vst.msk [vmem:[#allocation2 + $0xe0] sm:$0xff] %vm242, %v3377
      %3410 = vst.msk [vmem:[#allocation2 + $0xe8] sm:$0xff] %vm242, %v3378
      %3411 = vst.msk [vmem:[#allocation2 + $0xf0] sm:$0xff] %vm242, %v3379
      %3412 = vst.msk [vmem:[#allocation2 + $0xf8] sm:$0xff] %vm242, %v3380
      %s3413 = sadd.s32 %s241, 2
      %s3414 = smul.u32 %s3413, 3
      %s3415 = smul.addr %s3414, 4
      %s3416 = scalar_lea.vmem %s219, %s3415
      %v3417 = vld [vmem:[%s3416] sm:$0xf]
      %v3418 = vld [vmem:[%s3416 + $0x4] sm:$0xf]
      %v3419 = vld [vmem:[%s3416 + $0xc] sm:$0xf]
      %v3420 = vld [vmem:[%s3416 + $0x10] sm:$0xf]
      %v3421 = vld [vmem:[%s3416 + $0x18] sm:$0xf]
      %v3422 = vld [vmem:[%s3416 + $0x1c] sm:$0xf]
      %v3423 = vld [vmem:[%s3416 + $0x24] sm:$0xf]
      %v3424 = vld [vmem:[%s3416 + $0x28] sm:$0xf]
      %v3425 = vld [vmem:[%s3416 + $0x30] sm:$0xf]
      %v3426 = vld [vmem:[%s3416 + $0x34] sm:$0xf]
      %v3427 = vld [vmem:[%s3416 + $0x3c] sm:$0xf]
      %v3428 = vld [vmem:[%s3416 + $0x40] sm:$0xf]
      %v3429 = vld [vmem:[%s3416 + $0x48] sm:$0xf]
      %v3430 = vld [vmem:[%s3416 + $0x4c] sm:$0xf]
      %v3431 = vld [vmem:[%s3416 + $0x54] sm:$0xf]
      %v3432 = vld [vmem:[%s3416 + $0x58] sm:$0xf]
      %v3433 = vld [vmem:[%s3416 + $0x60] sm:$0xf]
      %v3434 = vld [vmem:[%s3416 + $0x64] sm:$0xf]
      %v3435 = vld [vmem:[%s3416 + $0x6c] sm:$0xf]
      %v3436 = vld [vmem:[%s3416 + $0x70] sm:$0xf]
      %v3437 = vld [vmem:[%s3416 + $0x78] sm:$0xf]
      %v3438 = vld [vmem:[%s3416 + $0x7c] sm:$0xf]
      %v3439 = vld [vmem:[%s3416 + $0x84] sm:$0xf]
      %v3440 = vld [vmem:[%s3416 + $0x88] sm:$0xf]
      %v3441 = vld [vmem:[%s3416 + $0x90] sm:$0xf]
      %v3442 = vld [vmem:[%s3416 + $0x94] sm:$0xf]
      %v3443 = vld [vmem:[%s3416 + $0x9c] sm:$0xf]
      %v3444 = vld [vmem:[%s3416 + $0xa0] sm:$0xf]
      %v3445 = vld [vmem:[%s3416 + $0xa8] sm:$0xf]
      %v3446 = vld [vmem:[%s3416 + $0xac] sm:$0xf]
      %v3447 = vld [vmem:[%s3416 + $0xb4] sm:$0xf]
      %v3448 = vld [vmem:[%s3416 + $0xb8] sm:$0xf]
      %v3449 = vld [vmem:[#allocation2] sm:$0xff]
      %v3450 = vld [vmem:[#allocation2 + $0x8] sm:$0xff]
      %v3451 = vld [vmem:[#allocation2 + $0x10] sm:$0xff]
      %v3452 = vld [vmem:[#allocation2 + $0x18] sm:$0xff]
      %v3453 = vld [vmem:[#allocation2 + $0x20] sm:$0xff]
      %v3454 = vld [vmem:[#allocation2 + $0x28] sm:$0xff]
      %v3455 = vld [vmem:[#allocation2 + $0x30] sm:$0xff]
      %v3456 = vld [vmem:[#allocation2 + $0x38] sm:$0xff]
      %v3457 = vld [vmem:[#allocation2 + $0x40] sm:$0xff]
      %v3458 = vld [vmem:[#allocation2 + $0x48] sm:$0xff]
      %v3459 = vld [vmem:[#allocation2 + $0x50] sm:$0xff]
      %v3460 = vld [vmem:[#allocation2 + $0x58] sm:$0xff]
      %v3461 = vld [vmem:[#allocation2 + $0x60] sm:$0xff]
      %v3462 = vld [vmem:[#allocation2 + $0x68] sm:$0xff]
      %v3463 = vld [vmem:[#allocation2 + $0x70] sm:$0xff]
      %v3464 = vld [vmem:[#allocation2 + $0x78] sm:$0xff]
      %v3465 = vld [vmem:[#allocation2 + $0x80] sm:$0xff]
      %v3466 = vld [vmem:[#allocation2 + $0x88] sm:$0xff]
      %v3467 = vld [vmem:[#allocation2 + $0x90] sm:$0xff]
      %v3468 = vld [vmem:[#allocation2 + $0x98] sm:$0xff]
      %v3469 = vld [vmem:[#allocation2 + $0xa0] sm:$0xff]
      %v3470 = vld [vmem:[#allocation2 + $0xa8] sm:$0xff]
      %v3471 = vld [vmem:[#allocation2 + $0xb0] sm:$0xff]
      %v3472 = vld [vmem:[#allocation2 + $0xb8] sm:$0xff]
      %v3473 = vld [vmem:[#allocation2 + $0xc0] sm:$0xff]
      %v3474 = vld [vmem:[#allocation2 + $0xc8] sm:$0xff]
      %v3475 = vld [vmem:[#allocation2 + $0xd0] sm:$0xff]
      %v3476 = vld [vmem:[#allocation2 + $0xd8] sm:$0xff]
      %v3477 = vld [vmem:[#allocation2 + $0xe0] sm:$0xff]
      %v3478 = vld [vmem:[#allocation2 + $0xe8] sm:$0xff]
      %v3479 = vld [vmem:[#allocation2 + $0xf0] sm:$0xff]
      %v3480 = vld [vmem:[#allocation2 + $0xf8] sm:$0xff]
      %s3481 = scalar_lea.vmem %s223, 12
      %v3482 = vld [vmem:[%s3481] sm:$0x3]
      %v3515 = vunpack.c.l.b16 %v3417
      %v3516 = vunpack.c.l.b16 %v3418
      %v3517 = vunpack.c.l.b16 %v3419
      %v3518 = vunpack.c.l.b16 %v3420
      %v3519 = vunpack.c.l.b16 %v3421
      %v3520 = vunpack.c.l.b16 %v3422
      %v3521 = vunpack.c.l.b16 %v3423
      %v3522 = vunpack.c.l.b16 %v3424
      %v3523 = vunpack.c.l.b16 %v3425
      %v3524 = vunpack.c.l.b16 %v3426
      %v3525 = vunpack.c.l.b16 %v3427
      %v3526 = vunpack.c.l.b16 %v3428
      %v3527 = vunpack.c.l.b16 %v3429
      %v3528 = vunpack.c.l.b16 %v3430
      %v3529 = vunpack.c.l.b16 %v3431
      %v3530 = vunpack.c.l.b16 %v3432
      %v3531 = vunpack.c.l.b16 %v3433
      %v3532 = vunpack.c.l.b16 %v3434
      %v3533 = vunpack.c.l.b16 %v3435
      %v3534 = vunpack.c.l.b16 %v3436
      %v3535 = vunpack.c.l.b16 %v3437
      %v3536 = vunpack.c.l.b16 %v3438
      %v3537 = vunpack.c.l.b16 %v3439
      %v3538 = vunpack.c.l.b16 %v3440
      %v3539 = vunpack.c.l.b16 %v3441
      %v3540 = vunpack.c.l.b16 %v3442
      %v3541 = vunpack.c.l.b16 %v3443
      %v3542 = vunpack.c.l.b16 %v3444
      %v3543 = vunpack.c.l.b16 %v3445
      %v3544 = vunpack.c.l.b16 %v3446
      %v3545 = vunpack.c.l.b16 %v3447
      %v3546 = vunpack.c.l.b16 %v3448
      %v3547 = vpack.c.b16 %v3516, %v3515
      %v3548 = vpack.c.b16 %v3518, %v3517
      %v3549 = vpack.c.b16 %v3520, %v3519
      %v3550 = vpack.c.b16 %v3522, %v3521
      %v3551 = vpack.c.b16 %v3524, %v3523
      %v3552 = vpack.c.b16 %v3526, %v3525
      %v3553 = vpack.c.b16 %v3528, %v3527
      %v3554 = vpack.c.b16 %v3530, %v3529
      %v3555 = vpack.c.b16 %v3532, %v3531
      %v3556 = vpack.c.b16 %v3534, %v3533
      %v3557 = vpack.c.b16 %v3536, %v3535
      %v3558 = vpack.c.b16 %v3538, %v3537
      %v3559 = vpack.c.b16 %v3540, %v3539
      %v3560 = vpack.c.b16 %v3542, %v3541
      %v3561 = vpack.c.b16 %v3544, %v3543
      %v3562 = vpack.c.b16 %v3546, %v3545
      %v3564 = vsel %vm423, %v3547, 0
      %v3567 = vsel %vm423, %v3548, 0
      %v3570 = vsel %vm423, %v3549, 0
      %v3573 = vsel %vm423, %v3550, 0
      %v3576 = vsel %vm423, %v3551, 0
      %v3579 = vsel %vm423, %v3552, 0
      %v3582 = vsel %vm423, %v3553, 0
      %v3585 = vsel %vm423, %v3554, 0
      %v3588 = vsel %vm423, %v3555, 0
      %v3591 = vsel %vm423, %v3556, 0
      %v3594 = vsel %vm423, %v3557, 0
      %v3597 = vsel %vm423, %v3558, 0
      %v3600 = vsel %vm423, %v3559, 0
      %v3603 = vsel %vm423, %v3560, 0
      %v3606 = vsel %vm423, %v3561, 0
      %v3609 = vsel %vm423, %v3562, 0
      %v3612 = vsel %vm472, %v3482, 0
      %3614 = vmatpush.bf16.msra.mxu0 0
      %3615 = vmatpush.bf16.msra.mxu0 0
      %3616 = vmatpush.bf16.msra.mxu0 0
      %3617 = vmatpush.bf16.msra.mxu0 0
      %3618 = vmatpush.bf16.msra.mxu0 0
      %3619 = vmatpush.bf16.msra.mxu0 0
      %3620 = vmatpush.bf16.msra.mxu0 0
      %3621 = vmatpush.bf16.msra.mxu0 %v3612
      %3622 = vmatmul.bf16.gmra.mxu0 %v3564
      %v3623 = vpop.f32.mrf.mxu0
      %v3624 = vadd.f32 0.0, %v3623
      %v3625 = vpop.f32.mrf.mxu0
      %v3626 = vadd.f32 0.0, %v3625
      %3627 = vmatmul.bf16.gmra.mxu0 %v3567
      %v3628 = vpop.f32.mrf.mxu0
      %v3629 = vadd.f32 0.0, %v3628
      %v3630 = vpop.f32.mrf.mxu0
      %v3631 = vadd.f32 0.0, %v3630
      %3632 = vmatmul.bf16.gmra.mxu0 %v3570
      %v3633 = vpop.f32.mrf.mxu0
      %v3634 = vadd.f32 0.0, %v3633
      %v3635 = vpop.f32.mrf.mxu0
      %v3636 = vadd.f32 0.0, %v3635
      %3637 = vmatmul.bf16.gmra.mxu0 %v3573
      %v3638 = vpop.f32.mrf.mxu0
      %v3639 = vadd.f32 0.0, %v3638
      %v3640 = vpop.f32.mrf.mxu0
      %v3641 = vadd.f32 0.0, %v3640
      %3642 = vmatmul.bf16.gmra.mxu0 %v3576
      %v3643 = vpop.f32.mrf.mxu0
      %v3644 = vadd.f32 0.0, %v3643
      %v3645 = vpop.f32.mrf.mxu0
      %v3646 = vadd.f32 0.0, %v3645
      %3647 = vmatmul.bf16.gmra.mxu0 %v3579
      %v3648 = vpop.f32.mrf.mxu0
      %v3649 = vadd.f32 0.0, %v3648
      %v3650 = vpop.f32.mrf.mxu0
      %v3651 = vadd.f32 0.0, %v3650
      %3652 = vmatmul.bf16.gmra.mxu0 %v3582
      %v3653 = vpop.f32.mrf.mxu0
      %v3654 = vadd.f32 0.0, %v3653
      %v3655 = vpop.f32.mrf.mxu0
      %v3656 = vadd.f32 0.0, %v3655
      %3657 = vmatmul.bf16.gmra.mxu0 %v3585
      %v3658 = vpop.f32.mrf.mxu0
      %v3659 = vadd.f32 0.0, %v3658
      %v3660 = vpop.f32.mrf.mxu0
      %v3661 = vadd.f32 0.0, %v3660
      %3662 = vmatmul.bf16.gmra.mxu0 %v3588
      %v3663 = vpop.f32.mrf.mxu0
      %v3664 = vadd.f32 0.0, %v3663
      %v3665 = vpop.f32.mrf.mxu0
      %v3666 = vadd.f32 0.0, %v3665
      %3667 = vmatmul.bf16.gmra.mxu0 %v3591
      %v3668 = vpop.f32.mrf.mxu0
      %v3669 = vadd.f32 0.0, %v3668
      %v3670 = vpop.f32.mrf.mxu0
      %v3671 = vadd.f32 0.0, %v3670
      %3672 = vmatmul.bf16.gmra.mxu0 %v3594
      %v3673 = vpop.f32.mrf.mxu0
      %v3674 = vadd.f32 0.0, %v3673
      %v3675 = vpop.f32.mrf.mxu0
      %v3676 = vadd.f32 0.0, %v3675
      %3677 = vmatmul.bf16.gmra.mxu0 %v3597
      %v3678 = vpop.f32.mrf.mxu0
      %v3679 = vadd.f32 0.0, %v3678
      %v3680 = vpop.f32.mrf.mxu0
      %v3681 = vadd.f32 0.0, %v3680
      %3682 = vmatmul.bf16.gmra.mxu0 %v3600
      %v3683 = vpop.f32.mrf.mxu0
      %v3684 = vadd.f32 0.0, %v3683
      %v3685 = vpop.f32.mrf.mxu0
      %v3686 = vadd.f32 0.0, %v3685
      %3687 = vmatmul.bf16.gmra.mxu0 %v3603
      %v3688 = vpop.f32.mrf.mxu0
      %v3689 = vadd.f32 0.0, %v3688
      %v3690 = vpop.f32.mrf.mxu0
      %v3691 = vadd.f32 0.0, %v3690
      %3692 = vmatmul.bf16.gmra.mxu0 %v3606
      %v3693 = vpop.f32.mrf.mxu0
      %v3694 = vadd.f32 0.0, %v3693
      %v3695 = vpop.f32.mrf.mxu0
      %v3696 = vadd.f32 0.0, %v3695
      %3697 = vmatmul.bf16.gmra.mxu0 %v3609
      %v3698 = vpop.f32.mrf.mxu0
      %v3699 = vadd.f32 0.0, %v3698
      %v3700 = vpop.f32.mrf.mxu0
      %v3701 = vadd.f32 0.0, %v3700
      %3702 = vdwg.mxu0
      %v3703 = vadd.f32 %v3449, %v3624
      %v3704 = vadd.f32 %v3450, %v3626
      %v3705 = vadd.f32 %v3451, %v3629
      %v3706 = vadd.f32 %v3452, %v3631
      %v3707 = vadd.f32 %v3453, %v3634
      %v3708 = vadd.f32 %v3454, %v3636
      %v3709 = vadd.f32 %v3455, %v3639
      %v3710 = vadd.f32 %v3456, %v3641
      %v3711 = vadd.f32 %v3457, %v3644
      %v3712 = vadd.f32 %v3458, %v3646
      %v3713 = vadd.f32 %v3459, %v3649
      %v3714 = vadd.f32 %v3460, %v3651
      %v3715 = vadd.f32 %v3461, %v3654
      %v3716 = vadd.f32 %v3462, %v3656
      %v3717 = vadd.f32 %v3463, %v3659
      %v3718 = vadd.f32 %v3464, %v3661
      %v3719 = vadd.f32 %v3465, %v3664
      %v3720 = vadd.f32 %v3466, %v3666
      %v3721 = vadd.f32 %v3467, %v3669
      %v3722 = vadd.f32 %v3468, %v3671
      %v3723 = vadd.f32 %v3469, %v3674
      %v3724 = vadd.f32 %v3470, %v3676
      %v3725 = vadd.f32 %v3471, %v3679
      %v3726 = vadd.f32 %v3472, %v3681
      %v3727 = vadd.f32 %v3473, %v3684
      %v3728 = vadd.f32 %v3474, %v3686
      %v3729 = vadd.f32 %v3475, %v3689
      %v3730 = vadd.f32 %v3476, %v3691
      %v3731 = vadd.f32 %v3477, %v3694
      %v3732 = vadd.f32 %v3478, %v3696
      %v3733 = vadd.f32 %v3479, %v3699
      %v3734 = vadd.f32 %v3480, %v3701
      %3735 = vst.msk [vmem:[#allocation2] sm:$0xff] %vm242, %v3703
      %3736 = vst.msk [vmem:[#allocation2 + $0x8] sm:$0xff] %vm242, %v3704
      %3737 = vst.msk [vmem:[#allocation2 + $0x10] sm:$0xff] %vm242, %v3705
      %3738 = vst.msk [vmem:[#allocation2 + $0x18] sm:$0xff] %vm242, %v3706
      %3739 = vst.msk [vmem:[#allocation2 + $0x20] sm:$0xff] %vm242, %v3707
      %3740 = vst.msk [vmem:[#allocation2 + $0x28] sm:$0xff] %vm242, %v3708
      %3741 = vst.msk [vmem:[#allocation2 + $0x30] sm:$0xff] %vm242, %v3709
      %3742 = vst.msk [vmem:[#allocation2 + $0x38] sm:$0xff] %vm242, %v3710
      %3743 = vst.msk [vmem:[#allocation2 + $0x40] sm:$0xff] %vm242, %v3711
      %3744 = vst.msk [vmem:[#allocation2 + $0x48] sm:$0xff] %vm242, %v3712
      %3745 = vst.msk [vmem:[#allocation2 + $0x50] sm:$0xff] %vm242, %v3713
      %3746 = vst.msk [vmem:[#allocation2 + $0x58] sm:$0xff] %vm242, %v3714
      %3747 = vst.msk [vmem:[#allocation2 + $0x60] sm:$0xff] %vm242, %v3715
      %3748 = vst.msk [vmem:[#allocation2 + $0x68] sm:$0xff] %vm242, %v3716
      %3749 = vst.msk [vmem:[#allocation2 + $0x70] sm:$0xff] %vm242, %v3717
      %3750 = vst.msk [vmem:[#allocation2 + $0x78] sm:$0xff] %vm242, %v3718
      %3751 = vst.msk [vmem:[#allocation2 + $0x80] sm:$0xff] %vm242, %v3719
      %3752 = vst.msk [vmem:[#allocation2 + $0x88] sm:$0xff] %vm242, %v3720
      %3753 = vst.msk [vmem:[#allocation2 + $0x90] sm:$0xff] %vm242, %v3721
      %3754 = vst.msk [vmem:[#allocation2 + $0x98] sm:$0xff] %vm242, %v3722
      %3755 = vst.msk [vmem:[#allocation2 + $0xa0] sm:$0xff] %vm242, %v3723
      %3756 = vst.msk [vmem:[#allocation2 + $0xa8] sm:$0xff] %vm242, %v3724
      %3757 = vst.msk [vmem:[#allocation2 + $0xb0] sm:$0xff] %vm242, %v3725
      %3758 = vst.msk [vmem:[#allocation2 + $0xb8] sm:$0xff] %vm242, %v3726
      %3759 = vst.msk [vmem:[#allocation2 + $0xc0] sm:$0xff] %vm242, %v3727
      %3760 = vst.msk [vmem:[#allocation2 + $0xc8] sm:$0xff] %vm242, %v3728
      %3761 = vst.msk [vmem:[#allocation2 + $0xd0] sm:$0xff] %vm242, %v3729
      %3762 = vst.msk [vmem:[#allocation2 + $0xd8] sm:$0xff] %vm242, %v3730
      %3763 = vst.msk [vmem:[#allocation2 + $0xe0] sm:$0xff] %vm242, %v3731
      %3764 = vst.msk [vmem:[#allocation2 + $0xe8] sm:$0xff] %vm242, %v3732
      %3765 = vst.msk [vmem:[#allocation2 + $0xf0] sm:$0xff] %vm242, %v3733
      %3766 = vst.msk [vmem:[#allocation2 + $0xf8] sm:$0xff] %vm242, %v3734
      %v3767 = vld [vmem:[%s3416] sm:$0xf]
      %v3768 = vld [vmem:[%s3416 + $0x4] sm:$0xf]
      %v3769 = vld [vmem:[%s3416 + $0x8] sm:$0x1]
      %v3770 = vld [vmem:[%s3416 + $0xc] sm:$0xf]
      %v3771 = vld [vmem:[%s3416 + $0x10] sm:$0xf]
      %v3772 = vld [vmem:[%s3416 + $0x14] sm:$0x1]
      %v3773 = vld [vmem:[%s3416 + $0x18] sm:$0xf]
      %v3774 = vld [vmem:[%s3416 + $0x1c] sm:$0xf]
      %v3775 = vld [vmem:[%s3416 + $0x20] sm:$0x1]
      %v3776 = vld [vmem:[%s3416 + $0x24] sm:$0xf]
      %v3777 = vld [vmem:[%s3416 + $0x28] sm:$0xf]
      %v3778 = vld [vmem:[%s3416 + $0x2c] sm:$0x1]
      %v3779 = vld [vmem:[%s3416 + $0x30] sm:$0xf]
      %v3780 = vld [vmem:[%s3416 + $0x34] sm:$0xf]
      %v3781 = vld [vmem:[%s3416 + $0x38] sm:$0x1]
      %v3782 = vld [vmem:[%s3416 + $0x3c] sm:$0xf]
      %v3783 = vld [vmem:[%s3416 + $0x40] sm:$0xf]
      %v3784 = vld [vmem:[%s3416 + $0x44] sm:$0x1]
      %v3785 = vld [vmem:[%s3416 + $0x48] sm:$0xf]
      %v3786 = vld [vmem:[%s3416 + $0x4c] sm:$0xf]
      %v3787 = vld [vmem:[%s3416 + $0x50] sm:$0x1]
      %v3788 = vld [vmem:[%s3416 + $0x54] sm:$0xf]
      %v3789 = vld [vmem:[%s3416 + $0x58] sm:$0xf]
      %v3790 = vld [vmem:[%s3416 + $0x5c] sm:$0x1]
      %v3791 = vld [vmem:[%s3416 + $0x60] sm:$0xf]
      %v3792 = vld [vmem:[%s3416 + $0x64] sm:$0xf]
      %v3793 = vld [vmem:[%s3416 + $0x68] sm:$0x1]
      %v3794 = vld [vmem:[%s3416 + $0x6c] sm:$0xf]
      %v3795 = vld [vmem:[%s3416 + $0x70] sm:$0xf]
      %v3796 = vld [vmem:[%s3416 + $0x74] sm:$0x1]
      %v3797 = vld [vmem:[%s3416 + $0x78] sm:$0xf]
      %v3798 = vld [vmem:[%s3416 + $0x7c] sm:$0xf]
      %v3799 = vld [vmem:[%s3416 + $0x80] sm:$0x1]
      %v3800 = vld [vmem:[%s3416 + $0x84] sm:$0xf]
      %v3801 = vld [vmem:[%s3416 + $0x88] sm:$0xf]
      %v3802 = vld [vmem:[%s3416 + $0x8c] sm:$0x1]
      %v3803 = vld [vmem:[%s3416 + $0x90] sm:$0xf]
      %v3804 = vld [vmem:[%s3416 + $0x94] sm:$0xf]
      %v3805 = vld [vmem:[%s3416 + $0x98] sm:$0x1]
      %v3806 = vld [vmem:[%s3416 + $0x9c] sm:$0xf]
      %v3807 = vld [vmem:[%s3416 + $0xa0] sm:$0xf]
      %v3808 = vld [vmem:[%s3416 + $0xa4] sm:$0x1]
      %v3809 = vld [vmem:[%s3416 + $0xa8] sm:$0xf]
      %v3810 = vld [vmem:[%s3416 + $0xac] sm:$0xf]
      %v3811 = vld [vmem:[%s3416 + $0xb0] sm:$0x1]
      %v3812 = vld [vmem:[%s3416 + $0xb4] sm:$0xf]
      %v3813 = vld [vmem:[%s3416 + $0xb8] sm:$0xf]
      %v3814 = vld [vmem:[%s3416 + $0xbc] sm:$0x1]
      %v3816 = vshrl.u32 %v3767, 16
      %v3818 = vrot.slane %v3816, 4
      %v3819 = vshll.u32 %v3767, 16
      %v3821 = vrot.slane %v3819, 5
      %v3822 = vor.u32 %v3818, %v3821
      %v3823 = vrot.slane %v3822, 4
      %v3825 = vshll.u32 %v3768, 16
      %v3827 = vrot.slane %v3825, 5
      %v3828 = vsel %vm679, %v3823, %v3827
      %v3829 = vshrl.u32 %v3768, 16
      %v3831 = vrot.slane %v3829, 4
      %v3832 = vor.u32 %v3831, %v3827
      %v3833 = vrot.slane %v3832, 4
      %v3835 = vshll.u32 %v3769, 16
      %v3837 = vrot.slane %v3835, 5
      %v3838 = vsel %vm679, %v3833, %v3837
      %v3840 = vshrl.u32 %v3770, 16
      %v3842 = vrot.slane %v3840, 4
      %v3843 = vshll.u32 %v3770, 16
      %v3845 = vrot.slane %v3843, 5
      %v3846 = vor.u32 %v3842, %v3845
      %v3847 = vrot.slane %v3846, 4
      %v3849 = vshll.u32 %v3771, 16
      %v3851 = vrot.slane %v3849, 5
      %v3852 = vsel %vm679, %v3847, %v3851
      %v3853 = vshrl.u32 %v3771, 16
      %v3855 = vrot.slane %v3853, 4
      %v3856 = vor.u32 %v3855, %v3851
      %v3857 = vrot.slane %v3856, 4
      %v3859 = vshll.u32 %v3772, 16
      %v3861 = vrot.slane %v3859, 5
      %v3862 = vsel %vm679, %v3857, %v3861
      %v3864 = vshrl.u32 %v3773, 16
      %v3866 = vrot.slane %v3864, 4
      %v3867 = vshll.u32 %v3773, 16
      %v3869 = vrot.slane %v3867, 5
      %v3870 = vor.u32 %v3866, %v3869
      %v3871 = vrot.slane %v3870, 4
      %v3873 = vshll.u32 %v3774, 16
      %v3875 = vrot.slane %v3873, 5
      %v3876 = vsel %vm679, %v3871, %v3875
      %v3877 = vshrl.u32 %v3774, 16
      %v3879 = vrot.slane %v3877, 4
      %v3880 = vor.u32 %v3879, %v3875
      %v3881 = vrot.slane %v3880, 4
      %v3883 = vshll.u32 %v3775, 16
      %v3885 = vrot.slane %v3883, 5
      %v3886 = vsel %vm679, %v3881, %v3885
      %v3888 = vshrl.u32 %v3776, 16
      %v3890 = vrot.slane %v3888, 4
      %v3891 = vshll.u32 %v3776, 16
      %v3893 = vrot.slane %v3891, 5
      %v3894 = vor.u32 %v3890, %v3893
      %v3895 = vrot.slane %v3894, 4
      %v3897 = vshll.u32 %v3777, 16
      %v3899 = vrot.slane %v3897, 5
      %v3900 = vsel %vm679, %v3895, %v3899
      %v3901 = vshrl.u32 %v3777, 16
      %v3903 = vrot.slane %v3901, 4
      %v3904 = vor.u32 %v3903, %v3899
      %v3905 = vrot.slane %v3904, 4
      %v3907 = vshll.u32 %v3778, 16
      %v3909 = vrot.slane %v3907, 5
      %v3910 = vsel %vm679, %v3905, %v3909
      %v3912 = vshrl.u32 %v3779, 16
      %v3914 = vrot.slane %v3912, 4
      %v3915 = vshll.u32 %v3779, 16
      %v3917 = vrot.slane %v3915, 5
      %v3918 = vor.u32 %v3914, %v3917
      %v3919 = vrot.slane %v3918, 4
      %v3921 = vshll.u32 %v3780, 16
      %v3923 = vrot.slane %v3921, 5
      %v3924 = vsel %vm679, %v3919, %v3923
      %v3925 = vshrl.u32 %v3780, 16
      %v3927 = vrot.slane %v3925, 4
      %v3928 = vor.u32 %v3927, %v3923
      %v3929 = vrot.slane %v3928, 4
      %v3931 = vshll.u32 %v3781, 16
      %v3933 = vrot.slane %v3931, 5
      %v3934 = vsel %vm679, %v3929, %v3933
      %v3936 = vshrl.u32 %v3782, 16
      %v3938 = vrot.slane %v3936, 4
      %v3939 = vshll.u32 %v3782, 16
      %v3941 = vrot.slane %v3939, 5
      %v3942 = vor.u32 %v3938, %v3941
      %v3943 = vrot.slane %v3942, 4
      %v3945 = vshll.u32 %v3783, 16
      %v3947 = vrot.slane %v3945, 5
      %v3948 = vsel %vm679, %v3943, %v3947
      %v3949 = vshrl.u32 %v3783, 16
      %v3951 = vrot.slane %v3949, 4
      %v3952 = vor.u32 %v3951, %v3947
      %v3953 = vrot.slane %v3952, 4
      %v3955 = vshll.u32 %v3784, 16
      %v3957 = vrot.slane %v3955, 5
      %v3958 = vsel %vm679, %v3953, %v3957
      %v3960 = vshrl.u32 %v3785, 16
      %v3962 = vrot.slane %v3960, 4
      %v3963 = vshll.u32 %v3785, 16
      %v3965 = vrot.slane %v3963, 5
      %v3966 = vor.u32 %v3962, %v3965
      %v3967 = vrot.slane %v3966, 4
      %v3969 = vshll.u32 %v3786, 16
      %v3971 = vrot.slane %v3969, 5
      %v3972 = vsel %vm679, %v3967, %v3971
      %v3973 = vshrl.u32 %v3786, 16
      %v3975 = vrot.slane %v3973, 4
      %v3976 = vor.u32 %v3975, %v3971
      %v3977 = vrot.slane %v3976, 4
      %v3979 = vshll.u32 %v3787, 16
      %v3981 = vrot.slane %v3979, 5
      %v3982 = vsel %vm679, %v3977, %v3981
      %v3984 = vshrl.u32 %v3788, 16
      %v3986 = vrot.slane %v3984, 4
      %v3987 = vshll.u32 %v3788, 16
      %v3989 = vrot.slane %v3987, 5
      %v3990 = vor.u32 %v3986, %v3989
      %v3991 = vrot.slane %v3990, 4
      %v3993 = vshll.u32 %v3789, 16
      %v3995 = vrot.slane %v3993, 5
      %v3996 = vsel %vm679, %v3991, %v3995
      %v3997 = vshrl.u32 %v3789, 16
      %v3999 = vrot.slane %v3997, 4
      %v4000 = vor.u32 %v3999, %v3995
      %v4001 = vrot.slane %v4000, 4
      %v4003 = vshll.u32 %v3790, 16
      %v4005 = vrot.slane %v4003, 5
      %v4006 = vsel %vm679, %v4001, %v4005
      %v4008 = vshrl.u32 %v3791, 16
      %v4010 = vrot.slane %v4008, 4
      %v4011 = vshll.u32 %v3791, 16
      %v4013 = vrot.slane %v4011, 5
      %v4014 = vor.u32 %v4010, %v4013
      %v4015 = vrot.slane %v4014, 4
      %v4017 = vshll.u32 %v3792, 16
      %v4019 = vrot.slane %v4017, 5
      %v4020 = vsel %vm679, %v4015, %v4019
      %v4021 = vshrl.u32 %v3792, 16
      %v4023 = vrot.slane %v4021, 4
      %v4024 = vor.u32 %v4023, %v4019
      %v4025 = vrot.slane %v4024, 4
      %v4027 = vshll.u32 %v3793, 16
      %v4029 = vrot.slane %v4027, 5
      %v4030 = vsel %vm679, %v4025, %v4029
      %v4032 = vshrl.u32 %v3794, 16
      %v4034 = vrot.slane %v4032, 4
      %v4035 = vshll.u32 %v3794, 16
      %v4037 = vrot.slane %v4035, 5
      %v4038 = vor.u32 %v4034, %v4037
      %v4039 = vrot.slane %v4038, 4
      %v4041 = vshll.u32 %v3795, 16
      %v4043 = vrot.slane %v4041, 5
      %v4044 = vsel %vm679, %v4039, %v4043
      %v4045 = vshrl.u32 %v3795, 16
      %v4047 = vrot.slane %v4045, 4
      %v4048 = vor.u32 %v4047, %v4043
      %v4049 = vrot.slane %v4048, 4
      %v4051 = vshll.u32 %v3796, 16
      %v4053 = vrot.slane %v4051, 5
      %v4054 = vsel %vm679, %v4049, %v4053
      %v4056 = vshrl.u32 %v3797, 16
      %v4058 = vrot.slane %v4056, 4
      %v4059 = vshll.u32 %v3797, 16
      %v4061 = vrot.slane %v4059, 5
      %v4062 = vor.u32 %v4058, %v4061
      %v4063 = vrot.slane %v4062, 4
      %v4065 = vshll.u32 %v3798, 16
      %v4067 = vrot.slane %v4065, 5
      %v4068 = vsel %vm679, %v4063, %v4067
      %v4069 = vshrl.u32 %v3798, 16
      %v4071 = vrot.slane %v4069, 4
      %v4072 = vor.u32 %v4071, %v4067
      %v4073 = vrot.slane %v4072, 4
      %v4075 = vshll.u32 %v3799, 16
      %v4077 = vrot.slane %v4075, 5
      %v4078 = vsel %vm679, %v4073, %v4077
      %v4080 = vshrl.u32 %v3800, 16
      %v4082 = vrot.slane %v4080, 4
      %v4083 = vshll.u32 %v3800, 16
      %v4085 = vrot.slane %v4083, 5
      %v4086 = vor.u32 %v4082, %v4085
      %v4087 = vrot.slane %v4086, 4
      %v4089 = vshll.u32 %v3801, 16
      %v4091 = vrot.slane %v4089, 5
      %v4092 = vsel %vm679, %v4087, %v4091
      %v4093 = vshrl.u32 %v3801, 16
      %v4095 = vrot.slane %v4093, 4
      %v4096 = vor.u32 %v4095, %v4091
      %v4097 = vrot.slane %v4096, 4
      %v4099 = vshll.u32 %v3802, 16
      %v4101 = vrot.slane %v4099, 5
      %v4102 = vsel %vm679, %v4097, %v4101
      %v4104 = vshrl.u32 %v3803, 16
      %v4106 = vrot.slane %v4104, 4
      %v4107 = vshll.u32 %v3803, 16
      %v4109 = vrot.slane %v4107, 5
      %v4110 = vor.u32 %v4106, %v4109
      %v4111 = vrot.slane %v4110, 4
      %v4113 = vshll.u32 %v3804, 16
      %v4115 = vrot.slane %v4113, 5
      %v4116 = vsel %vm679, %v4111, %v4115
      %v4117 = vshrl.u32 %v3804, 16
      %v4119 = vrot.slane %v4117, 4
      %v4120 = vor.u32 %v4119, %v4115
      %v4121 = vrot.slane %v4120, 4
      %v4123 = vshll.u32 %v3805, 16
      %v4125 = vrot.slane %v4123, 5
      %v4126 = vsel %vm679, %v4121, %v4125
      %v4128 = vshrl.u32 %v3806, 16
      %v4130 = vrot.slane %v4128, 4
      %v4131 = vshll.u32 %v3806, 16
      %v4133 = vrot.slane %v4131, 5
      %v4134 = vor.u32 %v4130, %v4133
      %v4135 = vrot.slane %v4134, 4
      %v4137 = vshll.u32 %v3807, 16
      %v4139 = vrot.slane %v4137, 5
      %v4140 = vsel %vm679, %v4135, %v4139
      %v4141 = vshrl.u32 %v3807, 16
      %v4143 = vrot.slane %v4141, 4
      %v4144 = vor.u32 %v4143, %v4139
      %v4145 = vrot.slane %v4144, 4
      %v4147 = vshll.u32 %v3808, 16
      %v4149 = vrot.slane %v4147, 5
      %v4150 = vsel %vm679, %v4145, %v4149
      %v4152 = vshrl.u32 %v3809, 16
      %v4154 = vrot.slane %v4152, 4
      %v4155 = vshll.u32 %v3809, 16
      %v4157 = vrot.slane %v4155, 5
      %v4158 = vor.u32 %v4154, %v4157
      %v4159 = vrot.slane %v4158, 4
      %v4161 = vshll.u32 %v3810, 16
      %v4163 = vrot.slane %v4161, 5
      %v4164 = vsel %vm679, %v4159, %v4163
      %v4165 = vshrl.u32 %v3810, 16
      %v4167 = vrot.slane %v4165, 4
      %v4168 = vor.u32 %v4167, %v4163
      %v4169 = vrot.slane %v4168, 4
      %v4171 = vshll.u32 %v3811, 16
      %v4173 = vrot.slane %v4171, 5
      %v4174 = vsel %vm679, %v4169, %v4173
      %v4176 = vshrl.u32 %v3812, 16
      %v4178 = vrot.slane %v4176, 4
      %v4179 = vshll.u32 %v3812, 16
      %v4181 = vrot.slane %v4179, 5
      %v4182 = vor.u32 %v4178, %v4181
      %v4183 = vrot.slane %v4182, 4
      %v4185 = vshll.u32 %v3813, 16
      %v4187 = vrot.slane %v4185, 5
      %v4188 = vsel %vm679, %v4183, %v4187
      %v4189 = vshrl.u32 %v3813, 16
      %v4191 = vrot.slane %v4189, 4
      %v4192 = vor.u32 %v4191, %v4187
      %v4193 = vrot.slane %v4192, 4
      %v4195 = vshll.u32 %v3814, 16
      %v4197 = vrot.slane %v4195, 5
      %v4198 = vsel %vm679, %v4193, %v4197
      %v4199 = vld [vmem:[#allocation2] sm:$0xff]
      %v4200 = vld [vmem:[#allocation2 + $0x8] sm:$0xff]
      %v4201 = vld [vmem:[#allocation2 + $0x10] sm:$0xff]
      %v4202 = vld [vmem:[#allocation2 + $0x18] sm:$0xff]
      %v4203 = vld [vmem:[#allocation2 + $0x20] sm:$0xff]
      %v4204 = vld [vmem:[#allocation2 + $0x28] sm:$0xff]
      %v4205 = vld [vmem:[#allocation2 + $0x30] sm:$0xff]
      %v4206 = vld [vmem:[#allocation2 + $0x38] sm:$0xff]
      %v4207 = vld [vmem:[#allocation2 + $0x40] sm:$0xff]
      %v4208 = vld [vmem:[#allocation2 + $0x48] sm:$0xff]
      %v4209 = vld [vmem:[#allocation2 + $0x50] sm:$0xff]
      %v4210 = vld [vmem:[#allocation2 + $0x58] sm:$0xff]
      %v4211 = vld [vmem:[#allocation2 + $0x60] sm:$0xff]
      %v4212 = vld [vmem:[#allocation2 + $0x68] sm:$0xff]
      %v4213 = vld [vmem:[#allocation2 + $0x70] sm:$0xff]
      %v4214 = vld [vmem:[#allocation2 + $0x78] sm:$0xff]
      %v4215 = vld [vmem:[#allocation2 + $0x80] sm:$0xff]
      %v4216 = vld [vmem:[#allocation2 + $0x88] sm:$0xff]
      %v4217 = vld [vmem:[#allocation2 + $0x90] sm:$0xff]
      %v4218 = vld [vmem:[#allocation2 + $0x98] sm:$0xff]
      %v4219 = vld [vmem:[#allocation2 + $0xa0] sm:$0xff]
      %v4220 = vld [vmem:[#allocation2 + $0xa8] sm:$0xff]
      %v4221 = vld [vmem:[#allocation2 + $0xb0] sm:$0xff]
      %v4222 = vld [vmem:[#allocation2 + $0xb8] sm:$0xff]
      %v4223 = vld [vmem:[#allocation2 + $0xc0] sm:$0xff]
      %v4224 = vld [vmem:[#allocation2 + $0xc8] sm:$0xff]
      %v4225 = vld [vmem:[#allocation2 + $0xd0] sm:$0xff]
      %v4226 = vld [vmem:[#allocation2 + $0xd8] sm:$0xff]
      %v4227 = vld [vmem:[#allocation2 + $0xe0] sm:$0xff]
      %v4228 = vld [vmem:[#allocation2 + $0xe8] sm:$0xff]
      %v4229 = vld [vmem:[#allocation2 + $0xf0] sm:$0xff]
      %v4230 = vld [vmem:[#allocation2 + $0xf8] sm:$0xff]
      %s4231 = scalar_lea.vmem %s223, 14
      %v4232 = vld [vmem:[%s4231] sm:$0x3]
      %v4233 = vunpack.c.l.b16 %v3828
      %v4234 = vunpack.c.l.b16 %v3838
      %v4235 = vunpack.c.l.b16 %v3852
      %v4236 = vunpack.c.l.b16 %v3862
      %v4237 = vunpack.c.l.b16 %v3876
      %v4238 = vunpack.c.l.b16 %v3886
      %v4239 = vunpack.c.l.b16 %v3900
      %v4240 = vunpack.c.l.b16 %v3910
      %v4241 = vunpack.c.l.b16 %v3924
      %v4242 = vunpack.c.l.b16 %v3934
      %v4243 = vunpack.c.l.b16 %v3948
      %v4244 = vunpack.c.l.b16 %v3958
      %v4245 = vunpack.c.l.b16 %v3972
      %v4246 = vunpack.c.l.b16 %v3982
      %v4247 = vunpack.c.l.b16 %v3996
      %v4248 = vunpack.c.l.b16 %v4006
      %v4249 = vunpack.c.l.b16 %v4020
      %v4250 = vunpack.c.l.b16 %v4030
      %v4251 = vunpack.c.l.b16 %v4044
      %v4252 = vunpack.c.l.b16 %v4054
      %v4253 = vunpack.c.l.b16 %v4068
      %v4254 = vunpack.c.l.b16 %v4078
      %v4255 = vunpack.c.l.b16 %v4092
      %v4256 = vunpack.c.l.b16 %v4102
      %v4257 = vunpack.c.l.b16 %v4116
      %v4258 = vunpack.c.l.b16 %v4126
      %v4259 = vunpack.c.l.b16 %v4140
      %v4260 = vunpack.c.l.b16 %v4150
      %v4261 = vunpack.c.l.b16 %v4164
      %v4262 = vunpack.c.l.b16 %v4174
      %v4263 = vunpack.c.l.b16 %v4188
      %v4264 = vunpack.c.l.b16 %v4198
      %v4265 = vpack.c.b16 %v4234, %v4233
      %v4266 = vpack.c.b16 %v4236, %v4235
      %v4267 = vpack.c.b16 %v4238, %v4237
      %v4268 = vpack.c.b16 %v4240, %v4239
      %v4269 = vpack.c.b16 %v4242, %v4241
      %v4270 = vpack.c.b16 %v4244, %v4243
      %v4271 = vpack.c.b16 %v4246, %v4245
      %v4272 = vpack.c.b16 %v4248, %v4247
      %v4273 = vpack.c.b16 %v4250, %v4249
      %v4274 = vpack.c.b16 %v4252, %v4251
      %v4275 = vpack.c.b16 %v4254, %v4253
      %v4276 = vpack.c.b16 %v4256, %v4255
      %v4277 = vpack.c.b16 %v4258, %v4257
      %v4278 = vpack.c.b16 %v4260, %v4259
      %v4279 = vpack.c.b16 %v4262, %v4261
      %v4280 = vpack.c.b16 %v4264, %v4263
      %v4282 = vsel %vm423, %v4265, 0
      %v4285 = vsel %vm423, %v4266, 0
      %v4288 = vsel %vm423, %v4267, 0
      %v4291 = vsel %vm423, %v4268, 0
      %v4294 = vsel %vm423, %v4269, 0
      %v4297 = vsel %vm423, %v4270, 0
      %v4300 = vsel %vm423, %v4271, 0
      %v4303 = vsel %vm423, %v4272, 0
      %v4306 = vsel %vm423, %v4273, 0
      %v4309 = vsel %vm423, %v4274, 0
      %v4312 = vsel %vm423, %v4275, 0
      %v4315 = vsel %vm423, %v4276, 0
      %v4318 = vsel %vm423, %v4277, 0
      %v4321 = vsel %vm423, %v4278, 0
      %v4324 = vsel %vm423, %v4279, 0
      %v4327 = vsel %vm423, %v4280, 0
      %v4330 = vsel %vm472, %v4232, 0
      %4332 = vmatpush.bf16.msra.mxu0 0
      %4333 = vmatpush.bf16.msra.mxu0 0
      %4334 = vmatpush.bf16.msra.mxu0 0
      %4335 = vmatpush.bf16.msra.mxu0 0
      %4336 = vmatpush.bf16.msra.mxu0 0
      %4337 = vmatpush.bf16.msra.mxu0 0
      %4338 = vmatpush.bf16.msra.mxu0 0
      %4339 = vmatpush.bf16.msra.mxu0 %v4330
      %4340 = vmatmul.bf16.gmra.mxu0 %v4282
      %v4341 = vpop.f32.mrf.mxu0
      %v4342 = vadd.f32 0.0, %v4341
      %v4343 = vpop.f32.mrf.mxu0
      %v4344 = vadd.f32 0.0, %v4343
      %4345 = vmatmul.bf16.gmra.mxu0 %v4285
      %v4346 = vpop.f32.mrf.mxu0
      %v4347 = vadd.f32 0.0, %v4346
      %v4348 = vpop.f32.mrf.mxu0
      %v4349 = vadd.f32 0.0, %v4348
      %4350 = vmatmul.bf16.gmra.mxu0 %v4288
      %v4351 = vpop.f32.mrf.mxu0
      %v4352 = vadd.f32 0.0, %v4351
      %v4353 = vpop.f32.mrf.mxu0
      %v4354 = vadd.f32 0.0, %v4353
      %4355 = vmatmul.bf16.gmra.mxu0 %v4291
      %v4356 = vpop.f32.mrf.mxu0
      %v4357 = vadd.f32 0.0, %v4356
      %v4358 = vpop.f32.mrf.mxu0
      %v4359 = vadd.f32 0.0, %v4358
      %4360 = vmatmul.bf16.gmra.mxu0 %v4294
      %v4361 = vpop.f32.mrf.mxu0
      %v4362 = vadd.f32 0.0, %v4361
      %v4363 = vpop.f32.mrf.mxu0
      %v4364 = vadd.f32 0.0, %v4363
      %4365 = vmatmul.bf16.gmra.mxu0 %v4297
      %v4366 = vpop.f32.mrf.mxu0
      %v4367 = vadd.f32 0.0, %v4366
      %v4368 = vpop.f32.mrf.mxu0
      %v4369 = vadd.f32 0.0, %v4368
      %4370 = vmatmul.bf16.gmra.mxu0 %v4300
      %v4371 = vpop.f32.mrf.mxu0
      %v4372 = vadd.f32 0.0, %v4371
      %v4373 = vpop.f32.mrf.mxu0
      %v4374 = vadd.f32 0.0, %v4373
      %4375 = vmatmul.bf16.gmra.mxu0 %v4303
      %v4376 = vpop.f32.mrf.mxu0
      %v4377 = vadd.f32 0.0, %v4376
      %v4378 = vpop.f32.mrf.mxu0
      %v4379 = vadd.f32 0.0, %v4378
      %4380 = vmatmul.bf16.gmra.mxu0 %v4306
      %v4381 = vpop.f32.mrf.mxu0
      %v4382 = vadd.f32 0.0, %v4381
      %v4383 = vpop.f32.mrf.mxu0
      %v4384 = vadd.f32 0.0, %v4383
      %4385 = vmatmul.bf16.gmra.mxu0 %v4309
      %v4386 = vpop.f32.mrf.mxu0
      %v4387 = vadd.f32 0.0, %v4386
      %v4388 = vpop.f32.mrf.mxu0
      %v4389 = vadd.f32 0.0, %v4388
      %4390 = vmatmul.bf16.gmra.mxu0 %v4312
      %v4391 = vpop.f32.mrf.mxu0
      %v4392 = vadd.f32 0.0, %v4391
      %v4393 = vpop.f32.mrf.mxu0
      %v4394 = vadd.f32 0.0, %v4393
      %4395 = vmatmul.bf16.gmra.mxu0 %v4315
      %v4396 = vpop.f32.mrf.mxu0
      %v4397 = vadd.f32 0.0, %v4396
      %v4398 = vpop.f32.mrf.mxu0
      %v4399 = vadd.f32 0.0, %v4398
      %4400 = vmatmul.bf16.gmra.mxu0 %v4318
      %v4401 = vpop.f32.mrf.mxu0
      %v4402 = vadd.f32 0.0, %v4401
      %v4403 = vpop.f32.mrf.mxu0
      %v4404 = vadd.f32 0.0, %v4403
      %4405 = vmatmul.bf16.gmra.mxu0 %v4321
      %v4406 = vpop.f32.mrf.mxu0
      %v4407 = vadd.f32 0.0, %v4406
      %v4408 = vpop.f32.mrf.mxu0
      %v4409 = vadd.f32 0.0, %v4408
      %4410 = vmatmul.bf16.gmra.mxu0 %v4324
      %v4411 = vpop.f32.mrf.mxu0
      %v4412 = vadd.f32 0.0, %v4411
      %v4413 = vpop.f32.mrf.mxu0
      %v4414 = vadd.f32 0.0, %v4413
      %4415 = vmatmul.bf16.gmra.mxu0 %v4327
      %v4416 = vpop.f32.mrf.mxu0
      %v4417 = vadd.f32 0.0, %v4416
      %v4418 = vpop.f32.mrf.mxu0
      %v4419 = vadd.f32 0.0, %v4418
      %4420 = vdwg.mxu0
      %v4421 = vadd.f32 %v4199, %v4342
      %v4422 = vadd.f32 %v4200, %v4344
      %v4423 = vadd.f32 %v4201, %v4347
      %v4424 = vadd.f32 %v4202, %v4349
      %v4425 = vadd.f32 %v4203, %v4352
      %v4426 = vadd.f32 %v4204, %v4354
      %v4427 = vadd.f32 %v4205, %v4357
      %v4428 = vadd.f32 %v4206, %v4359
      %v4429 = vadd.f32 %v4207, %v4362
      %v4430 = vadd.f32 %v4208, %v4364
      %v4431 = vadd.f32 %v4209, %v4367
      %v4432 = vadd.f32 %v4210, %v4369
      %v4433 = vadd.f32 %v4211, %v4372
      %v4434 = vadd.f32 %v4212, %v4374
      %v4435 = vadd.f32 %v4213, %v4377
      %v4436 = vadd.f32 %v4214, %v4379
      %v4437 = vadd.f32 %v4215, %v4382
      %v4438 = vadd.f32 %v4216, %v4384
      %v4439 = vadd.f32 %v4217, %v4387
      %v4440 = vadd.f32 %v4218, %v4389
      %v4441 = vadd.f32 %v4219, %v4392
      %v4442 = vadd.f32 %v4220, %v4394
      %v4443 = vadd.f32 %v4221, %v4397
      %v4444 = vadd.f32 %v4222, %v4399
      %v4445 = vadd.f32 %v4223, %v4402
      %v4446 = vadd.f32 %v4224, %v4404
      %v4447 = vadd.f32 %v4225, %v4407
      %v4448 = vadd.f32 %v4226, %v4409
      %v4449 = vadd.f32 %v4227, %v4412
      %v4450 = vadd.f32 %v4228, %v4414
      %v4451 = vadd.f32 %v4229, %v4417
      %v4452 = vadd.f32 %v4230, %v4419
      %4453 = vst.msk [vmem:[#allocation2] sm:$0xff] %vm242, %v4421
      %4454 = vst.msk [vmem:[#allocation2 + $0x8] sm:$0xff] %vm242, %v4422
      %4455 = vst.msk [vmem:[#allocation2 + $0x10] sm:$0xff] %vm242, %v4423
      %4456 = vst.msk [vmem:[#allocation2 + $0x18] sm:$0xff] %vm242, %v4424
      %4457 = vst.msk [vmem:[#allocation2 + $0x20] sm:$0xff] %vm242, %v4425
      %4458 = vst.msk [vmem:[#allocation2 + $0x28] sm:$0xff] %vm242, %v4426
      %4459 = vst.msk [vmem:[#allocation2 + $0x30] sm:$0xff] %vm242, %v4427
      %4460 = vst.msk [vmem:[#allocation2 + $0x38] sm:$0xff] %vm242, %v4428
      %4461 = vst.msk [vmem:[#allocation2 + $0x40] sm:$0xff] %vm242, %v4429
      %4462 = vst.msk [vmem:[#allocation2 + $0x48] sm:$0xff] %vm242, %v4430
      %4463 = vst.msk [vmem:[#allocation2 + $0x50] sm:$0xff] %vm242, %v4431
      %4464 = vst.msk [vmem:[#allocation2 + $0x58] sm:$0xff] %vm242, %v4432
      %4465 = vst.msk [vmem:[#allocation2 + $0x60] sm:$0xff] %vm242, %v4433
      %4466 = vst.msk [vmem:[#allocation2 + $0x68] sm:$0xff] %vm242, %v4434
      %4467 = vst.msk [vmem:[#allocation2 + $0x70] sm:$0xff] %vm242, %v4435
      %4468 = vst.msk [vmem:[#allocation2 + $0x78] sm:$0xff] %vm242, %v4436
      %4469 = vst.msk [vmem:[#allocation2 + $0x80] sm:$0xff] %vm242, %v4437
      %4470 = vst.msk [vmem:[#allocation2 + $0x88] sm:$0xff] %vm242, %v4438
      %4471 = vst.msk [vmem:[#allocation2 + $0x90] sm:$0xff] %vm242, %v4439
      %4472 = vst.msk [vmem:[#allocation2 + $0x98] sm:$0xff] %vm242, %v4440
      %4473 = vst.msk [vmem:[#allocation2 + $0xa0] sm:$0xff] %vm242, %v4441
      %4474 = vst.msk [vmem:[#allocation2 + $0xa8] sm:$0xff] %vm242, %v4442
      %4475 = vst.msk [vmem:[#allocation2 + $0xb0] sm:$0xff] %vm242, %v4443
      %4476 = vst.msk [vmem:[#allocation2 + $0xb8] sm:$0xff] %vm242, %v4444
      %4477 = vst.msk [vmem:[#allocation2 + $0xc0] sm:$0xff] %vm242, %v4445
      %4478 = vst.msk [vmem:[#allocation2 + $0xc8] sm:$0xff] %vm242, %v4446
      %4479 = vst.msk [vmem:[#allocation2 + $0xd0] sm:$0xff] %vm242, %v4447
      %4480 = vst.msk [vmem:[#allocation2 + $0xd8] sm:$0xff] %vm242, %v4448
      %4481 = vst.msk [vmem:[#allocation2 + $0xe0] sm:$0xff] %vm242, %v4449
      %4482 = vst.msk [vmem:[#allocation2 + $0xe8] sm:$0xff] %vm242, %v4450
      %4483 = vst.msk [vmem:[#allocation2 + $0xf0] sm:$0xff] %vm242, %v4451
      %4484 = vst.msk [vmem:[#allocation2 + $0xf8] sm:$0xff] %vm242, %v4452
      %v4485 = vld [vmem:[%s3416] sm:$0xe]
      %v4486 = vld [vmem:[%s3416 + $0x4] sm:$0xf]
      %v4487 = vld [vmem:[%s3416 + $0x8] sm:$0x1]
      %v4488 = vld [vmem:[%s3416 + $0xc] sm:$0xe]
      %v4489 = vld [vmem:[%s3416 + $0x10] sm:$0xf]
      %v4490 = vld [vmem:[%s3416 + $0x14] sm:$0x1]
      %v4491 = vld [vmem:[%s3416 + $0x18] sm:$0xe]
      %v4492 = vld [vmem:[%s3416 + $0x1c] sm:$0xf]
      %v4493 = vld [vmem:[%s3416 + $0x20] sm:$0x1]
      %v4494 = vld [vmem:[%s3416 + $0x24] sm:$0xe]
      %v4495 = vld [vmem:[%s3416 + $0x28] sm:$0xf]
      %v4496 = vld [vmem:[%s3416 + $0x2c] sm:$0x1]
      %v4497 = vld [vmem:[%s3416 + $0x30] sm:$0xe]
      %v4498 = vld [vmem:[%s3416 + $0x34] sm:$0xf]
      %v4499 = vld [vmem:[%s3416 + $0x38] sm:$0x1]
      %v4500 = vld [vmem:[%s3416 + $0x3c] sm:$0xe]
      %v4501 = vld [vmem:[%s3416 + $0x40] sm:$0xf]
      %v4502 = vld [vmem:[%s3416 + $0x44] sm:$0x1]
      %v4503 = vld [vmem:[%s3416 + $0x48] sm:$0xe]
      %v4504 = vld [vmem:[%s3416 + $0x4c] sm:$0xf]
      %v4505 = vld [vmem:[%s3416 + $0x50] sm:$0x1]
      %v4506 = vld [vmem:[%s3416 + $0x54] sm:$0xe]
      %v4507 = vld [vmem:[%s3416 + $0x58] sm:$0xf]
      %v4508 = vld [vmem:[%s3416 + $0x5c] sm:$0x1]
      %v4509 = vld [vmem:[%s3416 + $0x60] sm:$0xe]
      %v4510 = vld [vmem:[%s3416 + $0x64] sm:$0xf]
      %v4511 = vld [vmem:[%s3416 + $0x68] sm:$0x1]
      %v4512 = vld [vmem:[%s3416 + $0x6c] sm:$0xe]
      %v4513 = vld [vmem:[%s3416 + $0x70] sm:$0xf]
      %v4514 = vld [vmem:[%s3416 + $0x74] sm:$0x1]
      %v4515 = vld [vmem:[%s3416 + $0x78] sm:$0xe]
      %v4516 = vld [vmem:[%s3416 + $0x7c] sm:$0xf]
      %v4517 = vld [vmem:[%s3416 + $0x80] sm:$0x1]
      %v4518 = vld [vmem:[%s3416 + $0x84] sm:$0xe]
      %v4519 = vld [vmem:[%s3416 + $0x88] sm:$0xf]
      %v4520 = vld [vmem:[%s3416 + $0x8c] sm:$0x1]
      %v4521 = vld [vmem:[%s3416 + $0x90] sm:$0xe]
      %v4522 = vld [vmem:[%s3416 + $0x94] sm:$0xf]
      %v4523 = vld [vmem:[%s3416 + $0x98] sm:$0x1]
      %v4524 = vld [vmem:[%s3416 + $0x9c] sm:$0xe]
      %v4525 = vld [vmem:[%s3416 + $0xa0] sm:$0xf]
      %v4526 = vld [vmem:[%s3416 + $0xa4] sm:$0x1]
      %v4527 = vld [vmem:[%s3416 + $0xa8] sm:$0xe]
      %v4528 = vld [vmem:[%s3416 + $0xac] sm:$0xf]
      %v4529 = vld [vmem:[%s3416 + $0xb0] sm:$0x1]
      %v4530 = vld [vmem:[%s3416 + $0xb4] sm:$0xe]
      %v4531 = vld [vmem:[%s3416 + $0xb8] sm:$0xf]
      %v4532 = vld [vmem:[%s3416 + $0xbc] sm:$0x1]
      %v4581 = vrot.slane %v4485, 5
      %v4582 = vrot.slane %v4581, 4
      %v4583 = vrot.slane %v4486, 5
      %v4584 = vsel %vm1448, %v4582, %v4583
      %v4585 = vrot.slane %v4583, 4
      %v4586 = vrot.slane %v4487, 5
      %v4587 = vsel %vm1448, %v4585, %v4586
      %v4588 = vrot.slane %v4488, 5
      %v4589 = vrot.slane %v4588, 4
      %v4590 = vrot.slane %v4489, 5
      %v4591 = vsel %vm1448, %v4589, %v4590
      %v4592 = vrot.slane %v4590, 4
      %v4593 = vrot.slane %v4490, 5
      %v4594 = vsel %vm1448, %v4592, %v4593
      %v4595 = vrot.slane %v4491, 5
      %v4596 = vrot.slane %v4595, 4
      %v4597 = vrot.slane %v4492, 5
      %v4598 = vsel %vm1448, %v4596, %v4597
      %v4599 = vrot.slane %v4597, 4
      %v4600 = vrot.slane %v4493, 5
      %v4601 = vsel %vm1448, %v4599, %v4600
      %v4602 = vrot.slane %v4494, 5
      %v4603 = vrot.slane %v4602, 4
      %v4604 = vrot.slane %v4495, 5
      %v4605 = vsel %vm1448, %v4603, %v4604
      %v4606 = vrot.slane %v4604, 4
      %v4607 = vrot.slane %v4496, 5
      %v4608 = vsel %vm1448, %v4606, %v4607
      %v4609 = vrot.slane %v4497, 5
      %v4610 = vrot.slane %v4609, 4
      %v4611 = vrot.slane %v4498, 5
      %v4612 = vsel %vm1448, %v4610, %v4611
      %v4613 = vrot.slane %v4611, 4
      %v4614 = vrot.slane %v4499, 5
      %v4615 = vsel %vm1448, %v4613, %v4614
      %v4616 = vrot.slane %v4500, 5
      %v4617 = vrot.slane %v4616, 4
      %v4618 = vrot.slane %v4501, 5
      %v4619 = vsel %vm1448, %v4617, %v4618
      %v4620 = vrot.slane %v4618, 4
      %v4621 = vrot.slane %v4502, 5
      %v4622 = vsel %vm1448, %v4620, %v4621
      %v4623 = vrot.slane %v4503, 5
      %v4624 = vrot.slane %v4623, 4
      %v4625 = vrot.slane %v4504, 5
      %v4626 = vsel %vm1448, %v4624, %v4625
      %v4627 = vrot.slane %v4625, 4
      %v4628 = vrot.slane %v4505, 5
      %v4629 = vsel %vm1448, %v4627, %v4628
      %v4630 = vrot.slane %v4506, 5
      %v4631 = vrot.slane %v4630, 4
      %v4632 = vrot.slane %v4507, 5
      %v4633 = vsel %vm1448, %v4631, %v4632
      %v4634 = vrot.slane %v4632, 4
      %v4635 = vrot.slane %v4508, 5
      %v4636 = vsel %vm1448, %v4634, %v4635
      %v4637 = vrot.slane %v4509, 5
      %v4638 = vrot.slane %v4637, 4
      %v4639 = vrot.slane %v4510, 5
      %v4640 = vsel %vm1448, %v4638, %v4639
      %v4641 = vrot.slane %v4639, 4
      %v4642 = vrot.slane %v4511, 5
      %v4643 = vsel %vm1448, %v4641, %v4642
      %v4644 = vrot.slane %v4512, 5
      %v4645 = vrot.slane %v4644, 4
      %v4646 = vrot.slane %v4513, 5
      %v4647 = vsel %vm1448, %v4645, %v4646
      %v4648 = vrot.slane %v4646, 4
      %v4649 = vrot.slane %v4514, 5
      %v4650 = vsel %vm1448, %v4648, %v4649
      %v4651 = vrot.slane %v4515, 5
      %v4652 = vrot.slane %v4651, 4
      %v4653 = vrot.slane %v4516, 5
      %v4654 = vsel %vm1448, %v4652, %v4653
      %v4655 = vrot.slane %v4653, 4
      %v4656 = vrot.slane %v4517, 5
      %v4657 = vsel %vm1448, %v4655, %v4656
      %v4658 = vrot.slane %v4518, 5
      %v4659 = vrot.slane %v4658, 4
      %v4660 = vrot.slane %v4519, 5
      %v4661 = vsel %vm1448, %v4659, %v4660
      %v4662 = vrot.slane %v4660, 4
      %v4663 = vrot.slane %v4520, 5
      %v4664 = vsel %vm1448, %v4662, %v4663
      %v4665 = vrot.slane %v4521, 5
      %v4666 = vrot.slane %v4665, 4
      %v4667 = vrot.slane %v4522, 5
      %v4668 = vsel %vm1448, %v4666, %v4667
      %v4669 = vrot.slane %v4667, 4
      %v4670 = vrot.slane %v4523, 5
      %v4671 = vsel %vm1448, %v4669, %v4670
      %v4672 = vrot.slane %v4524, 5
      %v4673 = vrot.slane %v4672, 4
      %v4674 = vrot.slane %v4525, 5
      %v4675 = vsel %vm1448, %v4673, %v4674
      %v4676 = vrot.slane %v4674, 4
      %v4677 = vrot.slane %v4526, 5
      %v4678 = vsel %vm1448, %v4676, %v4677
      %v4679 = vrot.slane %v4527, 5
      %v4680 = vrot.slane %v4679, 4
      %v4681 = vrot.slane %v4528, 5
      %v4682 = vsel %vm1448, %v4680, %v4681
      %v4683 = vrot.slane %v4681, 4
      %v4684 = vrot.slane %v4529, 5
      %v4685 = vsel %vm1448, %v4683, %v4684
      %v4686 = vrot.slane %v4530, 5
      %v4687 = vrot.slane %v4686, 4
      %v4688 = vrot.slane %v4531, 5
      %v4689 = vsel %vm1448, %v4687, %v4688
      %v4690 = vrot.slane %v4688, 4
      %v4691 = vrot.slane %v4532, 5
      %v4692 = vsel %vm1448, %v4690, %v4691
      %v4693 = vld [vmem:[#allocation2] sm:$0xff]
      %v4694 = vld [vmem:[#allocation2 + $0x8] sm:$0xff]
      %v4695 = vld [vmem:[#allocation2 + $0x10] sm:$0xff]
      %v4696 = vld [vmem:[#allocation2 + $0x18] sm:$0xff]
      %v4697 = vld [vmem:[#allocation2 + $0x20] sm:$0xff]
      %v4698 = vld [vmem:[#allocation2 + $0x28] sm:$0xff]
      %v4699 = vld [vmem:[#allocation2 + $0x30] sm:$0xff]
      %v4700 = vld [vmem:[#allocation2 + $0x38] sm:$0xff]
      %v4701 = vld [vmem:[#allocation2 + $0x40] sm:$0xff]
      %v4702 = vld [vmem:[#allocation2 + $0x48] sm:$0xff]
      %v4703 = vld [vmem:[#allocation2 + $0x50] sm:$0xff]
      %v4704 = vld [vmem:[#allocation2 + $0x58] sm:$0xff]
      %v4705 = vld [vmem:[#allocation2 + $0x60] sm:$0xff]
      %v4706 = vld [vmem:[#allocation2 + $0x68] sm:$0xff]
      %v4707 = vld [vmem:[#allocation2 + $0x70] sm:$0xff]
      %v4708 = vld [vmem:[#allocation2 + $0x78] sm:$0xff]
      %v4709 = vld [vmem:[#allocation2 + $0x80] sm:$0xff]
      %v4710 = vld [vmem:[#allocation2 + $0x88] sm:$0xff]
      %v4711 = vld [vmem:[#allocation2 + $0x90] sm:$0xff]
      %v4712 = vld [vmem:[#allocation2 + $0x98] sm:$0xff]
      %v4713 = vld [vmem:[#allocation2 + $0xa0] sm:$0xff]
      %v4714 = vld [vmem:[#allocation2 + $0xa8] sm:$0xff]
      %v4715 = vld [vmem:[#allocation2 + $0xb0] sm:$0xff]
      %v4716 = vld [vmem:[#allocation2 + $0xb8] sm:$0xff]
      %v4717 = vld [vmem:[#allocation2 + $0xc0] sm:$0xff]
      %v4718 = vld [vmem:[#allocation2 + $0xc8] sm:$0xff]
      %v4719 = vld [vmem:[#allocation2 + $0xd0] sm:$0xff]
      %v4720 = vld [vmem:[#allocation2 + $0xd8] sm:$0xff]
      %v4721 = vld [vmem:[#allocation2 + $0xe0] sm:$0xff]
      %v4722 = vld [vmem:[#allocation2 + $0xe8] sm:$0xff]
      %v4723 = vld [vmem:[#allocation2 + $0xf0] sm:$0xff]
      %v4724 = vld [vmem:[#allocation2 + $0xf8] sm:$0xff]
      %s4725 = scalar_lea.vmem %s223, 16
      %v4726 = vld [vmem:[%s4725] sm:$0x3]
      %v4727 = vunpack.c.l.b16 %v4584
      %v4728 = vunpack.c.l.b16 %v4587
      %v4729 = vunpack.c.l.b16 %v4591
      %v4730 = vunpack.c.l.b16 %v4594
      %v4731 = vunpack.c.l.b16 %v4598
      %v4732 = vunpack.c.l.b16 %v4601
      %v4733 = vunpack.c.l.b16 %v4605
      %v4734 = vunpack.c.l.b16 %v4608
      %v4735 = vunpack.c.l.b16 %v4612
      %v4736 = vunpack.c.l.b16 %v4615
      %v4737 = vunpack.c.l.b16 %v4619
      %v4738 = vunpack.c.l.b16 %v4622
      %v4739 = vunpack.c.l.b16 %v4626
      %v4740 = vunpack.c.l.b16 %v4629
      %v4741 = vunpack.c.l.b16 %v4633
      %v4742 = vunpack.c.l.b16 %v4636
      %v4743 = vunpack.c.l.b16 %v4640
      %v4744 = vunpack.c.l.b16 %v4643
      %v4745 = vunpack.c.l.b16 %v4647
      %v4746 = vunpack.c.l.b16 %v4650
      %v4747 = vunpack.c.l.b16 %v4654
      %v4748 = vunpack.c.l.b16 %v4657
      %v4749 = vunpack.c.l.b16 %v4661
      %v4750 = vunpack.c.l.b16 %v4664
      %v4751 = vunpack.c.l.b16 %v4668
      %v4752 = vunpack.c.l.b16 %v4671
      %v4753 = vunpack.c.l.b16 %v4675
      %v4754 = vunpack.c.l.b16 %v4678
      %v4755 = vunpack.c.l.b16 %v4682
      %v4756 = vunpack.c.l.b16 %v4685
      %v4757 = vunpack.c.l.b16 %v4689
      %v4758 = vunpack.c.l.b16 %v4692
      %v4759 = vpack.c.b16 %v4728, %v4727
      %v4760 = vpack.c.b16 %v4730, %v4729
      %v4761 = vpack.c.b16 %v4732, %v4731
      %v4762 = vpack.c.b16 %v4734, %v4733
      %v4763 = vpack.c.b16 %v4736, %v4735
      %v4764 = vpack.c.b16 %v4738, %v4737
      %v4765 = vpack.c.b16 %v4740, %v4739
      %v4766 = vpack.c.b16 %v4742, %v4741
      %v4767 = vpack.c.b16 %v4744, %v4743
      %v4768 = vpack.c.b16 %v4746, %v4745
      %v4769 = vpack.c.b16 %v4748, %v4747
      %v4770 = vpack.c.b16 %v4750, %v4749
      %v4771 = vpack.c.b16 %v4752, %v4751
      %v4772 = vpack.c.b16 %v4754, %v4753
      %v4773 = vpack.c.b16 %v4756, %v4755
      %v4774 = vpack.c.b16 %v4758, %v4757
      %v4776 = vsel %vm423, %v4759, 0
      %v4779 = vsel %vm423, %v4760, 0
      %v4782 = vsel %vm423, %v4761, 0
      %v4785 = vsel %vm423, %v4762, 0
      %v4788 = vsel %vm423, %v4763, 0
      %v4791 = vsel %vm423, %v4764, 0
      %v4794 = vsel %vm423, %v4765, 0
      %v4797 = vsel %vm423, %v4766, 0
      %v4800 = vsel %vm423, %v4767, 0
      %v4803 = vsel %vm423, %v4768, 0
      %v4806 = vsel %vm423, %v4769, 0
      %v4809 = vsel %vm423, %v4770, 0
      %v4812 = vsel %vm423, %v4771, 0
      %v4815 = vsel %vm423, %v4772, 0
      %v4818 = vsel %vm423, %v4773, 0
      %v4821 = vsel %vm423, %v4774, 0
      %v4824 = vsel %vm472, %v4726, 0
      %4826 = vmatpush.bf16.msra.mxu0 0
      %4827 = vmatpush.bf16.msra.mxu0 0
      %4828 = vmatpush.bf16.msra.mxu0 0
      %4829 = vmatpush.bf16.msra.mxu0 0
      %4830 = vmatpush.bf16.msra.mxu0 0
      %4831 = vmatpush.bf16.msra.mxu0 0
      %4832 = vmatpush.bf16.msra.mxu0 0
      %4833 = vmatpush.bf16.msra.mxu0 %v4824
      %4834 = vmatmul.bf16.gmra.mxu0 %v4776
      %v4835 = vpop.f32.mrf.mxu0
      %v4836 = vadd.f32 0.0, %v4835
      %v4837 = vpop.f32.mrf.mxu0
      %v4838 = vadd.f32 0.0, %v4837
      %4839 = vmatmul.bf16.gmra.mxu0 %v4779
      %v4840 = vpop.f32.mrf.mxu0
      %v4841 = vadd.f32 0.0, %v4840
      %v4842 = vpop.f32.mrf.mxu0
      %v4843 = vadd.f32 0.0, %v4842
      %4844 = vmatmul.bf16.gmra.mxu0 %v4782
      %v4845 = vpop.f32.mrf.mxu0
      %v4846 = vadd.f32 0.0, %v4845
      %v4847 = vpop.f32.mrf.mxu0
      %v4848 = vadd.f32 0.0, %v4847
      %4849 = vmatmul.bf16.gmra.mxu0 %v4785
      %v4850 = vpop.f32.mrf.mxu0
      %v4851 = vadd.f32 0.0, %v4850
      %v4852 = vpop.f32.mrf.mxu0
      %v4853 = vadd.f32 0.0, %v4852
      %4854 = vmatmul.bf16.gmra.mxu0 %v4788
      %v4855 = vpop.f32.mrf.mxu0
      %v4856 = vadd.f32 0.0, %v4855
      %v4857 = vpop.f32.mrf.mxu0
      %v4858 = vadd.f32 0.0, %v4857
      %4859 = vmatmul.bf16.gmra.mxu0 %v4791
      %v4860 = vpop.f32.mrf.mxu0
      %v4861 = vadd.f32 0.0, %v4860
      %v4862 = vpop.f32.mrf.mxu0
      %v4863 = vadd.f32 0.0, %v4862
      %4864 = vmatmul.bf16.gmra.mxu0 %v4794
      %v4865 = vpop.f32.mrf.mxu0
      %v4866 = vadd.f32 0.0, %v4865
      %v4867 = vpop.f32.mrf.mxu0
      %v4868 = vadd.f32 0.0, %v4867
      %4869 = vmatmul.bf16.gmra.mxu0 %v4797
      %v4870 = vpop.f32.mrf.mxu0
      %v4871 = vadd.f32 0.0, %v4870
      %v4872 = vpop.f32.mrf.mxu0
      %v4873 = vadd.f32 0.0, %v4872
      %4874 = vmatmul.bf16.gmra.mxu0 %v4800
      %v4875 = vpop.f32.mrf.mxu0
      %v4876 = vadd.f32 0.0, %v4875
      %v4877 = vpop.f32.mrf.mxu0
      %v4878 = vadd.f32 0.0, %v4877
      %4879 = vmatmul.bf16.gmra.mxu0 %v4803
      %v4880 = vpop.f32.mrf.mxu0
      %v4881 = vadd.f32 0.0, %v4880
      %v4882 = vpop.f32.mrf.mxu0
      %v4883 = vadd.f32 0.0, %v4882
      %4884 = vmatmul.bf16.gmra.mxu0 %v4806
      %v4885 = vpop.f32.mrf.mxu0
      %v4886 = vadd.f32 0.0, %v4885
      %v4887 = vpop.f32.mrf.mxu0
      %v4888 = vadd.f32 0.0, %v4887
      %4889 = vmatmul.bf16.gmra.mxu0 %v4809
      %v4890 = vpop.f32.mrf.mxu0
      %v4891 = vadd.f32 0.0, %v4890
      %v4892 = vpop.f32.mrf.mxu0
      %v4893 = vadd.f32 0.0, %v4892
      %4894 = vmatmul.bf16.gmra.mxu0 %v4812
      %v4895 = vpop.f32.mrf.mxu0
      %v4896 = vadd.f32 0.0, %v4895
      %v4897 = vpop.f32.mrf.mxu0
      %v4898 = vadd.f32 0.0, %v4897
      %4899 = vmatmul.bf16.gmra.mxu0 %v4815
      %v4900 = vpop.f32.mrf.mxu0
      %v4901 = vadd.f32 0.0, %v4900
      %v4902 = vpop.f32.mrf.mxu0
      %v4903 = vadd.f32 0.0, %v4902
      %4904 = vmatmul.bf16.gmra.mxu0 %v4818
      %v4905 = vpop.f32.mrf.mxu0
      %v4906 = vadd.f32 0.0, %v4905
      %v4907 = vpop.f32.mrf.mxu0
      %v4908 = vadd.f32 0.0, %v4907
      %4909 = vmatmul.bf16.gmra.mxu0 %v4821
      %v4910 = vpop.f32.mrf.mxu0
      %v4911 = vadd.f32 0.0, %v4910
      %v4912 = vpop.f32.mrf.mxu0
      %v4913 = vadd.f32 0.0, %v4912
      %4914 = vdwg.mxu0
      %v4915 = vadd.f32 %v4693, %v4836
      %v4916 = vadd.f32 %v4694, %v4838
      %v4917 = vadd.f32 %v4695, %v4841
      %v4918 = vadd.f32 %v4696, %v4843
      %v4919 = vadd.f32 %v4697, %v4846
      %v4920 = vadd.f32 %v4698, %v4848
      %v4921 = vadd.f32 %v4699, %v4851
      %v4922 = vadd.f32 %v4700, %v4853
      %v4923 = vadd.f32 %v4701, %v4856
      %v4924 = vadd.f32 %v4702, %v4858
      %v4925 = vadd.f32 %v4703, %v4861
      %v4926 = vadd.f32 %v4704, %v4863
      %v4927 = vadd.f32 %v4705, %v4866
      %v4928 = vadd.f32 %v4706, %v4868
      %v4929 = vadd.f32 %v4707, %v4871
      %v4930 = vadd.f32 %v4708, %v4873
      %v4931 = vadd.f32 %v4709, %v4876
      %v4932 = vadd.f32 %v4710, %v4878
      %v4933 = vadd.f32 %v4711, %v4881
      %v4934 = vadd.f32 %v4712, %v4883
      %v4935 = vadd.f32 %v4713, %v4886
      %v4936 = vadd.f32 %v4714, %v4888
      %v4937 = vadd.f32 %v4715, %v4891
      %v4938 = vadd.f32 %v4716, %v4893
      %v4939 = vadd.f32 %v4717, %v4896
      %v4940 = vadd.f32 %v4718, %v4898
      %v4941 = vadd.f32 %v4719, %v4901
      %v4942 = vadd.f32 %v4720, %v4903
      %v4943 = vadd.f32 %v4721, %v4906
      %v4944 = vadd.f32 %v4722, %v4908
      %v4945 = vadd.f32 %v4723, %v4911
      %v4946 = vadd.f32 %v4724, %v4913
      %4947 = vst.msk [vmem:[#allocation2] sm:$0xff] %vm242, %v4915
      %4948 = vst.msk [vmem:[#allocation2 + $0x8] sm:$0xff] %vm242, %v4916
      %4949 = vst.msk [vmem:[#allocation2 + $0x10] sm:$0xff] %vm242, %v4917
      %4950 = vst.msk [vmem:[#allocation2 + $0x18] sm:$0xff] %vm242, %v4918
      %4951 = vst.msk [vmem:[#allocation2 + $0x20] sm:$0xff] %vm242, %v4919
      %4952 = vst.msk [vmem:[#allocation2 + $0x28] sm:$0xff] %vm242, %v4920
      %4953 = vst.msk [vmem:[#allocation2 + $0x30] sm:$0xff] %vm242, %v4921
      %4954 = vst.msk [vmem:[#allocation2 + $0x38] sm:$0xff] %vm242, %v4922
      %4955 = vst.msk [vmem:[#allocation2 + $0x40] sm:$0xff] %vm242, %v4923
      %4956 = vst.msk [vmem:[#allocation2 + $0x48] sm:$0xff] %vm242, %v4924
      %4957 = vst.msk [vmem:[#allocation2 + $0x50] sm:$0xff] %vm242, %v4925
      %4958 = vst.msk [vmem:[#allocation2 + $0x58] sm:$0xff] %vm242, %v4926
      %4959 = vst.msk [vmem:[#allocation2 + $0x60] sm:$0xff] %vm242, %v4927
      %4960 = vst.msk [vmem:[#allocation2 + $0x68] sm:$0xff] %vm242, %v4928
      %4961 = vst.msk [vmem:[#allocation2 + $0x70] sm:$0xff] %vm242, %v4929
      %4962 = vst.msk [vmem:[#allocation2 + $0x78] sm:$0xff] %vm242, %v4930
      %4963 = vst.msk [vmem:[#allocation2 + $0x80] sm:$0xff] %vm242, %v4931
      %4964 = vst.msk [vmem:[#allocation2 + $0x88] sm:$0xff] %vm242, %v4932
      %4965 = vst.msk [vmem:[#allocation2 + $0x90] sm:$0xff] %vm242, %v4933
      %4966 = vst.msk [vmem:[#allocation2 + $0x98] sm:$0xff] %vm242, %v4934
      %4967 = vst.msk [vmem:[#allocation2 + $0xa0] sm:$0xff] %vm242, %v4935
      %4968 = vst.msk [vmem:[#allocation2 + $0xa8] sm:$0xff] %vm242, %v4936
      %4969 = vst.msk [vmem:[#allocation2 + $0xb0] sm:$0xff] %vm242, %v4937
      %4970 = vst.msk [vmem:[#allocation2 + $0xb8] sm:$0xff] %vm242, %v4938
      %4971 = vst.msk [vmem:[#allocation2 + $0xc0] sm:$0xff] %vm242, %v4939
      %4972 = vst.msk [vmem:[#allocation2 + $0xc8] sm:$0xff] %vm242, %v4940
      %4973 = vst.msk [vmem:[#allocation2 + $0xd0] sm:$0xff] %vm242, %v4941
      %4974 = vst.msk [vmem:[#allocation2 + $0xd8] sm:$0xff] %vm242, %v4942
      %4975 = vst.msk [vmem:[#allocation2 + $0xe0] sm:$0xff] %vm242, %v4943
      %4976 = vst.msk [vmem:[#allocation2 + $0xe8] sm:$0xff] %vm242, %v4944
      %4977 = vst.msk [vmem:[#allocation2 + $0xf0] sm:$0xff] %vm242, %v4945
      %4978 = vst.msk [vmem:[#allocation2 + $0xf8] sm:$0xff] %vm242, %v4946
      %v4979 = vld [vmem:[#allocation2] sm:$0xff]
      %v4980 = vld [vmem:[#allocation2 + $0x8] sm:$0xff]
      %v4981 = vld [vmem:[#allocation2 + $0x10] sm:$0xff]
      %v4982 = vld [vmem:[#allocation2 + $0x18] sm:$0xff]
      %v4983 = vld [vmem:[#allocation2 + $0x20] sm:$0xff]
      %v4984 = vld [vmem:[#allocation2 + $0x28] sm:$0xff]
      %v4985 = vld [vmem:[#allocation2 + $0x30] sm:$0xff]
      %v4986 = vld [vmem:[#allocation2 + $0x38] sm:$0xff]
      %v4987 = vld [vmem:[#allocation2 + $0x40] sm:$0xff]
      %v4988 = vld [vmem:[#allocation2 + $0x48] sm:$0xff]
      %v4989 = vld [vmem:[#allocation2 + $0x50] sm:$0xff]
      %v4990 = vld [vmem:[#allocation2 + $0x58] sm:$0xff]
      %v4991 = vld [vmem:[#allocation2 + $0x60] sm:$0xff]
      %v4992 = vld [vmem:[#allocation2 + $0x68] sm:$0xff]
      %v4993 = vld [vmem:[#allocation2 + $0x70] sm:$0xff]
      %v4994 = vld [vmem:[#allocation2 + $0x78] sm:$0xff]
      %v4995 = vld [vmem:[#allocation2 + $0x80] sm:$0xff]
      %v4996 = vld [vmem:[#allocation2 + $0x88] sm:$0xff]
      %v4997 = vld [vmem:[#allocation2 + $0x90] sm:$0xff]
      %v4998 = vld [vmem:[#allocation2 + $0x98] sm:$0xff]
      %v4999 = vld [vmem:[#allocation2 + $0xa0] sm:$0xff]
      %v5000 = vld [vmem:[#allocation2 + $0xa8] sm:$0xff]
      %v5001 = vld [vmem:[#allocation2 + $0xb0] sm:$0xff]
      %v5002 = vld [vmem:[#allocation2 + $0xb8] sm:$0xff]
      %v5003 = vld [vmem:[#allocation2 + $0xc0] sm:$0xff]
      %v5004 = vld [vmem:[#allocation2 + $0xc8] sm:$0xff]
      %v5005 = vld [vmem:[#allocation2 + $0xd0] sm:$0xff]
      %v5006 = vld [vmem:[#allocation2 + $0xd8] sm:$0xff]
      %v5007 = vld [vmem:[#allocation2 + $0xe0] sm:$0xff]
      %v5008 = vld [vmem:[#allocation2 + $0xe8] sm:$0xff]
      %v5009 = vld [vmem:[#allocation2 + $0xf0] sm:$0xff]
      %v5010 = vld [vmem:[#allocation2 + $0xf8] sm:$0xff]
      %v5011 = vld [vmem:[%s226] sm:$0x1]
      %v5013 = vperm.slane %v5011, 0
      %v5015 = vadd.f32 %v4979, %v5013
      %v5016 = vadd.f32 %v4980, %v5013
      %v5017 = vadd.f32 %v4981, %v5013
      %v5018 = vadd.f32 %v4982, %v5013
      %v5019 = vadd.f32 %v4983, %v5013
      %v5020 = vadd.f32 %v4984, %v5013
      %v5021 = vadd.f32 %v4985, %v5013
      %v5022 = vadd.f32 %v4986, %v5013
      %v5023 = vadd.f32 %v4987, %v5013
      %v5024 = vadd.f32 %v4988, %v5013
      %v5025 = vadd.f32 %v4989, %v5013
      %v5026 = vadd.f32 %v4990, %v5013
      %v5027 = vadd.f32 %v4991, %v5013
      %v5028 = vadd.f32 %v4992, %v5013
      %v5029 = vadd.f32 %v4993, %v5013
      %v5030 = vadd.f32 %v4994, %v5013
      %v5031 = vadd.f32 %v4995, %v5013
      %v5032 = vadd.f32 %v4996, %v5013
      %v5033 = vadd.f32 %v4997, %v5013
      %v5034 = vadd.f32 %v4998, %v5013
      %v5035 = vadd.f32 %v4999, %v5013
      %v5036 = vadd.f32 %v5000, %v5013
      %v5037 = vadd.f32 %v5001, %v5013
      %v5038 = vadd.f32 %v5002, %v5013
      %v5039 = vadd.f32 %v5003, %v5013
      %v5040 = vadd.f32 %v5004, %v5013
      %v5041 = vadd.f32 %v5005, %v5013
      %v5042 = vadd.f32 %v5006, %v5013
      %v5043 = vadd.f32 %v5007, %v5013
      %v5044 = vadd.f32 %v5008, %v5013
      %v5045 = vadd.f32 %v5009, %v5013
      %v5046 = vadd.f32 %v5010, %v5013
      %v5047 = vmin.f32 %v5015, 20.0
      %v5048 = vmin.f32 %v5016, 20.0
      %v5049 = vmin.f32 %v5017, 20.0
      %v5050 = vmin.f32 %v5018, 20.0
      %v5051 = vmin.f32 %v5019, 20.0
      %v5052 = vmin.f32 %v5020, 20.0
      %v5053 = vmin.f32 %v5021, 20.0
      %v5054 = vmin.f32 %v5022, 20.0
      %v5055 = vmin.f32 %v5023, 20.0
      %v5056 = vmin.f32 %v5024, 20.0
      %v5057 = vmin.f32 %v5025, 20.0
      %v5058 = vmin.f32 %v5026, 20.0
      %v5059 = vmin.f32 %v5027, 20.0
      %v5060 = vmin.f32 %v5028, 20.0
      %v5061 = vmin.f32 %v5029, 20.0
      %v5062 = vmin.f32 %v5030, 20.0
      %v5063 = vmin.f32 %v5031, 20.0
      %v5064 = vmin.f32 %v5032, 20.0
      %v5065 = vmin.f32 %v5033, 20.0
      %v5066 = vmin.f32 %v5034, 20.0
      %v5067 = vmin.f32 %v5035, 20.0
      %v5068 = vmin.f32 %v5036, 20.0
      %v5069 = vmin.f32 %v5037, 20.0
      %v5070 = vmin.f32 %v5038, 20.0
      %v5071 = vmin.f32 %v5039, 20.0
      %v5072 = vmin.f32 %v5040, 20.0
      %v5073 = vmin.f32 %v5041, 20.0
      %v5074 = vmin.f32 %v5042, 20.0
      %v5075 = vmin.f32 %v5043, 20.0
      %v5076 = vmin.f32 %v5044, 20.0
      %v5077 = vmin.f32 %v5045, 20.0
      %v5078 = vmin.f32 %v5046, 20.0
      %v5079 = vmul.f32 %v5047, 1.442695
      %v5080 = vpow.pop %v5079
      %v5081 = vmul.f32 %v5048, 1.442695
      %v5082 = vpow.pop %v5081
      %v5083 = vmul.f32 %v5049, 1.442695
      %v5084 = vpow.pop %v5083
      %v5085 = vmul.f32 %v5050, 1.442695
      %v5086 = vpow.pop %v5085
      %v5087 = vmul.f32 %v5051, 1.442695
      %v5088 = vpow.pop %v5087
      %v5089 = vmul.f32 %v5052, 1.442695
      %v5090 = vpow.pop %v5089
      %v5091 = vmul.f32 %v5053, 1.442695
      %v5092 = vpow.pop %v5091
      %v5093 = vmul.f32 %v5054, 1.442695
      %v5094 = vpow.pop %v5093
      %v5095 = vmul.f32 %v5055, 1.442695
      %v5096 = vpow.pop %v5095
      %v5097 = vmul.f32 %v5056, 1.442695
      %v5098 = vpow.pop %v5097
      %v5099 = vmul.f32 %v5057, 1.442695
      %v5100 = vpow.pop %v5099
      %v5101 = vmul.f32 %v5058, 1.442695
      %v5102 = vpow.pop %v5101
      %v5103 = vmul.f32 %v5059, 1.442695
      %v5104 = vpow.pop %v5103
      %v5105 = vmul.f32 %v5060, 1.442695
      %v5106 = vpow.pop %v5105
      %v5107 = vmul.f32 %v5061, 1.442695
      %v5108 = vpow.pop %v5107
      %v5109 = vmul.f32 %v5062, 1.442695
      %v5110 = vpow.pop %v5109
      %v5111 = vmul.f32 %v5063, 1.442695
      %v5112 = vpow.pop %v5111
      %v5113 = vmul.f32 %v5064, 1.442695
      %v5114 = vpow.pop %v5113
      %v5115 = vmul.f32 %v5065, 1.442695
      %v5116 = vpow.pop %v5115
      %v5117 = vmul.f32 %v5066, 1.442695
      %v5118 = vpow.pop %v5117
      %v5119 = vmul.f32 %v5067, 1.442695
      %v5120 = vpow.pop %v5119
      %v5121 = vmul.f32 %v5068, 1.442695
      %v5122 = vpow.pop %v5121
      %v5123 = vmul.f32 %v5069, 1.442695
      %v5124 = vpow.pop %v5123
      %v5125 = vmul.f32 %v5070, 1.442695
      %v5126 = vpow.pop %v5125
      %v5127 = vmul.f32 %v5071, 1.442695
      %v5128 = vpow.pop %v5127
      %v5129 = vmul.f32 %v5072, 1.442695
      %v5130 = vpow.pop %v5129
      %v5131 = vmul.f32 %v5073, 1.442695
      %v5132 = vpow.pop %v5131
      %v5133 = vmul.f32 %v5074, 1.442695
      %v5134 = vpow.pop %v5133
      %v5135 = vmul.f32 %v5075, 1.442695
      %v5136 = vpow.pop %v5135
      %v5137 = vmul.f32 %v5076, 1.442695
      %v5138 = vpow.pop %v5137
      %v5139 = vmul.f32 %v5077, 1.442695
      %v5140 = vpow.pop %v5139
      %v5141 = vmul.f32 %v5078, 1.442695
      %v5142 = vpow.pop %v5141
      %v5143 = vadd.f32 %v5080, 2.0
      %v5144 = vadd.f32 %v5082, 2.0
      %v5145 = vadd.f32 %v5084, 2.0
      %v5146 = vadd.f32 %v5086, 2.0
      %v5147 = vadd.f32 %v5088, 2.0
      %v5148 = vadd.f32 %v5090, 2.0
      %v5149 = vadd.f32 %v5092, 2.0
      %v5150 = vadd.f32 %v5094, 2.0
      %v5151 = vadd.f32 %v5096, 2.0
      %v5152 = vadd.f32 %v5098, 2.0
      %v5153 = vadd.f32 %v5100, 2.0
      %v5154 = vadd.f32 %v5102, 2.0
      %v5155 = vadd.f32 %v5104, 2.0
      %v5156 = vadd.f32 %v5106, 2.0
      %v5157 = vadd.f32 %v5108, 2.0
      %v5158 = vadd.f32 %v5110, 2.0
      %v5159 = vadd.f32 %v5112, 2.0
      %v5160 = vadd.f32 %v5114, 2.0
      %v5161 = vadd.f32 %v5116, 2.0
      %v5162 = vadd.f32 %v5118, 2.0
      %v5163 = vadd.f32 %v5120, 2.0
      %v5164 = vadd.f32 %v5122, 2.0
      %v5165 = vadd.f32 %v5124, 2.0
      %v5166 = vadd.f32 %v5126, 2.0
      %v5167 = vadd.f32 %v5128, 2.0
      %v5168 = vadd.f32 %v5130, 2.0
      %v5169 = vadd.f32 %v5132, 2.0
      %v5170 = vadd.f32 %v5134, 2.0
      %v5171 = vadd.f32 %v5136, 2.0
      %v5172 = vadd.f32 %v5138, 2.0
      %v5173 = vadd.f32 %v5140, 2.0
      %v5174 = vadd.f32 %v5142, 2.0
      %v5175 = vmul.f32 %v5080, %v5143
      %v5176 = vmul.f32 %v5082, %v5144
      %v5177 = vmul.f32 %v5084, %v5145
      %v5178 = vmul.f32 %v5086, %v5146
      %v5179 = vmul.f32 %v5088, %v5147
      %v5180 = vmul.f32 %v5090, %v5148
      %v5181 = vmul.f32 %v5092, %v5149
      %v5182 = vmul.f32 %v5094, %v5150
      %v5183 = vmul.f32 %v5096, %v5151
      %v5184 = vmul.f32 %v5098, %v5152
      %v5185 = vmul.f32 %v5100, %v5153
      %v5186 = vmul.f32 %v5102, %v5154
      %v5187 = vmul.f32 %v5104, %v5155
      %v5188 = vmul.f32 %v5106, %v5156
      %v5189 = vmul.f32 %v5108, %v5157
      %v5190 = vmul.f32 %v5110, %v5158
      %v5191 = vmul.f32 %v5112, %v5159
      %v5192 = vmul.f32 %v5114, %v5160
      %v5193 = vmul.f32 %v5116, %v5161
      %v5194 = vmul.f32 %v5118, %v5162
      %v5195 = vmul.f32 %v5120, %v5163
      %v5196 = vmul.f32 %v5122, %v5164
      %v5197 = vmul.f32 %v5124, %v5165
      %v5198 = vmul.f32 %v5126, %v5166
      %v5199 = vmul.f32 %v5128, %v5167
      %v5200 = vmul.f32 %v5130, %v5168
      %v5201 = vmul.f32 %v5132, %v5169
      %v5202 = vmul.f32 %v5134, %v5170
      %v5203 = vmul.f32 %v5136, %v5171
      %v5204 = vmul.f32 %v5138, %v5172
      %v5205 = vmul.f32 %v5140, %v5173
      %v5206 = vmul.f32 %v5142, %v5174
      %v5207 = vadd.f32 %v5175, 2.0
      %v5208 = vadd.f32 %v5176, 2.0
      %v5209 = vadd.f32 %v5177, 2.0
      %v5210 = vadd.f32 %v5178, 2.0
      %v5211 = vadd.f32 %v5179, 2.0
      %v5212 = vadd.f32 %v5180, 2.0
      %v5213 = vadd.f32 %v5181, 2.0
      %v5214 = vadd.f32 %v5182, 2.0
      %v5215 = vadd.f32 %v5183, 2.0
      %v5216 = vadd.f32 %v5184, 2.0
      %v5217 = vadd.f32 %v5185, 2.0
      %v5218 = vadd.f32 %v5186, 2.0
      %v5219 = vadd.f32 %v5187, 2.0
      %v5220 = vadd.f32 %v5188, 2.0
      %v5221 = vadd.f32 %v5189, 2.0
      %v5222 = vadd.f32 %v5190, 2.0
      %v5223 = vadd.f32 %v5191, 2.0
      %v5224 = vadd.f32 %v5192, 2.0
      %v5225 = vadd.f32 %v5193, 2.0
      %v5226 = vadd.f32 %v5194, 2.0
      %v5227 = vadd.f32 %v5195, 2.0
      %v5228 = vadd.f32 %v5196, 2.0
      %v5229 = vadd.f32 %v5197, 2.0
      %v5230 = vadd.f32 %v5198, 2.0
      %v5231 = vadd.f32 %v5199, 2.0
      %v5232 = vadd.f32 %v5200, 2.0
      %v5233 = vadd.f32 %v5201, 2.0
      %v5234 = vadd.f32 %v5202, 2.0
      %v5235 = vadd.f32 %v5203, 2.0
      %v5236 = vadd.f32 %v5204, 2.0
      %v5237 = vadd.f32 %v5205, 2.0
      %v5238 = vadd.f32 %v5206, 2.0
      %v5239 = vrcp.pop %v5207
      %v5240 = vrcp.pop %v5208
      %v5241 = vrcp.pop %v5209
      %v5242 = vrcp.pop %v5210
      %v5243 = vrcp.pop %v5211
      %v5244 = vrcp.pop %v5212
      %v5245 = vrcp.pop %v5213
      %v5246 = vrcp.pop %v5214
      %v5247 = vrcp.pop %v5215
      %v5248 = vrcp.pop %v5216
      %v5249 = vrcp.pop %v5217
      %v5250 = vrcp.pop %v5218
      %v5251 = vrcp.pop %v5219
      %v5252 = vrcp.pop %v5220
      %v5253 = vrcp.pop %v5221
      %v5254 = vrcp.pop %v5222
      %v5255 = vrcp.pop %v5223
      %v5256 = vrcp.pop %v5224
      %v5257 = vrcp.pop %v5225
      %v5258 = vrcp.pop %v5226
      %v5259 = vrcp.pop %v5227
      %v5260 = vrcp.pop %v5228
      %v5261 = vrcp.pop %v5229
      %v5262 = vrcp.pop %v5230
      %v5263 = vrcp.pop %v5231
      %v5264 = vrcp.pop %v5232
      %v5265 = vrcp.pop %v5233
      %v5266 = vrcp.pop %v5234
      %v5267 = vrcp.pop %v5235
      %v5268 = vrcp.pop %v5236
      %v5269 = vrcp.pop %v5237
      %v5270 = vrcp.pop %v5238
      %v5271 = vmul.f32 %v5175, %v5239
      %v5272 = vmul.f32 %v5176, %v5240
      %v5273 = vmul.f32 %v5177, %v5241
      %v5274 = vmul.f32 %v5178, %v5242
      %v5275 = vmul.f32 %v5179, %v5243
      %v5276 = vmul.f32 %v5180, %v5244
      %v5277 = vmul.f32 %v5181, %v5245
      %v5278 = vmul.f32 %v5182, %v5246
      %v5279 = vmul.f32 %v5183, %v5247
      %v5280 = vmul.f32 %v5184, %v5248
      %v5281 = vmul.f32 %v5185, %v5249
      %v5282 = vmul.f32 %v5186, %v5250
      %v5283 = vmul.f32 %v5187, %v5251
      %v5284 = vmul.f32 %v5188, %v5252
      %v5285 = vmul.f32 %v5189, %v5253
      %v5286 = vmul.f32 %v5190, %v5254
      %v5287 = vmul.f32 %v5191, %v5255
      %v5288 = vmul.f32 %v5192, %v5256
      %v5289 = vmul.f32 %v5193, %v5257
      %v5290 = vmul.f32 %v5194, %v5258
      %v5291 = vmul.f32 %v5195, %v5259
      %v5292 = vmul.f32 %v5196, %v5260
      %v5293 = vmul.f32 %v5197, %v5261
      %v5294 = vmul.f32 %v5198, %v5262
      %v5295 = vmul.f32 %v5199, %v5263
      %v5296 = vmul.f32 %v5200, %v5264
      %v5297 = vmul.f32 %v5201, %v5265
      %v5298 = vmul.f32 %v5202, %v5266
      %v5299 = vmul.f32 %v5203, %v5267
      %v5300 = vmul.f32 %v5204, %v5268
      %v5301 = vmul.f32 %v5205, %v5269
      %v5302 = vmul.f32 %v5206, %v5270
      %v5303 = vmul.f32 %v5015, %v5271
      %v5304 = vmul.f32 %v5016, %v5272
      %v5305 = vmul.f32 %v5017, %v5273
      %v5306 = vmul.f32 %v5018, %v5274
      %v5307 = vmul.f32 %v5019, %v5275
      %v5308 = vmul.f32 %v5020, %v5276
      %v5309 = vmul.f32 %v5021, %v5277
      %v5310 = vmul.f32 %v5022, %v5278
      %v5311 = vmul.f32 %v5023, %v5279
      %v5312 = vmul.f32 %v5024, %v5280
      %v5313 = vmul.f32 %v5025, %v5281
      %v5314 = vmul.f32 %v5026, %v5282
      %v5315 = vmul.f32 %v5027, %v5283
      %v5316 = vmul.f32 %v5028, %v5284
      %v5317 = vmul.f32 %v5029, %v5285
      %v5318 = vmul.f32 %v5030, %v5286
      %v5319 = vmul.f32 %v5031, %v5287
      %v5320 = vmul.f32 %v5032, %v5288
      %v5321 = vmul.f32 %v5033, %v5289
      %v5322 = vmul.f32 %v5034, %v5290
      %v5323 = vmul.f32 %v5035, %v5291
      %v5324 = vmul.f32 %v5036, %v5292
      %v5325 = vmul.f32 %v5037, %v5293
      %v5326 = vmul.f32 %v5038, %v5294
      %v5327 = vmul.f32 %v5039, %v5295
      %v5328 = vmul.f32 %v5040, %v5296
      %v5329 = vmul.f32 %v5041, %v5297
      %v5330 = vmul.f32 %v5042, %v5298
      %v5331 = vmul.f32 %v5043, %v5299
      %v5332 = vmul.f32 %v5044, %v5300
      %v5333 = vmul.f32 %v5045, %v5301
      %v5334 = vmul.f32 %v5046, %v5302
      %5335 = vst.msk [vmem:[%s238] sm:$0xff] %vm242, %v5303
      %5336 = vst.msk [vmem:[%s238 + $0x8] sm:$0xff] %vm242, %v5304
      %5337 = vst.msk [vmem:[%s238 + $0x10] sm:$0xff] %vm242, %v5305
      %5338 = vst.msk [vmem:[%s238 + $0x18] sm:$0xff] %vm242, %v5306
      %5339 = vst.msk [vmem:[%s238 + $0x20] sm:$0xff] %vm242, %v5307
      %5340 = vst.msk [vmem:[%s238 + $0x28] sm:$0xff] %vm242, %v5308
      %5341 = vst.msk [vmem:[%s238 + $0x30] sm:$0xff] %vm242, %v5309
      %5342 = vst.msk [vmem:[%s238 + $0x38] sm:$0xff] %vm242, %v5310
      %5343 = vst.msk [vmem:[%s238 + $0x40] sm:$0xff] %vm242, %v5311
      %5344 = vst.msk [vmem:[%s238 + $0x48] sm:$0xff] %vm242, %v5312
      %5345 = vst.msk [vmem:[%s238 + $0x50] sm:$0xff] %vm242, %v5313
      %5346 = vst.msk [vmem:[%s238 + $0x58] sm:$0xff] %vm242, %v5314
      %5347 = vst.msk [vmem:[%s238 + $0x60] sm:$0xff] %vm242, %v5315
      %5348 = vst.msk [vmem:[%s238 + $0x68] sm:$0xff] %vm242, %v5316
      %5349 = vst.msk [vmem:[%s238 + $0x70] sm:$0xff] %vm242, %v5317
      %5350 = vst.msk [vmem:[%s238 + $0x78] sm:$0xff] %vm242, %v5318
      %5351 = vst.msk [vmem:[%s238 + $0x80] sm:$0xff] %vm242, %v5319
      %5352 = vst.msk [vmem:[%s238 + $0x88] sm:$0xff] %vm242, %v5320
      %5353 = vst.msk [vmem:[%s238 + $0x90] sm:$0xff] %vm242, %v5321
      %5354 = vst.msk [vmem:[%s238 + $0x98] sm:$0xff] %vm242, %v5322
      %5355 = vst.msk [vmem:[%s238 + $0xa0] sm:$0xff] %vm242, %v5323
      %5356 = vst.msk [vmem:[%s238 + $0xa8] sm:$0xff] %vm242, %v5324
      %5357 = vst.msk [vmem:[%s238 + $0xb0] sm:$0xff] %vm242, %v5325
      %5358 = vst.msk [vmem:[%s238 + $0xb8] sm:$0xff] %vm242, %v5326
      %5359 = vst.msk [vmem:[%s238 + $0xc0] sm:$0xff] %vm242, %v5327
      %5360 = vst.msk [vmem:[%s238 + $0xc8] sm:$0xff] %vm242, %v5328
      %5361 = vst.msk [vmem:[%s238 + $0xd0] sm:$0xff] %vm242, %v5329
      %5362 = vst.msk [vmem:[%s238 + $0xd8] sm:$0xff] %vm242, %v5330
      %5363 = vst.msk [vmem:[%s238 + $0xe0] sm:$0xff] %vm242, %v5331
      %5364 = vst.msk [vmem:[%s238 + $0xe8] sm:$0xff] %vm242, %v5332
      %5365 = vst.msk [vmem:[%s238 + $0xf0] sm:$0xff] %vm242, %v5333
      %5366 = vst.msk [vmem:[%s238 + $0xf8] sm:$0xff] %vm242, %v5334
      %s5367 = smul.u32 32, %s21
      %p5368 = scmp.lt.s32.totalorder %s19, 1
      %s5369 = scalar_select %p5368, %s19, 1
      %p5370 = scmp.lt.s32.totalorder %s5367, 31
      %s5371 = scalar_select %p5370, %s5367, 31
      %p5372 = scmp.lt.s32.totalorder %s20, 0
      %s5373 = scalar_select %p5372, %s20, 0
      %s5374 = sadd.s32 %s5373, %s5371
      %s5375 = smul.addr %s5369, 32
      %s5376 = sadd.s32 %s5374, %s5375
      %s5377 = smul.addr %s5376, 8
      %s5378 = scalar_lea.vmem %s3, %s5377
      // Predicated region
      $region33: #{tpu_custom_call.1} parent=31 // pred_check
        %p5379 = pneg %p133
      $region34: #{tpu_custom_call.1} parent=31 // pred_check_branch
        %5381 = sbr.rel (%p5379) target = $region36
      $region35: #{tpu_custom_call.1} parent=31 // pred_region
        %s5382 = smul.u32 32, %s21
      $region36: #{tpu_custom_call.1} parent=31 // pred_fallthru
        _
    $region32: #{tpu_custom_call.1} parent=5 // pred_fallthru
      _
    %p5383 = scmp.le.s32.totalorder 2, %s9
    // Predicated region
    $region37: #{tpu_custom_call.1} parent=5 // pred_check
      %p5384 = pneg %p5383
    $region38: #{tpu_custom_call.1} parent=5 // pred_check_branch
      %5386 = sbr.rel (%p5384) target = $region40
    $region39: #{tpu_custom_call.1} parent=5 // pred_region
      %s5387 = ssub.s32 %s9, 2
      // Predicated region
      $region41: #{tpu_custom_call.1} parent=39 // pred_check
        %p5388 = pneg %p139
      $region42: #{tpu_custom_call.1} parent=39 // pred_check_branch
        %5390 = sbr.rel (%p5388) target = $region44
      $region43: #{tpu_custom_call.1} parent=39 // pred_region
        %s5391 = smul.u32 32, %s24
        %p5392 = scmp.lt.s32.totalorder %s22, 1
        %s5393 = scalar_select %p5392, %s22, 1
        %p5394 = scmp.lt.s32.totalorder %s5391, 31
        %s5395 = scalar_select %p5394, %s5391, 31
        %p5396 = scmp.lt.s32.totalorder %s23, 0
        %s5397 = scalar_select %p5396, %s23, 0
        %s5398 = sadd.s32 %s5397, %s5395
        %s5399 = smul.addr %s5393, 32
        %s5400 = sadd.s32 %s5398, %s5399
        %s5401 = smul.addr %s5400, 8
        %s5402 = scalar_lea.vmem %s3, %s5401
      $region44: #{tpu_custom_call.1} parent=39 // pred_fallthru
        _
    $region40: #{tpu_custom_call.1} parent=5 // pred_fallthru
      _
  $region6: #{tpu_custom_call.1} parent=0 // loop_footer
    %s13 = sadd.s32 1, %s9
  $region7: #{tpu_custom_call.1} parent=0 // loop_footer_branch
    %8 = sbr.rel target = $region3
  $region8: #{tpu_custom_call.1} parent=0 // loop_exit
    _

</llo_original>
